<compile_context>
chip_gen: v7x
topology: tpu7x:2x2x1
jax: 0.10.0
libtpu: 0.0.40
codegen_flags: <defaults>
</compile_context>

<pallas_src>
import functools
import math

import jax
import jax.numpy as jnp
from jax.experimental import pallas as pl
from jax.experimental.pallas import tpu as pltpu


# ----------------------------- math helpers (pure jnp, usable in kernels) ----
def _layernorm(x, g, b, eps=1e-5):
    mu = jnp.mean(x, axis=-1, keepdims=True)
    var = jnp.mean((x - mu) ** 2, axis=-1, keepdims=True)
    return (x - mu) * jax.lax.rsqrt(var + eps) * g + b


def _erf_approx(x):
    # Abramowitz & Stegun 7.1.26 (|error| < 1.5e-7); exact divide (see review).
    a1, a2, a3, a4, a5 = (0.254829592, -0.284496736, 1.421413741,
                          -1.453152027, 1.061405429)
    p = 0.3275911
    sgn = jnp.where(x >= 0.0, 1.0, -1.0)
    ax = jnp.abs(x)
    t = 1.0 / (1.0 + p * ax)
    poly = ((((a5 * t + a4) * t + a3) * t + a2) * t + a1) * t
    return sgn * (1.0 - poly * jnp.exp(-ax * ax))


def _gelu_exact(x):
    return 0.5 * x * (1.0 + _erf_approx(x * (1.0 / math.sqrt(2.0))))


# ----------------------------- kernel 1: patch embed + pos + cls (one step) --
def _embed_kernel(x_ref, w_ref, b_ref, pos_ref, cls_ref, o_ref, *, batch, npatch):
    # x_ref: (B*npatch, patch_dim) bf16 ; w_ref: (patch_dim, D) bf16
    emb = jnp.dot(x_ref[...], w_ref[...],
                  preferred_element_type=jnp.float32) + b_ref[...]
    n_tok = npatch + 1
    for b in range(batch):                          # static, tiny
        o_ref[b * n_tok:b * n_tok + 1, :] = cls_ref[...]        # cls + pos[0]
        o_ref[b * n_tok + 1:(b + 1) * n_tok, :] = (
            emb[b * npatch:(b + 1) * npatch, :] + pos_ref[...])  # patches + pos[1:]


def patch_embed_pallas(patches2, kp, *, batch, npatch):
    dim = kp['patch_w'].shape[1]
    n_tok = npatch + 1
    kernel = functools.partial(_embed_kernel, batch=batch, npatch=npatch)
    return pl.pallas_call(
        kernel,
        out_shape=jax.ShapeDtypeStruct((batch * n_tok, dim), jnp.float32),
    )(patches2, kp['patch_w'], kp['patch_b'], kp['pos_patch'], kp['cls_row'])


# ----------------------------- kernel 2: whole transformer (grid over layers) -
def _encoder_kernel(x_ref, mask_ref,
                    ln1g_ref, ln1b_ref, wqkv_ref, wo_ref, bo_ref,
                    ln2g_ref, ln2b_ref, w1_ref, b1_ref, w2_ref, b2_ref,
                    o_ref, xc_ref, hv_ref, *, num_heads):
    l = pl.program_id(0)

    @pl.when(l == 0)
    def _():
        xc_ref[...] = x_ref[...]          # load the embedded tokens once

    x = xc_ref[...]                       # (B*N, D) f32, carried across layers
    bn, d = x.shape
    dh = d // num_heads
    scale = float(dh) ** -0.5
    mask = mask_ref[...]                  # (B*N, B*N) additive block-diag mask

    # ---- attention sub-block (pre-norm + residual) ----
    h = _layernorm(x, ln1g_ref[0], ln1b_ref[0]).astype(jnp.bfloat16)
    qkv = jnp.dot(h, wqkv_ref[0], preferred_element_type=jnp.float32)  # (BN,3D)

    for hd in range(num_heads):                                        # static
        q_h = (qkv[:, hd * dh:(hd + 1) * dh] * scale).astype(jnp.bfloat16)
        k_h = qkv[:, d + hd * dh:d + (hd + 1) * dh].astype(jnp.bfloat16)
        v_h = qkv[:, 2 * d + hd * dh:2 * d + (hd + 1) * dh].astype(jnp.bfloat16)
        dots = jax.lax.dot_general(
            q_h, k_h, (((1,), (1,)), ((), ())),
            preferred_element_type=jnp.float32) + mask                  # (BN,BN)
        m = jnp.max(dots, axis=-1, keepdims=True)
        e = jnp.exp(dots - m)
        a = e * pl.reciprocal(jnp.sum(e, axis=-1, keepdims=True), approx=True)
        hv_ref[:, hd * dh:(hd + 1) * dh] = jnp.dot(
            a.astype(jnp.bfloat16), v_h, preferred_element_type=jnp.float32)

    attn = jnp.dot(hv_ref[...].astype(jnp.bfloat16), wo_ref[0],
                   preferred_element_type=jnp.float32) + bo_ref[0]
    x = x + attn

    # ---- feed-forward sub-block (pre-norm + residual) ----
    h2 = _layernorm(x, ln2g_ref[0], ln2b_ref[0]).astype(jnp.bfloat16)
    f = jnp.dot(h2, w1_ref[0], preferred_element_type=jnp.float32) + b1_ref[0]
    f = _gelu_exact(f).astype(jnp.bfloat16)
    f = jnp.dot(f, w2_ref[0], preferred_element_type=jnp.float32) + b2_ref[0]
    x = x + f

    xc_ref[...] = x

    @pl.when(l == pl.num_programs(0) - 1)
    def _():
        o_ref[...] = xc_ref[...]


def transformer_pallas(x, kp, *, heads, n_tok):
    bn, d = x.shape
    depth = kp['wqkv'].shape[0]

    # additive mask preventing cross-batch attention (batch folded into rows)
    ids = jnp.arange(bn, dtype=jnp.int32) // n_tok
    attn_mask = jnp.where(ids[:, None] == ids[None, :],
                          jnp.float32(0.0), jnp.float32(-1e30))

    def full_spec(a):
        return pl.BlockSpec(a.shape, lambda l: (0,) * a.ndim)

    def layer_spec(a):
        blk = (1,) + a.shape[1:]
        nz = a.ndim - 1
        return pl.BlockSpec(blk, lambda l, _nz=nz: (l,) + (0,) * _nz)

    layer_arrays = [kp['ln1_g'], kp['ln1_b'], kp['wqkv'], kp['wo'], kp['bo'],
                    kp['ln2_g'], kp['ln2_b'], kp['w1'], kp['b1'], kp['w2'],
                    kp['b2']]

    kernel = functools.partial(_encoder_kernel, num_heads=heads)
    # TODO(synk): set vmem_limit_bytes explicitly + flash-style K/V tiling
    # before scaling N/dim (v5e 16 MiB scoped default, v7x 64 MiB physical).
    return pl.pallas_call(
        kernel,
        out_shape=jax.ShapeDtypeStruct((bn, d), jnp.float32),
        grid=(depth,),
        in_specs=[full_spec(x), full_spec(attn_mask)]
                 + [layer_spec(a) for a in layer_arrays],
        out_specs=pl.BlockSpec((bn, d), lambda l: (0, 0)),
        scratch_shapes=[pltpu.VMEM((bn, d), jnp.float32),   # activation carry
                        pltpu.VMEM((bn, d), jnp.float32)],  # per-head concat buf
        compiler_params=pltpu.CompilerParams(
            dimension_semantics=("arbitrary",)),
    )(x, attn_mask, *layer_arrays)


# ----------------------------- kernel 3: fused MLP head ----------------------
def _head_kernel(x_ref, g_ref, b_ref, w1_ref, b1_ref, w2_ref, b2_ref, o_ref,
                 *, batch, n_tok):
    rows = [x_ref[b * n_tok:b * n_tok + 1, :] for b in range(batch)]
    x = jnp.concatenate(rows, axis=0) if batch > 1 else rows[0]   # (B, D) cls rows
    h = _layernorm(x, g_ref[...], b_ref[...]).astype(jnp.bfloat16)
    h = jnp.dot(h, w1_ref[...], preferred_element_type=jnp.float32) + b1_ref[...]
    h = _gelu_exact(h).astype(jnp.bfloat16)
    o_ref[...] = jnp.dot(h, w2_ref[...],
                         preferred_element_type=jnp.float32) + b2_ref[...]


def mlp_head_pallas(x_enc, hp, *, batch, n_tok):
    n_cls = hp['w2'].shape[1]
    kernel = functools.partial(_head_kernel, batch=batch, n_tok=n_tok)
    return pl.pallas_call(
        kernel,
        out_shape=jax.ShapeDtypeStruct((batch, n_cls), jnp.float32),
    )(x_enc, hp['ln_g'], hp['ln_b'], hp['w1'], hp['b1'], hp['w2'], hp['b2'])


# ----------------------------- parameter init --------------------------------
def init_params(key, *, image_size, patch_size, num_classes, dim, depth,
                heads, mlp_dim, channels):
    assert image_size % patch_size == 0
    # NOTE: same formula as the PyTorch module; it equals the actual 3D patch
    # count only when image_size // patch_size == 2 (true for the eval config).
    num_patches = (image_size // patch_size) * (image_size // patch_size) * 2
    patch_dim = channels * patch_size ** 3
    dh = dim // heads
    keys = iter(jax.random.split(key, 64))

    def nrm(shape, std):
        return std * jax.random.normal(next(keys), shape, jnp.float32)

    params = {
        'pos_embedding': nrm((1, num_patches + 1, dim), 1.0),
        'cls_token': nrm((1, 1, dim), 1.0),
        'patch_w': nrm((patch_dim, dim), 0.02),
        'patch_b': jnp.zeros((1, dim), jnp.float32),
        'layers': [],
    }
    for _ in range(depth):
        params['layers'].append({
            'ln1_g': jnp.ones((1, dim), jnp.float32),
            'ln1_b': jnp.zeros((1, dim), jnp.float32),
            'wq': nrm((heads, dim, dh), 0.05),
            'wk': nrm((heads, dim, dh), 0.05),
            'wv': nrm((heads, dim, dh), 0.05),
            'wo': nrm((heads, dh, dim), 0.05),
            'bo': jnp.zeros((1, dim), jnp.float32),
            'ln2_g': jnp.ones((1, dim), jnp.float32),
            'ln2_b': jnp.zeros((1, dim), jnp.float32),
            'w1': nrm((dim, mlp_dim), 0.05),
            'b1': jnp.zeros((1, mlp_dim), jnp.float32),
            'w2': nrm((mlp_dim, dim), 0.05),
            'b2': jnp.zeros((1, dim), jnp.float32),
        })
    params['head'] = {
        'ln_g': jnp.ones((1, dim), jnp.float32),
        'ln_b': jnp.zeros((1, dim), jnp.float32),
        'w1': nrm((dim, mlp_dim), 0.05),
        'b1': jnp.zeros((1, mlp_dim), jnp.float32),
        'w2': nrm((mlp_dim, num_classes), 0.05),
        'b2': jnp.zeros((1, num_classes), jnp.float32),
    }
    return params


def fuse_params(params):
    """Pre-fuse / pre-cast / layer-stack weights once for the Pallas hot path."""
    kp = {
        'patch_w': params['patch_w'].astype(jnp.bfloat16),
        'patch_b': params['patch_b'],
        'pos_patch': params['pos_embedding'][0, 1:, :],                 # (np, D)
        'cls_row': (params['cls_token'][:, 0, :]
                    + params['pos_embedding'][:, 0, :]),                # (1, D)
    }

    wqkv, wo, bo, ln1g, ln1b, ln2g, ln2b, w1, b1, w2, b2 = ([] for _ in range(11))
    for lp in params['layers']:
        h, d, dh = lp['wq'].shape
        wq_full = jnp.transpose(lp['wq'], (1, 0, 2)).reshape(d, h * dh)
        wk_full = jnp.transpose(lp['wk'], (1, 0, 2)).reshape(d, h * dh)
        wv_full = jnp.transpose(lp['wv'], (1, 0, 2)).reshape(d, h * dh)
        wqkv.append(jnp.concatenate([wq_full, wk_full, wv_full], axis=1))
        wo.append(lp['wo'].reshape(h * dh, d))
        bo.append(lp['bo']); ln1g.append(lp['ln1_g']); ln1b.append(lp['ln1_b'])
        ln2g.append(lp['ln2_g']); ln2b.append(lp['ln2_b'])
        w1.append(lp['w1']); b1.append(lp['b1'])
        w2.append(lp['w2']); b2.append(lp['b2'])

    kp.update({
        'ln1_g': jnp.stack(ln1g), 'ln1_b': jnp.stack(ln1b),
        'wqkv': jnp.stack(wqkv).astype(jnp.bfloat16),      # (L, D, 3D)
        'wo': jnp.stack(wo).astype(jnp.bfloat16),          # (L, D, D)
        'bo': jnp.stack(bo),
        'ln2_g': jnp.stack(ln2g), 'ln2_b': jnp.stack(ln2b),
        'w1': jnp.stack(w1).astype(jnp.bfloat16), 'b1': jnp.stack(b1),
        'w2': jnp.stack(w2).astype(jnp.bfloat16), 'b2': jnp.stack(b2),
    })
    hd = params['head']
    kp['head'] = {'ln_g': hd['ln_g'], 'ln_b': hd['ln_b'],
                  'w1': hd['w1'].astype(jnp.bfloat16), 'b1': hd['b1'],
                  'w2': hd['w2'].astype(jnp.bfloat16), 'b2': hd['b2']}
    return kp


# ----------------------------- full forward (Pallas hot path) ----------------
def _patchify(img, patch_size):
    # rearrange 'b c (h p1) (w p2) (d p3) -> b (h w d) (p1 p2 p3 c)'
    b, c, hh, ww, dd = img.shape
    p = patch_size
    h, w, d = hh // p, ww // p, dd // p
    x = img.reshape(b, c, h, p, w, p, d, p)
    x = jnp.transpose(x, (0, 2, 4, 6, 3, 5, 7, 1))       # b h w d p1 p2 p3 c
    return x.reshape(b, h * w * d, p * p * p * c)


def vit3d_forward(img, kparams, *, patch_size, heads):
    batch = img.shape[0]
    patches = _patchify(img, patch_size)                  # (B, npatch, pdim)
    npatch, pdim = patches.shape[1], patches.shape[2]
    assert kparams['pos_patch'].shape[0] == npatch, "pos_embedding / patch mismatch"
    n_tok = npatch + 1

    patches2 = patches.reshape(batch * npatch, pdim).astype(jnp.bfloat16)

    # 1) patch embedding + bias + pos + cls, directly in (B*N, D) row layout
    x = patch_embed_pallas(patches2, kparams, batch=batch, npatch=npatch)

    # 2) all transformer layers in one pallas_call (grid over depth)
    x = transformer_pallas(x, kparams, heads=heads, n_tok=n_tok)

    # 3) cls tokens -> fused MLP head
    return mlp_head_pallas(x, kparams['head'], batch=batch, n_tok=n_tok)


# ----------------------------- pure-JAX reference (f32, for checking) --------
def _ref_block(x, p, heads):
    d = x.shape[-1]
    dh = d // heads
    hp = jax.lax.Precision.HIGHEST
    h = _layernorm(x, p['ln1_g'], p['ln1_b'])
    q = jnp.einsum('bnd,hde->bhne', h, p['wq'], precision=hp)
    k = jnp.einsum('bnd,hde->bhne', h, p['wk'], precision=hp)
    v = jnp.einsum('bnd,hde->bhne', h, p['wv'], precision=hp)
    dots = jnp.einsum('bhie,bhje->bhij', q, k, precision=hp) * (dh ** -0.5)
    a = jax.nn.softmax(dots, axis=-1)
    o = jnp.einsum('bhij,bhje->bhie', a, v, precision=hp)
    attn = jnp.einsum('bhie,hed->bid', o, p['wo'], precision=hp) + p['bo']
    x = x + attn
    h2 = _layernorm(x, p['ln2_g'], p['ln2_b'])
    f = _gelu_exact(jnp.einsum('bnd,dm->bnm', h2, p['w1'], precision=hp) + p['b1'])
    f = jnp.einsum('bnm,md->bnd', f, p['w2'], precision=hp) + p['b2']
    return x + f


def reference_forward(img, params, *, patch_size, heads):
    b = img.shape[0]
    hp = jax.lax.Precision.HIGHEST
    x = _patchify(img, patch_size)
    x = jnp.einsum('bnk,kd->bnd', x, params['patch_w'], precision=hp) + params['patch_b']
    dim = x.shape[-1]
    cls = jnp.broadcast_to(params['cls_token'], (b, 1, dim))
    x = jnp.concatenate([cls, x], axis=1) + params['pos_embedding']
    for lp in params['layers']:
        x = _ref_block(x, lp, heads)
    hd = params['head']
    y = _layernorm(x[:, 0], hd['ln_g'], hd['ln_b'])
    y = _gelu_exact(jnp.einsum('bd,dm->bm', y, hd['w1'], precision=hp) + hd['b1'])
    return jnp.einsum('bm,mc->bc', y, hd['w2'], precision=hp) + hd['b2']


# ----------------------------- main -------------------------------------------
if __name__ == "__main__":
    # lane-dense eval config: dim=256, head_dim=128, mlp_dim=512 (multiples of 128)
    cfg = dict(image_size=16, patch_size=8, num_classes=10, dim=256, depth=2,
               heads=2, mlp_dim=512, channels=3)
    key = jax.random.PRNGKey(0)
    params = init_params(key, **cfg)
    kparams = fuse_params(params)

    img = jax.random.normal(
        jax.random.fold_in(key, 123),
        (2, cfg['channels'], cfg['image_size'], cfg['image_size'], cfg['image_size']),
        jnp.float32)

    fwd = jax.jit(functools.partial(vit3d_forward,
                                    patch_size=cfg['patch_size'],
                                    heads=cfg['heads']))
    out = jax.block_until_ready(fwd(img, kparams))

    ref = reference_forward(img, params, patch_size=cfg['patch_size'],
                            heads=cfg['heads'])
    assert out.shape == (2, cfg['num_classes']), out.shape
    # tolerance accounts for bf16 MXU operands (f32 accumulation) vs f32 reference
    max_err = float(jnp.max(jnp.abs(out - ref)))
    assert max_err < 3e-2, f"max abs err too large: {max_err}"
    print("KERNEL_OK")
</pallas_src>

<mosaic_0001>
module attributes {stable_mosaic.version = 11 : i64} {
  func.func @_embed_kernel(%arg0: memref<16x1536xbf16, #tpu.memory_space<vmem>>, %arg1: memref<1536x256xbf16, #tpu.memory_space<vmem>>, %arg2: memref<1x256xf32, #tpu.memory_space<vmem>>, %arg3: memref<8x256xf32, #tpu.memory_space<vmem>>, %arg4: memref<1x256xf32, #tpu.memory_space<vmem>>, %arg5: memref<18x256xf32, #tpu.memory_space<vmem>>) attributes {dimension_semantics = [], scalar_prefetch = 0 : i64, scratch_operands = 0 : i64, tpu.core_type = #tpu.core_type<tc>} {
    %c0 = arith.constant 0 : index
    %c0_0 = arith.constant 0 : index
    %0 = vector.load %arg0[%c0, %c0_0] : memref<16x1536xbf16, #tpu.memory_space<vmem>>, vector<16x1536xbf16>
    %c0_1 = arith.constant 0 : index
    %c0_2 = arith.constant 0 : index
    %1 = vector.load %arg1[%c0_1, %c0_2] : memref<1536x256xbf16, #tpu.memory_space<vmem>>, vector<1536x256xbf16>
    %cst = arith.constant dense<0.000000e+00> : vector<16x256xf32>
    %2 = tpu.matmul %0, %1, %cst {dimension_numbers = #tpu.dot_dimension_numbers<[1], [0], [0], [1], [0, 0, 1, 1], [], []>} : vector<16x1536xbf16>, vector<1536x256xbf16>, vector<16x256xf32> -> vector<16x256xf32>
    %c0_3 = arith.constant 0 : index
    %c0_4 = arith.constant 0 : index
    %3 = vector.load %arg2[%c0_3, %c0_4] : memref<1x256xf32, #tpu.memory_space<vmem>>, vector<1x256xf32>
    %4 = vector.broadcast %3 : vector<1x256xf32> to vector<16x256xf32>
    %5 = arith.addf %2, %4 : vector<16x256xf32>
    %c0_5 = arith.constant 0 : index
    %c0_6 = arith.constant 0 : index
    %6 = vector.load %arg4[%c0_5, %c0_6] : memref<1x256xf32, #tpu.memory_space<vmem>>, vector<1x256xf32>
    %c0_7 = arith.constant 0 : index
    %c0_8 = arith.constant 0 : index
    %7 = vector.load %arg5[%c0_7, %c0_8] : memref<18x256xf32, #tpu.memory_space<vmem>>, vector<1x256xf32>
    tpu.vector_store %arg5[%c0_7, %c0_8], %6 {strides = array<i32>} : memref<18x256xf32, #tpu.memory_space<vmem>>, vector<1x256xf32>,
    %8 = vector.extract_strided_slice %5 {offsets = [0, 0], sizes = [8, 256], strides = [1, 1]} : vector<16x256xf32> to vector<8x256xf32>
    %c0_9 = arith.constant 0 : index
    %c0_10 = arith.constant 0 : index
    %9 = vector.load %arg3[%c0_9, %c0_10] : memref<8x256xf32, #tpu.memory_space<vmem>>, vector<8x256xf32>
    %10 = arith.addf %8, %9 : vector<8x256xf32>
    %c1 = arith.constant 1 : index
    %c0_11 = arith.constant 0 : index
    %11 = vector.load %arg5[%c1, %c0_11] : memref<18x256xf32, #tpu.memory_space<vmem>>, vector<8x256xf32>
    tpu.vector_store %arg5[%c1, %c0_11], %10 {strides = array<i32>} : memref<18x256xf32, #tpu.memory_space<vmem>>, vector<8x256xf32>,
    %c0_12 = arith.constant 0 : index
    %c0_13 = arith.constant 0 : index
    %12 = vector.load %arg4[%c0_12, %c0_13] : memref<1x256xf32, #tpu.memory_space<vmem>>, vector<1x256xf32>
    %c9 = arith.constant 9 : index
    %c0_14 = arith.constant 0 : index
    %13 = vector.load %arg5[%c9, %c0_14] : memref<18x256xf32, #tpu.memory_space<vmem>>, vector<1x256xf32>
    tpu.vector_store %arg5[%c9, %c0_14], %12 {strides = array<i32>} : memref<18x256xf32, #tpu.memory_space<vmem>>, vector<1x256xf32>,
    %14 = vector.extract_strided_slice %5 {offsets = [8, 0], sizes = [8, 256], strides = [1, 1]} : vector<16x256xf32> to vector<8x256xf32>
    %c0_15 = arith.constant 0 : index
    %c0_16 = arith.constant 0 : index
    %15 = vector.load %arg3[%c0_15, %c0_16] : memref<8x256xf32, #tpu.memory_space<vmem>>, vector<8x256xf32>
    %16 = arith.addf %14, %15 : vector<8x256xf32>
    %c10 = arith.constant 10 : index
    %c0_17 = arith.constant 0 : index
    %17 = vector.load %arg5[%c10, %c0_17] : memref<18x256xf32, #tpu.memory_space<vmem>>, vector<8x256xf32>
    tpu.vector_store %arg5[%c10, %c0_17], %16 {strides = array<i32>} : memref<18x256xf32, #tpu.memory_space<vmem>>, vector<8x256xf32>,
    return
  }
}

module attributes {stable_mosaic.version = 11 : i64} {
  func.func @_encoder_kernel(%arg0: i32, %arg1: memref<18x256xf32, #tpu.memory_space<vmem>>, %arg2: memref<18x18xf32, #tpu.memory_space<vmem>>, %arg3: memref<1x1x256xf32, #tpu.memory_space<vmem>>, %arg4: memref<1x1x256xf32, #tpu.memory_space<vmem>>, %arg5: memref<1x256x768xbf16, #tpu.memory_space<vmem>>, %arg6: memref<1x256x256xbf16, #tpu.memory_space<vmem>>, %arg7: memref<1x1x256xf32, #tpu.memory_space<vmem>>, %arg8: memref<1x1x256xf32, #tpu.memory_space<vmem>>, %arg9: memref<1x1x256xf32, #tpu.memory_space<vmem>>, %arg10: memref<1x256x512xbf16, #tpu.memory_space<vmem>>, %arg11: memref<1x1x512xf32, #tpu.memory_space<vmem>>, %arg12: memref<1x512x256xbf16, #tpu.memory_space<vmem>>, %arg13: memref<1x1x256xf32, #tpu.memory_space<vmem>>, %arg14: memref<18x256xf32, #tpu.memory_space<vmem>>, %arg15: memref<18x256xf32, #tpu.memory_space<vmem>>, %arg16: memref<18x256xf32, #tpu.memory_space<vmem>>) attributes {dimension_semantics = [#tpu.dimension_semantics<arbitrary>], iteration_bounds = array<i64: 2>, scalar_prefetch = 0 : i64, scratch_operands = 2 : i64, tpu.core_type = #tpu.core_type<tc>, window_params = [{pipeline_mode = #tpu.pipeline_mode<synchronous>, transform_indices = @transform_0, window_bounds = array<i64: 18, 256>}, {pipeline_mode = #tpu.pipeline_mode<synchronous>, transform_indices = @transform_1, window_bounds = array<i64: 18, 18>}, {transform_indices = @transform_2, window_bounds = array<i64: 1, 1, 256>}, {transform_indices = @transform_3, window_bounds = array<i64: 1, 1, 256>}, {transform_indices = @transform_4, window_bounds = array<i64: 1, 256, 768>}, {transform_indices = @transform_5, window_bounds = array<i64: 1, 256, 256>}, {transform_indices = @transform_6, window_bounds = array<i64: 1, 1, 256>}, {transform_indices = @transform_7, window_bounds = array<i64: 1, 1, 256>}, {transform_indices = @transform_8, window_bounds = array<i64: 1, 1, 256>}, {transform_indices = @transform_9, window_bounds = array<i64: 1, 256, 512>}, {transform_indices = @transform_10, window_bounds = array<i64: 1, 1, 512>}, {transform_indices = @transform_11, window_bounds = array<i64: 1, 512, 256>}, {transform_indices = @transform_12, window_bounds = array<i64: 1, 1, 256>}, {pipeline_mode = #tpu.pipeline_mode<synchronous>, transform_indices = @transform_13, window_bounds = array<i64: 18, 256>}]} {
    %c0_i32 = arith.constant 0 : i32
    %0 = arith.cmpi eq, %arg0, %c0_i32 : i32
    %1 = arith.extui %0 : i1 to i32
    %c0_i32_0 = arith.constant 0 : i32
    %2 = arith.cmpi ne, %1, %c0_i32_0 : i32
    scf.if %2 {
      %c0_84 = arith.constant 0 : index
      %c0_85 = arith.constant 0 : index
      %179 = vector.load %arg1[%c0_84, %c0_85] : memref<18x256xf32, #tpu.memory_space<vmem>>, vector<18x256xf32>
      %c0_86 = arith.constant 0 : index
      %c0_87 = arith.constant 0 : index
      %180 = vector.load %arg15[%c0_86, %c0_87] : memref<18x256xf32, #tpu.memory_space<vmem>>, vector<18x256xf32>
      tpu.vector_store %arg15[%c0_86, %c0_87], %179 {strides = array<i32>} : memref<18x256xf32, #tpu.memory_space<vmem>>, vector<18x256xf32>,
    } else {
    }
    %c0 = arith.constant 0 : index
    %c0_1 = arith.constant 0 : index
    %3 = vector.load %arg15[%c0, %c0_1] : memref<18x256xf32, #tpu.memory_space<vmem>>, vector<18x256xf32>
    %c0_2 = arith.constant 0 : index
    %c0_3 = arith.constant 0 : index
    %4 = vector.load %arg2[%c0_2, %c0_3] : memref<18x18xf32, #tpu.memory_space<vmem>>, vector<18x18xf32>
    %c0_4 = arith.constant 0 : index
    %c0_5 = arith.constant 0 : index
    %c0_6 = arith.constant 0 : index
    %5 = vector.load %arg3[%c0_4, %c0_5, %c0_6] : memref<1x1x256xf32, #tpu.memory_space<vmem>>, vector<1x1x256xf32>
    %6 = vector.shape_cast %5 : vector<1x1x256xf32> to vector<1x256xf32>
    %c0_7 = arith.constant 0 : index
    %c0_8 = arith.constant 0 : index
    %c0_9 = arith.constant 0 : index
    %7 = vector.load %arg4[%c0_7, %c0_8, %c0_9] : memref<1x1x256xf32, #tpu.memory_space<vmem>>, vector<1x1x256xf32>
    %8 = vector.shape_cast %7 : vector<1x1x256xf32> to vector<1x256xf32>
    %cst = arith.constant dense<0.000000e+00> : vector<18xf32>
    %9 = vector.multi_reduction <add>, %3, %cst [1] : vector<18x256xf32> to vector<18xf32>
    %10 = vector.shape_cast %9 : vector<18xf32> to vector<18x1xf32>
    %cst_10 = arith.constant 2.560000e+02 : f32
    %11 = vector.broadcast %cst_10 : f32 to vector<18x1xf32>
    %12 = arith.divf %10, %11 : vector<18x1xf32>
    %13 = vector.broadcast %12 : vector<18x1xf32> to vector<18x256xf32>
    %14 = arith.subf %3, %13 : vector<18x256xf32>
    %15 = arith.mulf %14, %14 : vector<18x256xf32>
    %cst_11 = arith.constant dense<0.000000e+00> : vector<18xf32>
    %16 = vector.multi_reduction <add>, %15, %cst_11 [1] : vector<18x256xf32> to vector<18xf32>
    %17 = vector.shape_cast %16 : vector<18xf32> to vector<18x1xf32>
    %cst_12 = arith.constant 2.560000e+02 : f32
    %18 = vector.broadcast %cst_12 : f32 to vector<18x1xf32>
    %19 = arith.divf %17, %18 : vector<18x1xf32>
    %20 = vector.broadcast %12 : vector<18x1xf32> to vector<18x256xf32>
    %21 = arith.subf %3, %20 : vector<18x256xf32>
    %cst_13 = arith.constant 9.99999974E-6 : f32
    %22 = vector.broadcast %cst_13 : f32 to vector<18x1xf32>
    %23 = arith.addf %19, %22 : vector<18x1xf32>
    %24 = math.rsqrt %23 : vector<18x1xf32>
    %25 = vector.broadcast %24 : vector<18x1xf32> to vector<18x256xf32>
    %26 = arith.mulf %21, %25 : vector<18x256xf32>
    %27 = vector.broadcast %6 : vector<1x256xf32> to vector<18x256xf32>
    %28 = arith.mulf %26, %27 : vector<18x256xf32>
    %29 = vector.broadcast %8 : vector<1x256xf32> to vector<18x256xf32>
    %30 = arith.addf %28, %29 : vector<18x256xf32>
    %31 = arith.truncf %30 : vector<18x256xf32> to vector<18x256xbf16>
    %c0_14 = arith.constant 0 : index
    %c0_15 = arith.constant 0 : index
    %c0_16 = arith.constant 0 : index
    %32 = vector.load %arg5[%c0_14, %c0_15, %c0_16] : memref<1x256x768xbf16, #tpu.memory_space<vmem>>, vector<1x256x768xbf16>
    %33 = vector.shape_cast %32 : vector<1x256x768xbf16> to vector<256x768xbf16>
    %cst_17 = arith.constant dense<0.000000e+00> : vector<18x768xf32>
    %34 = tpu.matmul %31, %33, %cst_17 {dimension_numbers = #tpu.dot_dimension_numbers<[1], [0], [0], [1], [0, 0, 1, 1], [], []>} : vector<18x256xbf16>, vector<256x768xbf16>, vector<18x768xf32> -> vector<18x768xf32>
    %35 = vector.extract_strided_slice %34 {offsets = [0, 0], sizes = [18, 128], strides = [1, 1]} : vector<18x768xf32> to vector<18x128xf32>
    %cst_18 = arith.constant 0.0883883461 : f32
    %36 = vector.broadcast %cst_18 : f32 to vector<18x128xf32>
    %37 = arith.mulf %35, %36 : vector<18x128xf32>
    %38 = arith.truncf %37 : vector<18x128xf32> to vector<18x128xbf16>
    %39 = vector.extract_strided_slice %34 {offsets = [0, 256], sizes = [18, 128], strides = [1, 1]} : vector<18x768xf32> to vector<18x128xf32>
    %40 = arith.truncf %39 : vector<18x128xf32> to vector<18x128xbf16>
    %41 = vector.extract_strided_slice %34 {offsets = [0, 512], sizes = [18, 128], strides = [1, 1]} : vector<18x768xf32> to vector<18x128xf32>
    %42 = arith.truncf %41 : vector<18x128xf32> to vector<18x128xbf16>
    %cst_19 = arith.constant dense<0.000000e+00> : vector<18x18xf32>
    %43 = tpu.matmul %38, %40, %cst_19 {dimension_numbers = #tpu.dot_dimension_numbers<[1], [1], [0], [0], [0, 0, 1, 0], [], []>} : vector<18x128xbf16>, vector<18x128xbf16>, vector<18x18xf32> -> vector<18x18xf32>
    %44 = arith.addf %43, %4 : vector<18x18xf32>
    %cst_20 = arith.constant dense<0xFF800000> : vector<18xf32>
    %45 = vector.multi_reduction <maximumf>, %44, %cst_20 [1] : vector<18x18xf32> to vector<18xf32>
    %46 = vector.shape_cast %45 : vector<18xf32> to vector<18x1xf32>
    %47 = vector.broadcast %46 : vector<18x1xf32> to vector<18x18xf32>
    %48 = arith.subf %44, %47 : vector<18x18xf32>
    %49 = math.exp %48 : vector<18x18xf32>
    %cst_21 = arith.constant dense<0.000000e+00> : vector<18xf32>
    %50 = vector.multi_reduction <add>, %49, %cst_21 [1] : vector<18x18xf32> to vector<18xf32>
    %51 = vector.shape_cast %50 : vector<18xf32> to vector<18x1xf32>
    %52 = tpu.reciprocal %51 {approx = true} : vector<18x1xf32> -> vector<18x1xf32>
    %53 = vector.broadcast %52 : vector<18x1xf32> to vector<18x18xf32>
    %54 = arith.mulf %49, %53 : vector<18x18xf32>
    %55 = arith.truncf %54 : vector<18x18xf32> to vector<18x18xbf16>
    %cst_22 = arith.constant dense<0.000000e+00> : vector<18x128xf32>
    %56 = tpu.matmul %55, %42, %cst_22 {dimension_numbers = #tpu.dot_dimension_numbers<[1], [0], [0], [1], [0, 0, 1, 1], [], []>} : vector<18x18xbf16>, vector<18x128xbf16>, vector<18x128xf32> -> vector<18x128xf32>
    %c0_23 = arith.constant 0 : index
    %c0_24 = arith.constant 0 : index
    %57 = vector.load %arg16[%c0_23, %c0_24] : memref<18x256xf32, #tpu.memory_space<vmem>>, vector<18x128xf32>
    tpu.vector_store %arg16[%c0_23, %c0_24], %56 {strides = array<i32>} : memref<18x256xf32, #tpu.memory_space<vmem>>, vector<18x128xf32>,
    %58 = vector.extract_strided_slice %34 {offsets = [0, 128], sizes = [18, 128], strides = [1, 1]} : vector<18x768xf32> to vector<18x128xf32>
    %cst_25 = arith.constant 0.0883883461 : f32
    %59 = vector.broadcast %cst_25 : f32 to vector<18x128xf32>
    %60 = arith.mulf %58, %59 : vector<18x128xf32>
    %61 = arith.truncf %60 : vector<18x128xf32> to vector<18x128xbf16>
    %62 = vector.extract_strided_slice %34 {offsets = [0, 384], sizes = [18, 128], strides = [1, 1]} : vector<18x768xf32> to vector<18x128xf32>
    %63 = arith.truncf %62 : vector<18x128xf32> to vector<18x128xbf16>
    %64 = vector.extract_strided_slice %34 {offsets = [0, 640], sizes = [18, 128], strides = [1, 1]} : vector<18x768xf32> to vector<18x128xf32>
    %65 = arith.truncf %64 : vector<18x128xf32> to vector<18x128xbf16>
    %cst_26 = arith.constant dense<0.000000e+00> : vector<18x18xf32>
    %66 = tpu.matmul %61, %63, %cst_26 {dimension_numbers = #tpu.dot_dimension_numbers<[1], [1], [0], [0], [0, 0, 1, 0], [], []>} : vector<18x128xbf16>, vector<18x128xbf16>, vector<18x18xf32> -> vector<18x18xf32>
    %67 = arith.addf %66, %4 : vector<18x18xf32>
    %cst_27 = arith.constant dense<0xFF800000> : vector<18xf32>
    %68 = vector.multi_reduction <maximumf>, %67, %cst_27 [1] : vector<18x18xf32> to vector<18xf32>
    %69 = vector.shape_cast %68 : vector<18xf32> to vector<18x1xf32>
    %70 = vector.broadcast %69 : vector<18x1xf32> to vector<18x18xf32>
    %71 = arith.subf %67, %70 : vector<18x18xf32>
    %72 = math.exp %71 : vector<18x18xf32>
    %cst_28 = arith.constant dense<0.000000e+00> : vector<18xf32>
    %73 = vector.multi_reduction <add>, %72, %cst_28 [1] : vector<18x18xf32> to vector<18xf32>
    %74 = vector.shape_cast %73 : vector<18xf32> to vector<18x1xf32>
    %75 = tpu.reciprocal %74 {approx = true} : vector<18x1xf32> -> vector<18x1xf32>
    %76 = vector.broadcast %75 : vector<18x1xf32> to vector<18x18xf32>
    %77 = arith.mulf %72, %76 : vector<18x18xf32>
    %78 = arith.truncf %77 : vector<18x18xf32> to vector<18x18xbf16>
    %cst_29 = arith.constant dense<0.000000e+00> : vector<18x128xf32>
    %79 = tpu.matmul %78, %65, %cst_29 {dimension_numbers = #tpu.dot_dimension_numbers<[1], [0], [0], [1], [0, 0, 1, 1], [], []>} : vector<18x18xbf16>, vector<18x128xbf16>, vector<18x128xf32> -> vector<18x128xf32>
    %c0_30 = arith.constant 0 : index
    %c128 = arith.constant 128 : index
    %80 = vector.load %arg16[%c0_30, %c128] : memref<18x256xf32, #tpu.memory_space<vmem>>, vector<18x128xf32>
    tpu.vector_store %arg16[%c0_30, %c128], %79 {strides = array<i32>} : memref<18x256xf32, #tpu.memory_space<vmem>>, vector<18x128xf32>,
    %c0_31 = arith.constant 0 : index
    %c0_32 = arith.constant 0 : index
    %81 = vector.load %arg16[%c0_31, %c0_32] : memref<18x256xf32, #tpu.memory_space<vmem>>, vector<18x256xf32>
    %82 = arith.truncf %81 : vector<18x256xf32> to vector<18x256xbf16>
    %c0_33 = arith.constant 0 : index
    %c0_34 = arith.constant 0 : index
    %c0_35 = arith.constant 0 : index
    %83 = vector.load %arg6[%c0_33, %c0_34, %c0_35] : memref<1x256x256xbf16, #tpu.memory_space<vmem>>, vector<1x256x256xbf16>
    %84 = vector.shape_cast %83 : vector<1x256x256xbf16> to vector<256x256xbf16>
    %cst_36 = arith.constant dense<0.000000e+00> : vector<18x256xf32>
    %85 = tpu.matmul %82, %84, %cst_36 {dimension_numbers = #tpu.dot_dimension_numbers<[1], [0], [0], [1], [0, 0, 1, 1], [], []>} : vector<18x256xbf16>, vector<256x256xbf16>, vector<18x256xf32> -> vector<18x256xf32>
    %c0_37 = arith.constant 0 : index
    %c0_38 = arith.constant 0 : index
    %c0_39 = arith.constant 0 : index
    %86 = vector.load %arg7[%c0_37, %c0_38, %c0_39] : memref<1x1x256xf32, #tpu.memory_space<vmem>>, vector<1x1x256xf32>
    %87 = vector.shape_cast %86 : vector<1x1x256xf32> to vector<1x256xf32>
    %88 = vector.broadcast %87 : vector<1x256xf32> to vector<18x256xf32>
    %89 = arith.addf %85, %88 : vector<18x256xf32>
    %90 = arith.addf %3, %89 : vector<18x256xf32>
    %c0_40 = arith.constant 0 : index
    %c0_41 = arith.constant 0 : index
    %c0_42 = arith.constant 0 : index
    %91 = vector.load %arg8[%c0_40, %c0_41, %c0_42] : memref<1x1x256xf32, #tpu.memory_space<vmem>>, vector<1x1x256xf32>
    %92 = vector.shape_cast %91 : vector<1x1x256xf32> to vector<1x256xf32>
    %c0_43 = arith.constant 0 : index
    %c0_44 = arith.constant 0 : index
    %c0_45 = arith.constant 0 : index
    %93 = vector.load %arg9[%c0_43, %c0_44, %c0_45] : memref<1x1x256xf32, #tpu.memory_space<vmem>>, vector<1x1x256xf32>
    %94 = vector.shape_cast %93 : vector<1x1x256xf32> to vector<1x256xf32>
    %cst_46 = arith.constant dense<0.000000e+00> : vector<18xf32>
    %95 = vector.multi_reduction <add>, %90, %cst_46 [1] : vector<18x256xf32> to vector<18xf32>
    %96 = vector.shape_cast %95 : vector<18xf32> to vector<18x1xf32>
    %cst_47 = arith.constant 2.560000e+02 : f32
    %97 = vector.broadcast %cst_47 : f32 to vector<18x1xf32>
    %98 = arith.divf %96, %97 : vector<18x1xf32>
    %99 = vector.broadcast %98 : vector<18x1xf32> to vector<18x256xf32>
    %100 = arith.subf %90, %99 : vector<18x256xf32>
    %101 = arith.mulf %100, %100 : vector<18x256xf32>
    %cst_48 = arith.constant dense<0.000000e+00> : vector<18xf32>
    %102 = vector.multi_reduction <add>, %101, %cst_48 [1] : vector<18x256xf32> to vector<18xf32>
    %103 = vector.shape_cast %102 : vector<18xf32> to vector<18x1xf32>
    %cst_49 = arith.constant 2.560000e+02 : f32
    %104 = vector.broadcast %cst_49 : f32 to vector<18x1xf32>
    %105 = arith.divf %103, %104 : vector<18x1xf32>
    %106 = vector.broadcast %98 : vector<18x1xf32> to vector<18x256xf32>
    %107 = arith.subf %90, %106 : vector<18x256xf32>
    %cst_50 = arith.constant 9.99999974E-6 : f32
    %108 = vector.broadcast %cst_50 : f32 to vector<18x1xf32>
    %109 = arith.addf %105, %108 : vector<18x1xf32>
    %110 = math.rsqrt %109 : vector<18x1xf32>
    %111 = vector.broadcast %110 : vector<18x1xf32> to vector<18x256xf32>
    %112 = arith.mulf %107, %111 : vector<18x256xf32>
    %113 = vector.broadcast %92 : vector<1x256xf32> to vector<18x256xf32>
    %114 = arith.mulf %112, %113 : vector<18x256xf32>
    %115 = vector.broadcast %94 : vector<1x256xf32> to vector<18x256xf32>
    %116 = arith.addf %114, %115 : vector<18x256xf32>
    %117 = arith.truncf %116 : vector<18x256xf32> to vector<18x256xbf16>
    %c0_51 = arith.constant 0 : index
    %c0_52 = arith.constant 0 : index
    %c0_53 = arith.constant 0 : index
    %118 = vector.load %arg10[%c0_51, %c0_52, %c0_53] : memref<1x256x512xbf16, #tpu.memory_space<vmem>>, vector<1x256x512xbf16>
    %119 = vector.shape_cast %118 : vector<1x256x512xbf16> to vector<256x512xbf16>
    %cst_54 = arith.constant dense<0.000000e+00> : vector<18x512xf32>
    %120 = tpu.matmul %117, %119, %cst_54 {dimension_numbers = #tpu.dot_dimension_numbers<[1], [0], [0], [1], [0, 0, 1, 1], [], []>} : vector<18x256xbf16>, vector<256x512xbf16>, vector<18x512xf32> -> vector<18x512xf32>
    %c0_55 = arith.constant 0 : index
    %c0_56 = arith.constant 0 : index
    %c0_57 = arith.constant 0 : index
    %121 = vector.load %arg11[%c0_55, %c0_56, %c0_57] : memref<1x1x512xf32, #tpu.memory_space<vmem>>, vector<1x1x512xf32>
    %122 = vector.shape_cast %121 : vector<1x1x512xf32> to vector<1x512xf32>
    %123 = vector.broadcast %122 : vector<1x512xf32> to vector<18x512xf32>
    %124 = arith.addf %120, %123 : vector<18x512xf32>
    %cst_58 = arith.constant 5.000000e-01 : f32
    %125 = vector.broadcast %cst_58 : f32 to vector<18x512xf32>
    %126 = arith.mulf %125, %124 : vector<18x512xf32>
    %cst_59 = arith.constant 0.707106769 : f32
    %127 = vector.broadcast %cst_59 : f32 to vector<18x512xf32>
    %128 = arith.mulf %124, %127 : vector<18x512xf32>
    %cst_60 = arith.constant 0.000000e+00 : f32
    %129 = vector.broadcast %cst_60 : f32 to vector<18x512xf32>
    %130 = arith.cmpf oge, %128, %129 : vector<18x512xf32>
    %cst_61 = arith.constant 1.000000e+00 : f32
    %cst_62 = arith.constant -1.000000e+00 : f32
    %131 = vector.broadcast %cst_61 : f32 to vector<18x512xf32>
    %132 = vector.broadcast %cst_62 : f32 to vector<18x512xf32>
    %133 = arith.select %130, %131, %132 : vector<18x512xi1>, vector<18x512xf32>
    %134 = math.absf %128 : vector<18x512xf32>
    %cst_63 = arith.constant 0.327591091 : f32
    %135 = vector.broadcast %cst_63 : f32 to vector<18x512xf32>
    %136 = arith.mulf %135, %134 : vector<18x512xf32>
    %cst_64 = arith.constant 1.000000e+00 : f32
    %137 = vector.broadcast %cst_64 : f32 to vector<18x512xf32>
    %138 = arith.addf %137, %136 : vector<18x512xf32>
    %cst_65 = arith.constant 1.000000e+00 : f32
    %139 = vector.broadcast %cst_65 : f32 to vector<18x512xf32>
    %140 = arith.divf %139, %138 : vector<18x512xf32>
    %cst_66 = arith.constant 1.06140542 : f32
    %141 = vector.broadcast %cst_66 : f32 to vector<18x512xf32>
    %142 = arith.mulf %141, %140 : vector<18x512xf32>
    %cst_67 = arith.constant -1.45315206 : f32
    %143 = vector.broadcast %cst_67 : f32 to vector<18x512xf32>
    %144 = arith.addf %142, %143 : vector<18x512xf32>
    %145 = arith.mulf %144, %140 : vector<18x512xf32>
    %cst_68 = arith.constant 1.42141378 : f32
    %146 = vector.broadcast %cst_68 : f32 to vector<18x512xf32>
    %147 = arith.addf %145, %146 : vector<18x512xf32>
    %148 = arith.mulf %147, %140 : vector<18x512xf32>
    %cst_69 = arith.constant -0.284496725 : f32
    %149 = vector.broadcast %cst_69 : f32 to vector<18x512xf32>
    %150 = arith.addf %148, %149 : vector<18x512xf32>
    %151 = arith.mulf %150, %140 : vector<18x512xf32>
    %cst_70 = arith.constant 0.254829586 : f32
    %152 = vector.broadcast %cst_70 : f32 to vector<18x512xf32>
    %153 = arith.addf %151, %152 : vector<18x512xf32>
    %154 = arith.mulf %153, %140 : vector<18x512xf32>
    %cst_71 = arith.constant 0.000000e+00 : f32
    %155 = vector.broadcast %cst_71 : f32 to vector<18x512xf32>
    %156 = arith.subf %155, %134 : vector<18x512xf32>
    %157 = arith.mulf %156, %134 : vector<18x512xf32>
    %158 = math.exp %157 : vector<18x512xf32>
    %159 = arith.mulf %154, %158 : vector<18x512xf32>
    %cst_72 = arith.constant 1.000000e+00 : f32
    %160 = vector.broadcast %cst_72 : f32 to vector<18x512xf32>
    %161 = arith.subf %160, %159 : vector<18x512xf32>
    %162 = arith.mulf %133, %161 : vector<18x512xf32>
    %cst_73 = arith.constant 1.000000e+00 : f32
    %163 = vector.broadcast %cst_73 : f32 to vector<18x512xf32>
    %164 = arith.addf %163, %162 : vector<18x512xf32>
    %165 = arith.mulf %126, %164 : vector<18x512xf32>
    %166 = arith.truncf %165 : vector<18x512xf32> to vector<18x512xbf16>
    %c0_74 = arith.constant 0 : index
    %c0_75 = arith.constant 0 : index
    %c0_76 = arith.constant 0 : index
    %167 = vector.load %arg12[%c0_74, %c0_75, %c0_76] : memref<1x512x256xbf16, #tpu.memory_space<vmem>>, vector<1x512x256xbf16>
    %168 = vector.shape_cast %167 : vector<1x512x256xbf16> to vector<512x256xbf16>
    %cst_77 = arith.constant dense<0.000000e+00> : vector<18x256xf32>
    %169 = tpu.matmul %166, %168, %cst_77 {dimension_numbers = #tpu.dot_dimension_numbers<[1], [0], [0], [1], [0, 0, 1, 1], [], []>} : vector<18x512xbf16>, vector<512x256xbf16>, vector<18x256xf32> -> vector<18x256xf32>
    %c0_78 = arith.constant 0 : index
    %c0_79 = arith.constant 0 : index
    %c0_80 = arith.constant 0 : index
    %170 = vector.load %arg13[%c0_78, %c0_79, %c0_80] : memref<1x1x256xf32, #tpu.memory_space<vmem>>, vector<1x1x256xf32>
    %171 = vector.shape_cast %170 : vector<1x1x256xf32> to vector<1x256xf32>
    %172 = vector.broadcast %171 : vector<1x256xf32> to vector<18x256xf32>
    %173 = arith.addf %169, %172 : vector<18x256xf32>
    %174 = arith.addf %90, %173 : vector<18x256xf32>
    %c0_81 = arith.constant 0 : index
    %c0_82 = arith.constant 0 : index
    %175 = vector.load %arg15[%c0_81, %c0_82] : memref<18x256xf32, #tpu.memory_space<vmem>>, vector<18x256xf32>
    tpu.vector_store %arg15[%c0_81, %c0_82], %174 {strides = array<i32>} : memref<18x256xf32, #tpu.memory_space<vmem>>, vector<18x256xf32>,
    %c1_i32 = arith.constant 1 : i32
    %176 = arith.cmpi eq, %arg0, %c1_i32 : i32
    %177 = arith.extui %176 : i1 to i32
    %c0_i32_83 = arith.constant 0 : i32
    %178 = arith.cmpi ne, %177, %c0_i32_83 : i32
    scf.if %178 {
      %c0_84 = arith.constant 0 : index
      %c0_85 = arith.constant 0 : index
      %179 = vector.load %arg15[%c0_84, %c0_85] : memref<18x256xf32, #tpu.memory_space<vmem>>, vector<18x256xf32>
      %c0_86 = arith.constant 0 : index
      %c0_87 = arith.constant 0 : index
      %180 = vector.load %arg14[%c0_86, %c0_87] : memref<18x256xf32, #tpu.memory_space<vmem>>, vector<18x256xf32>
      tpu.vector_store %arg14[%c0_86, %c0_87], %179 {strides = array<i32>} : memref<18x256xf32, #tpu.memory_space<vmem>>, vector<18x256xf32>,
    } else {
    }
    return
  }
  func.func @transform_0(%arg0: i32) -> (i32, i32) {
    %c0_i32 = arith.constant 0 : i32
    %c0_i32_0 = arith.constant 0 : i32
    %c0_i32_1 = arith.constant 0 : i32
    return %c0_i32, %c0_i32_0 : i32, i32
  }
  func.func @transform_1(%arg0: i32) -> (i32, i32) {
    %c0_i32 = arith.constant 0 : i32
    %c0_i32_0 = arith.constant 0 : i32
    %c0_i32_1 = arith.constant 0 : i32
    return %c0_i32, %c0_i32_0 : i32, i32
  }
  func.func @transform_2(%arg0: i32) -> (i32, i32, i32) {
    %c0_i32 = arith.constant 0 : i32
    %c0_i32_0 = arith.constant 0 : i32
    %c0_i32_1 = arith.constant 0 : i32
    return %arg0, %c0_i32, %c0_i32_0 : i32, i32, i32
  }
  func.func @transform_3(%arg0: i32) -> (i32, i32, i32) {
    %c0_i32 = arith.constant 0 : i32
    %c0_i32_0 = arith.constant 0 : i32
    %c0_i32_1 = arith.constant 0 : i32
    return %arg0, %c0_i32, %c0_i32_0 : i32, i32, i32
  }
  func.func @transform_4(%arg0: i32) -> (i32, i32, i32) {
    %c0_i32 = arith.constant 0 : i32
    %c0_i32_0 = arith.constant 0 : i32
    %c0_i32_1 = arith.constant 0 : i32
    return %arg0, %c0_i32, %c0_i32_0 : i32, i32, i32
  }
  func.func @transform_5(%arg0: i32) -> (i32, i32, i32) {
    %c0_i32 = arith.constant 0 : i32
    %c0_i32_0 = arith.constant 0 : i32
    %c0_i32_1 = arith.constant 0 : i32
    return %arg0, %c0_i32, %c0_i32_0 : i32, i32, i32
  }
  func.func @transform_6(%arg0: i32) -> (i32, i32, i32) {
    %c0_i32 = arith.constant 0 : i32
    %c0_i32_0 = arith.constant 0 : i32
    %c0_i32_1 = arith.constant 0 : i32
    return %arg0, %c0_i32, %c0_i32_0 : i32, i32, i32
  }
  func.func @transform_7(%arg0: i32) -> (i32, i32, i32) {
    %c0_i32 = arith.constant 0 : i32
    %c0_i32_0 = arith.constant 0 : i32
    %c0_i32_1 = arith.constant 0 : i32
    return %arg0, %c0_i32, %c0_i32_0 : i32, i32, i32
  }
  func.func @transform_8(%arg0: i32) -> (i32, i32, i32) {
    %c0_i32 = arith.constant 0 : i32
    %c0_i32_0 = arith.constant 0 : i32
    %c0_i32_1 = arith.constant 0 : i32
    return %arg0, %c0_i32, %c0_i32_0 : i32, i32, i32
  }
  func.func @transform_9(%arg0: i32) -> (i32, i32, i32) {
    %c0_i32 = arith.constant 0 : i32
    %c0_i32_0 = arith.constant 0 : i32
    %c0_i32_1 = arith.constant 0 : i32
    return %arg0, %c0_i32, %c0_i32_0 : i32, i32, i32
  }
  func.func @transform_10(%arg0: i32) -> (i32, i32, i32) {
    %c0_i32 = arith.constant 0 : i32
    %c0_i32_0 = arith.constant 0 : i32
    %c0_i32_1 = arith.constant 0 : i32
    return %arg0, %c0_i32, %c0_i32_0 : i32, i32, i32
  }
  func.func @transform_11(%arg0: i32) -> (i32, i32, i32) {
    %c0_i32 = arith.constant 0 : i32
    %c0_i32_0 = arith.constant 0 : i32
    %c0_i32_1 = arith.constant 0 : i32
    return %arg0, %c0_i32, %c0_i32_0 : i32, i32, i32
  }
  func.func @transform_12(%arg0: i32) -> (i32, i32, i32) {
    %c0_i32 = arith.constant 0 : i32
    %c0_i32_0 = arith.constant 0 : i32
    %c0_i32_1 = arith.constant 0 : i32
    return %arg0, %c0_i32, %c0_i32_0 : i32, i32, i32
  }
  func.func @transform_13(%arg0: i32) -> (i32, i32) {
    %c0_i32 = arith.constant 0 : i32
    %c0_i32_0 = arith.constant 0 : i32
    %c0_i32_1 = arith.constant 0 : i32
    return %c0_i32, %c0_i32_0 : i32, i32
  }
}

module attributes {stable_mosaic.version = 11 : i64} {
  func.func @_head_kernel(%arg0: memref<18x256xf32, #tpu.memory_space<vmem>>, %arg1: memref<1x256xf32, #tpu.memory_space<vmem>>, %arg2: memref<1x256xf32, #tpu.memory_space<vmem>>, %arg3: memref<256x512xbf16, #tpu.memory_space<vmem>>, %arg4: memref<1x512xf32, #tpu.memory_space<vmem>>, %arg5: memref<512x10xbf16, #tpu.memory_space<vmem>>, %arg6: memref<1x10xf32, #tpu.memory_space<vmem>>, %arg7: memref<2x10xf32, #tpu.memory_space<vmem>>) attributes {dimension_semantics = [], scalar_prefetch = 0 : i64, scratch_operands = 0 : i64, tpu.core_type = #tpu.core_type<tc>} {
    %c0 = arith.constant 0 : index
    %c0_0 = arith.constant 0 : index
    %0 = vector.load %arg0[%c0, %c0_0] : memref<18x256xf32, #tpu.memory_space<vmem>>, vector<1x256xf32>
    %c9 = arith.constant 9 : index
    %c0_1 = arith.constant 0 : index
    %1 = vector.load %arg0[%c9, %c0_1] : memref<18x256xf32, #tpu.memory_space<vmem>>, vector<1x256xf32>
    %2 = tpu.concatenate %0, %1 in 0 : vector<1x256xf32>, vector<1x256xf32> -> vector<2x256xf32>
    %c0_2 = arith.constant 0 : index
    %c0_3 = arith.constant 0 : index
    %3 = vector.load %arg1[%c0_2, %c0_3] : memref<1x256xf32, #tpu.memory_space<vmem>>, vector<1x256xf32>
    %c0_4 = arith.constant 0 : index
    %c0_5 = arith.constant 0 : index
    %4 = vector.load %arg2[%c0_4, %c0_5] : memref<1x256xf32, #tpu.memory_space<vmem>>, vector<1x256xf32>
    %cst = arith.constant dense<0.000000e+00> : vector<2xf32>
    %5 = vector.multi_reduction <add>, %2, %cst [1] : vector<2x256xf32> to vector<2xf32>
    %6 = vector.shape_cast %5 : vector<2xf32> to vector<2x1xf32>
    %cst_6 = arith.constant 2.560000e+02 : f32
    %7 = vector.broadcast %cst_6 : f32 to vector<2x1xf32>
    %8 = arith.divf %6, %7 : vector<2x1xf32>
    %9 = vector.broadcast %8 : vector<2x1xf32> to vector<2x256xf32>
    %10 = arith.subf %2, %9 : vector<2x256xf32>
    %11 = arith.mulf %10, %10 : vector<2x256xf32>
    %cst_7 = arith.constant dense<0.000000e+00> : vector<2xf32>
    %12 = vector.multi_reduction <add>, %11, %cst_7 [1] : vector<2x256xf32> to vector<2xf32>
    %13 = vector.shape_cast %12 : vector<2xf32> to vector<2x1xf32>
    %cst_8 = arith.constant 2.560000e+02 : f32
    %14 = vector.broadcast %cst_8 : f32 to vector<2x1xf32>
    %15 = arith.divf %13, %14 : vector<2x1xf32>
    %16 = vector.broadcast %8 : vector<2x1xf32> to vector<2x256xf32>
    %17 = arith.subf %2, %16 : vector<2x256xf32>
    %cst_9 = arith.constant 9.99999974E-6 : f32
    %18 = vector.broadcast %cst_9 : f32 to vector<2x1xf32>
    %19 = arith.addf %15, %18 : vector<2x1xf32>
    %20 = math.rsqrt %19 : vector<2x1xf32>
    %21 = vector.broadcast %20 : vector<2x1xf32> to vector<2x256xf32>
    %22 = arith.mulf %17, %21 : vector<2x256xf32>
    %23 = vector.broadcast %3 : vector<1x256xf32> to vector<2x256xf32>
    %24 = arith.mulf %22, %23 : vector<2x256xf32>
    %25 = vector.broadcast %4 : vector<1x256xf32> to vector<2x256xf32>
    %26 = arith.addf %24, %25 : vector<2x256xf32>
    %27 = arith.truncf %26 : vector<2x256xf32> to vector<2x256xbf16>
    %c0_10 = arith.constant 0 : index
    %c0_11 = arith.constant 0 : index
    %28 = vector.load %arg3[%c0_10, %c0_11] : memref<256x512xbf16, #tpu.memory_space<vmem>>, vector<256x512xbf16>
    %cst_12 = arith.constant dense<0.000000e+00> : vector<2x512xf32>
    %29 = tpu.matmul %27, %28, %cst_12 {dimension_numbers = #tpu.dot_dimension_numbers<[1], [0], [0], [1], [0, 0, 1, 1], [], []>} : vector<2x256xbf16>, vector<256x512xbf16>, vector<2x512xf32> -> vector<2x512xf32>
    %c0_13 = arith.constant 0 : index
    %c0_14 = arith.constant 0 : index
    %30 = vector.load %arg4[%c0_13, %c0_14] : memref<1x512xf32, #tpu.memory_space<vmem>>, vector<1x512xf32>
    %31 = vector.broadcast %30 : vector<1x512xf32> to vector<2x512xf32>
    %32 = arith.addf %29, %31 : vector<2x512xf32>
    %cst_15 = arith.constant 5.000000e-01 : f32
    %33 = vector.broadcast %cst_15 : f32 to vector<2x512xf32>
    %34 = arith.mulf %33, %32 : vector<2x512xf32>
    %cst_16 = arith.constant 0.707106769 : f32
    %35 = vector.broadcast %cst_16 : f32 to vector<2x512xf32>
    %36 = arith.mulf %32, %35 : vector<2x512xf32>
    %cst_17 = arith.constant 0.000000e+00 : f32
    %37 = vector.broadcast %cst_17 : f32 to vector<2x512xf32>
    %38 = arith.cmpf oge, %36, %37 : vector<2x512xf32>
    %cst_18 = arith.constant 1.000000e+00 : f32
    %cst_19 = arith.constant -1.000000e+00 : f32
    %39 = vector.broadcast %cst_18 : f32 to vector<2x512xf32>
    %40 = vector.broadcast %cst_19 : f32 to vector<2x512xf32>
    %41 = arith.select %38, %39, %40 : vector<2x512xi1>, vector<2x512xf32>
    %42 = math.absf %36 : vector<2x512xf32>
    %cst_20 = arith.constant 0.327591091 : f32
    %43 = vector.broadcast %cst_20 : f32 to vector<2x512xf32>
    %44 = arith.mulf %43, %42 : vector<2x512xf32>
    %cst_21 = arith.constant 1.000000e+00 : f32
    %45 = vector.broadcast %cst_21 : f32 to vector<2x512xf32>
    %46 = arith.addf %45, %44 : vector<2x512xf32>
    %cst_22 = arith.constant 1.000000e+00 : f32
    %47 = vector.broadcast %cst_22 : f32 to vector<2x512xf32>
    %48 = arith.divf %47, %46 : vector<2x512xf32>
    %cst_23 = arith.constant 1.06140542 : f32
    %49 = vector.broadcast %cst_23 : f32 to vector<2x512xf32>
    %50 = arith.mulf %49, %48 : vector<2x512xf32>
    %cst_24 = arith.constant -1.45315206 : f32
    %51 = vector.broadcast %cst_24 : f32 to vector<2x512xf32>
    %52 = arith.addf %50, %51 : vector<2x512xf32>
    %53 = arith.mulf %52, %48 : vector<2x512xf32>
    %cst_25 = arith.constant 1.42141378 : f32
    %54 = vector.broadcast %cst_25 : f32 to vector<2x512xf32>
    %55 = arith.addf %53, %54 : vector<2x512xf32>
    %56 = arith.mulf %55, %48 : vector<2x512xf32>
    %cst_26 = arith.constant -0.284496725 : f32
    %57 = vector.broadcast %cst_26 : f32 to vector<2x512xf32>
    %58 = arith.addf %56, %57 : vector<2x512xf32>
    %59 = arith.mulf %58, %48 : vector<2x512xf32>
    %cst_27 = arith.constant 0.254829586 : f32
    %60 = vector.broadcast %cst_27 : f32 to vector<2x512xf32>
    %61 = arith.addf %59, %60 : vector<2x512xf32>
    %62 = arith.mulf %61, %48 : vector<2x512xf32>
    %cst_28 = arith.constant 0.000000e+00 : f32
    %63 = vector.broadcast %cst_28 : f32 to vector<2x512xf32>
    %64 = arith.subf %63, %42 : vector<2x512xf32>
    %65 = arith.mulf %64, %42 : vector<2x512xf32>
    %66 = math.exp %65 : vector<2x512xf32>
    %67 = arith.mulf %62, %66 : vector<2x512xf32>
    %cst_29 = arith.constant 1.000000e+00 : f32
    %68 = vector.broadcast %cst_29 : f32 to vector<2x512xf32>
    %69 = arith.subf %68, %67 : vector<2x512xf32>
    %70 = arith.mulf %41, %69 : vector<2x512xf32>
    %cst_30 = arith.constant 1.000000e+00 : f32
    %71 = vector.broadcast %cst_30 : f32 to vector<2x512xf32>
    %72 = arith.addf %71, %70 : vector<2x512xf32>
    %73 = arith.mulf %34, %72 : vector<2x512xf32>
    %74 = arith.truncf %73 : vector<2x512xf32> to vector<2x512xbf16>
    %c0_31 = arith.constant 0 : index
    %c0_32 = arith.constant 0 : index
    %75 = vector.load %arg5[%c0_31, %c0_32] : memref<512x10xbf16, #tpu.memory_space<vmem>>, vector<512x10xbf16>
    %cst_33 = arith.constant dense<0.000000e+00> : vector<2x10xf32>
    %76 = tpu.matmul %74, %75, %cst_33 {dimension_numbers = #tpu.dot_dimension_numbers<[1], [0], [0], [1], [0, 0, 1, 1], [], []>} : vector<2x512xbf16>, vector<512x10xbf16>, vector<2x10xf32> -> vector<2x10xf32>
    %c0_34 = arith.constant 0 : index
    %c0_35 = arith.constant 0 : index
    %77 = vector.load %arg6[%c0_34, %c0_35] : memref<1x10xf32, #tpu.memory_space<vmem>>, vector<1x10xf32>
    %78 = vector.broadcast %77 : vector<1x10xf32> to vector<2x10xf32>
    %79 = arith.addf %76, %78 : vector<2x10xf32>
    %c0_36 = arith.constant 0 : index
    %c0_37 = arith.constant 0 : index
    %80 = vector.load %arg7[%c0_36, %c0_37] : memref<2x10xf32, #tpu.memory_space<vmem>>, vector<2x10xf32>
    tpu.vector_store %arg7[%c0_36, %c0_37], %79 {strides = array<i32>} : memref<2x10xf32, #tpu.memory_space<vmem>>, vector<2x10xf32>,
    return
  }
}

</mosaic_0001>

<llo_original>
// kernel: vit3d_forward.3
$region0: #{vit3d_forward.3}
  #allocation0 [shape = 'u32[]', space=smem, size = 0x4, offset = 0x4, fixed_abs, tag = 'smem constant byte address 0x4 - core index']
  #allocation1 [shape = 'u32[144,128]{1,0:T(1,128)}', space=vmem, size = 0x12000, scoped, tag = 'internal scratch']
  %s0 = inlined_call_operand.vmem [shape: bf16[16,1536], index: 0, kind: input, shape index: {}]
  %s1 = inlined_call_operand.vmem [shape: bf16[1536,256], index: 1, kind: input, shape index: {}]
  %s2 = inlined_call_operand.vmem [shape: f32[1,256], index: 2, kind: input, shape index: {}]
  %s3 = inlined_call_operand.vmem [shape: f32[8,256], index: 3, kind: input, shape index: {}]
  %s4 = inlined_call_operand.vmem [shape: f32[1,256], index: 4, kind: input, shape index: {}]
  %s5 = inlined_call_operand.vmem [shape: f32[18,256], index: 5, kind: output, shape index: {}]
  %s6 = sld [smem:[#allocation0]]
  $region30: #{vit3d_forward.3} parent=0
    _
  %s8 = ssub.s32 1, %s6
  %s9 = scalar_select 0, %s8, %s6
  // Predicated region
  $region2: #{vit3d_forward.3} parent=0 // pred_check
    _
  $region3: #{vit3d_forward.3} parent=0 // pred_check_branch
    %11 = sbr.rel (0) target = $region5
  $region4: #{vit3d_forward.3} parent=0 // pred_region
    _
  $region5: #{vit3d_forward.3} parent=0 // pred_fallthru
    _
  // Predicated region
  $region6: #{vit3d_forward.3} parent=0 // pred_check
    _
  $region7: #{vit3d_forward.3} parent=0 // pred_check_branch
    %13 = sbr.rel (0) target = $region9
  $region8: #{vit3d_forward.3} parent=0 // pred_region
    _
  $region9: #{vit3d_forward.3} parent=0 // pred_fallthru
    _
  // Predicated region
  $region10: #{vit3d_forward.3} parent=0 // pred_check
    _
  $region11: #{vit3d_forward.3} parent=0 // pred_check_branch
    %15 = sbr.rel (0) target = $region13
  $region12: #{vit3d_forward.3} parent=0 // pred_region
    _
  $region13: #{vit3d_forward.3} parent=0 // pred_fallthru
    _
  // Predicated region
  $region14: #{vit3d_forward.3} parent=0 // pred_check
    _
  $region15: #{vit3d_forward.3} parent=0 // pred_check_branch
    %17 = sbr.rel (0) target = $region17
  $region16: #{vit3d_forward.3} parent=0 // pred_region
    _
  $region17: #{vit3d_forward.3} parent=0 // pred_fallthru
    _
  // Predicated region
  $region18: #{vit3d_forward.3} parent=0 // pred_check
    _
  $region19: #{vit3d_forward.3} parent=0 // pred_check_branch
    %19 = sbr.rel (0) target = $region21
  $region20: #{vit3d_forward.3} parent=0 // pred_region
    _
  $region21: #{vit3d_forward.3} parent=0 // pred_fallthru
    _
  %v20 = vld [vmem:[%s0] sm:$0xff]
  %v21 = vld [vmem:[%s0 + $0x8] sm:$0xff]
  %v22 = vld [vmem:[%s0 + $0x10] sm:$0xff]
  %v23 = vld [vmem:[%s0 + $0x18] sm:$0xff]
  %v24 = vld [vmem:[%s0 + $0x20] sm:$0xff]
  %v25 = vld [vmem:[%s0 + $0x28] sm:$0xff]
  %v26 = vld [vmem:[%s0 + $0x30] sm:$0xff]
  %v27 = vld [vmem:[%s0 + $0x38] sm:$0xff]
  %v28 = vld [vmem:[%s0 + $0x40] sm:$0xff]
  %v29 = vld [vmem:[%s0 + $0x48] sm:$0xff]
  %v30 = vld [vmem:[%s0 + $0x50] sm:$0xff]
  %v31 = vld [vmem:[%s0 + $0x58] sm:$0xff]
  %v32 = vld [vmem:[%s1] sm:$0xff]
  %v33 = vld [vmem:[%s1 + $0x8] sm:$0xff]
  %v34 = vld [vmem:[%s1 + $0x10] sm:$0xff]
  %v35 = vld [vmem:[%s1 + $0x18] sm:$0xff]
  %v36 = vld [vmem:[%s1 + $0x20] sm:$0xff]
  %v37 = vld [vmem:[%s1 + $0x28] sm:$0xff]
  %v38 = vld [vmem:[%s1 + $0x30] sm:$0xff]
  %v39 = vld [vmem:[%s1 + $0x38] sm:$0xff]
  %v40 = vld [vmem:[%s1 + $0x40] sm:$0xff]
  %v41 = vld [vmem:[%s1 + $0x48] sm:$0xff]
  %v42 = vld [vmem:[%s1 + $0x50] sm:$0xff]
  %v43 = vld [vmem:[%s1 + $0x58] sm:$0xff]
  %v44 = vld [vmem:[%s1 + $0x60] sm:$0xff]
  %v45 = vld [vmem:[%s1 + $0x68] sm:$0xff]
  %v46 = vld [vmem:[%s1 + $0x70] sm:$0xff]
  %v47 = vld [vmem:[%s1 + $0x78] sm:$0xff]
  %v48 = vld [vmem:[%s1 + $0x80] sm:$0xff]
  %v49 = vld [vmem:[%s1 + $0x88] sm:$0xff]
  %v50 = vld [vmem:[%s1 + $0x90] sm:$0xff]
  %v51 = vld [vmem:[%s1 + $0x98] sm:$0xff]
  %v52 = vld [vmem:[%s1 + $0xa0] sm:$0xff]
  %v53 = vld [vmem:[%s1 + $0xa8] sm:$0xff]
  %v54 = vld [vmem:[%s1 + $0xb0] sm:$0xff]
  %v55 = vld [vmem:[%s1 + $0xb8] sm:$0xff]
  %v56 = vld [vmem:[%s1 + $0xc0] sm:$0xff]
  %v57 = vld [vmem:[%s1 + $0xc8] sm:$0xff]
  %v58 = vld [vmem:[%s1 + $0xd0] sm:$0xff]
  %v59 = vld [vmem:[%s1 + $0xd8] sm:$0xff]
  %v60 = vld [vmem:[%s1 + $0xe0] sm:$0xff]
  %v61 = vld [vmem:[%s1 + $0xe8] sm:$0xff]
  %v62 = vld [vmem:[%s1 + $0xf0] sm:$0xff]
  %v63 = vld [vmem:[%s1 + $0xf8] sm:$0xff]
  %v64 = vld [vmem:[%s1 + $0x100] sm:$0xff]
  %v65 = vld [vmem:[%s1 + $0x108] sm:$0xff]
  %v66 = vld [vmem:[%s1 + $0x110] sm:$0xff]
  %v67 = vld [vmem:[%s1 + $0x118] sm:$0xff]
  %v68 = vld [vmem:[%s1 + $0x120] sm:$0xff]
  %v69 = vld [vmem:[%s1 + $0x128] sm:$0xff]
  %v70 = vld [vmem:[%s1 + $0x130] sm:$0xff]
  %v71 = vld [vmem:[%s1 + $0x138] sm:$0xff]
  %v72 = vld [vmem:[%s1 + $0x140] sm:$0xff]
  %v73 = vld [vmem:[%s1 + $0x148] sm:$0xff]
  %v74 = vld [vmem:[%s1 + $0x150] sm:$0xff]
  %v75 = vld [vmem:[%s1 + $0x158] sm:$0xff]
  %v76 = vld [vmem:[%s1 + $0x160] sm:$0xff]
  %v77 = vld [vmem:[%s1 + $0x168] sm:$0xff]
  %v78 = vld [vmem:[%s1 + $0x170] sm:$0xff]
  %v79 = vld [vmem:[%s1 + $0x178] sm:$0xff]
  %v80 = vld [vmem:[%s1 + $0x180] sm:$0xff]
  %v81 = vld [vmem:[%s1 + $0x188] sm:$0xff]
  %v82 = vld [vmem:[%s1 + $0x190] sm:$0xff]
  %v83 = vld [vmem:[%s1 + $0x198] sm:$0xff]
  %v84 = vld [vmem:[%s1 + $0x1a0] sm:$0xff]
  %v85 = vld [vmem:[%s1 + $0x1a8] sm:$0xff]
  %v86 = vld [vmem:[%s1 + $0x1b0] sm:$0xff]
  %v87 = vld [vmem:[%s1 + $0x1b8] sm:$0xff]
  %v88 = vld [vmem:[%s1 + $0x1c0] sm:$0xff]
  %v89 = vld [vmem:[%s1 + $0x1c8] sm:$0xff]
  %v90 = vld [vmem:[%s1 + $0x1d0] sm:$0xff]
  %v91 = vld [vmem:[%s1 + $0x1d8] sm:$0xff]
  %v92 = vld [vmem:[%s1 + $0x1e0] sm:$0xff]
  %v93 = vld [vmem:[%s1 + $0x1e8] sm:$0xff]
  %v94 = vld [vmem:[%s1 + $0x1f0] sm:$0xff]
  %v95 = vld [vmem:[%s1 + $0x1f8] sm:$0xff]
  %v96 = vld [vmem:[%s1 + $0x200] sm:$0xff]
  %v97 = vld [vmem:[%s1 + $0x208] sm:$0xff]
  %v98 = vld [vmem:[%s1 + $0x210] sm:$0xff]
  %v99 = vld [vmem:[%s1 + $0x218] sm:$0xff]
  %v100 = vld [vmem:[%s1 + $0x220] sm:$0xff]
  %v101 = vld [vmem:[%s1 + $0x228] sm:$0xff]
  %v102 = vld [vmem:[%s1 + $0x230] sm:$0xff]
  %v103 = vld [vmem:[%s1 + $0x238] sm:$0xff]
  %v104 = vld [vmem:[%s1 + $0x240] sm:$0xff]
  %v105 = vld [vmem:[%s1 + $0x248] sm:$0xff]
  %v106 = vld [vmem:[%s1 + $0x250] sm:$0xff]
  %v107 = vld [vmem:[%s1 + $0x258] sm:$0xff]
  %v108 = vld [vmem:[%s1 + $0x260] sm:$0xff]
  %v109 = vld [vmem:[%s1 + $0x268] sm:$0xff]
  %v110 = vld [vmem:[%s1 + $0x270] sm:$0xff]
  %v111 = vld [vmem:[%s1 + $0x278] sm:$0xff]
  %v112 = vld [vmem:[%s1 + $0x280] sm:$0xff]
  %v113 = vld [vmem:[%s1 + $0x288] sm:$0xff]
  %v114 = vld [vmem:[%s1 + $0x290] sm:$0xff]
  %v115 = vld [vmem:[%s1 + $0x298] sm:$0xff]
  %v116 = vld [vmem:[%s1 + $0x2a0] sm:$0xff]
  %v117 = vld [vmem:[%s1 + $0x2a8] sm:$0xff]
  %v118 = vld [vmem:[%s1 + $0x2b0] sm:$0xff]
  %v119 = vld [vmem:[%s1 + $0x2b8] sm:$0xff]
  %v120 = vld [vmem:[%s1 + $0x2c0] sm:$0xff]
  %v121 = vld [vmem:[%s1 + $0x2c8] sm:$0xff]
  %v122 = vld [vmem:[%s1 + $0x2d0] sm:$0xff]
  %v123 = vld [vmem:[%s1 + $0x2d8] sm:$0xff]
  %v124 = vld [vmem:[%s1 + $0x2e0] sm:$0xff]
  %v125 = vld [vmem:[%s1 + $0x2e8] sm:$0xff]
  %v126 = vld [vmem:[%s1 + $0x2f0] sm:$0xff]
  %v127 = vld [vmem:[%s1 + $0x2f8] sm:$0xff]
  %v128 = vld [vmem:[%s1 + $0x300] sm:$0xff]
  %v129 = vld [vmem:[%s1 + $0x308] sm:$0xff]
  %v130 = vld [vmem:[%s1 + $0x310] sm:$0xff]
  %v131 = vld [vmem:[%s1 + $0x318] sm:$0xff]
  %v132 = vld [vmem:[%s1 + $0x320] sm:$0xff]
  %v133 = vld [vmem:[%s1 + $0x328] sm:$0xff]
  %v134 = vld [vmem:[%s1 + $0x330] sm:$0xff]
  %v135 = vld [vmem:[%s1 + $0x338] sm:$0xff]
  %v136 = vld [vmem:[%s1 + $0x340] sm:$0xff]
  %v137 = vld [vmem:[%s1 + $0x348] sm:$0xff]
  %v138 = vld [vmem:[%s1 + $0x350] sm:$0xff]
  %v139 = vld [vmem:[%s1 + $0x358] sm:$0xff]
  %v140 = vld [vmem:[%s1 + $0x360] sm:$0xff]
  %v141 = vld [vmem:[%s1 + $0x368] sm:$0xff]
  %v142 = vld [vmem:[%s1 + $0x370] sm:$0xff]
  %v143 = vld [vmem:[%s1 + $0x378] sm:$0xff]
  %v144 = vld [vmem:[%s1 + $0x380] sm:$0xff]
  %v145 = vld [vmem:[%s1 + $0x388] sm:$0xff]
  %v146 = vld [vmem:[%s1 + $0x390] sm:$0xff]
  %v147 = vld [vmem:[%s1 + $0x398] sm:$0xff]
  %v148 = vld [vmem:[%s1 + $0x3a0] sm:$0xff]
  %v149 = vld [vmem:[%s1 + $0x3a8] sm:$0xff]
  %v150 = vld [vmem:[%s1 + $0x3b0] sm:$0xff]
  %v151 = vld [vmem:[%s1 + $0x3b8] sm:$0xff]
  %v152 = vld [vmem:[%s1 + $0x3c0] sm:$0xff]
  %v153 = vld [vmem:[%s1 + $0x3c8] sm:$0xff]
  %v154 = vld [vmem:[%s1 + $0x3d0] sm:$0xff]
  %v155 = vld [vmem:[%s1 + $0x3d8] sm:$0xff]
  %v156 = vld [vmem:[%s1 + $0x3e0] sm:$0xff]
  %v157 = vld [vmem:[%s1 + $0x3e8] sm:$0xff]
  %v158 = vld [vmem:[%s1 + $0x3f0] sm:$0xff]
  %v159 = vld [vmem:[%s1 + $0x3f8] sm:$0xff]
  %v160 = vld [vmem:[%s1 + $0x400] sm:$0xff]
  %v161 = vld [vmem:[%s1 + $0x408] sm:$0xff]
  %v162 = vld [vmem:[%s1 + $0x410] sm:$0xff]
  %v163 = vld [vmem:[%s1 + $0x418] sm:$0xff]
  %v164 = vld [vmem:[%s1 + $0x420] sm:$0xff]
  %v165 = vld [vmem:[%s1 + $0x428] sm:$0xff]
  %v166 = vld [vmem:[%s1 + $0x430] sm:$0xff]
  %v167 = vld [vmem:[%s1 + $0x438] sm:$0xff]
  %v168 = vld [vmem:[%s1 + $0x440] sm:$0xff]
  %v169 = vld [vmem:[%s1 + $0x448] sm:$0xff]
  %v170 = vld [vmem:[%s1 + $0x450] sm:$0xff]
  %v171 = vld [vmem:[%s1 + $0x458] sm:$0xff]
  %v172 = vld [vmem:[%s1 + $0x460] sm:$0xff]
  %v173 = vld [vmem:[%s1 + $0x468] sm:$0xff]
  %v174 = vld [vmem:[%s1 + $0x470] sm:$0xff]
  %v175 = vld [vmem:[%s1 + $0x478] sm:$0xff]
  %v176 = vld [vmem:[%s1 + $0x480] sm:$0xff]
  %v177 = vld [vmem:[%s1 + $0x488] sm:$0xff]
  %v178 = vld [vmem:[%s1 + $0x490] sm:$0xff]
  %v179 = vld [vmem:[%s1 + $0x498] sm:$0xff]
  %v180 = vld [vmem:[%s1 + $0x4a0] sm:$0xff]
  %v181 = vld [vmem:[%s1 + $0x4a8] sm:$0xff]
  %v182 = vld [vmem:[%s1 + $0x4b0] sm:$0xff]
  %v183 = vld [vmem:[%s1 + $0x4b8] sm:$0xff]
  %v184 = vld [vmem:[%s1 + $0x4c0] sm:$0xff]
  %v185 = vld [vmem:[%s1 + $0x4c8] sm:$0xff]
  %v186 = vld [vmem:[%s1 + $0x4d0] sm:$0xff]
  %v187 = vld [vmem:[%s1 + $0x4d8] sm:$0xff]
  %v188 = vld [vmem:[%s1 + $0x4e0] sm:$0xff]
  %v189 = vld [vmem:[%s1 + $0x4e8] sm:$0xff]
  %v190 = vld [vmem:[%s1 + $0x4f0] sm:$0xff]
  %v191 = vld [vmem:[%s1 + $0x4f8] sm:$0xff]
  %v192 = vld [vmem:[%s1 + $0x500] sm:$0xff]
  %v193 = vld [vmem:[%s1 + $0x508] sm:$0xff]
  %v194 = vld [vmem:[%s1 + $0x510] sm:$0xff]
  %v195 = vld [vmem:[%s1 + $0x518] sm:$0xff]
  %v196 = vld [vmem:[%s1 + $0x520] sm:$0xff]
  %v197 = vld [vmem:[%s1 + $0x528] sm:$0xff]
  %v198 = vld [vmem:[%s1 + $0x530] sm:$0xff]
  %v199 = vld [vmem:[%s1 + $0x538] sm:$0xff]
  %v200 = vld [vmem:[%s1 + $0x540] sm:$0xff]
  %v201 = vld [vmem:[%s1 + $0x548] sm:$0xff]
  %v202 = vld [vmem:[%s1 + $0x550] sm:$0xff]
  %v203 = vld [vmem:[%s1 + $0x558] sm:$0xff]
  %v204 = vld [vmem:[%s1 + $0x560] sm:$0xff]
  %v205 = vld [vmem:[%s1 + $0x568] sm:$0xff]
  %v206 = vld [vmem:[%s1 + $0x570] sm:$0xff]
  %v207 = vld [vmem:[%s1 + $0x578] sm:$0xff]
  %v208 = vld [vmem:[%s1 + $0x580] sm:$0xff]
  %v209 = vld [vmem:[%s1 + $0x588] sm:$0xff]
  %v210 = vld [vmem:[%s1 + $0x590] sm:$0xff]
  %v211 = vld [vmem:[%s1 + $0x598] sm:$0xff]
  %v212 = vld [vmem:[%s1 + $0x5a0] sm:$0xff]
  %v213 = vld [vmem:[%s1 + $0x5a8] sm:$0xff]
  %v214 = vld [vmem:[%s1 + $0x5b0] sm:$0xff]
  %v215 = vld [vmem:[%s1 + $0x5b8] sm:$0xff]
  %v216 = vld [vmem:[%s1 + $0x5c0] sm:$0xff]
  %v217 = vld [vmem:[%s1 + $0x5c8] sm:$0xff]
  %v218 = vld [vmem:[%s1 + $0x5d0] sm:$0xff]
  %v219 = vld [vmem:[%s1 + $0x5d8] sm:$0xff]
  %v220 = vld [vmem:[%s1 + $0x5e0] sm:$0xff]
  %v221 = vld [vmem:[%s1 + $0x5e8] sm:$0xff]
  %v222 = vld [vmem:[%s1 + $0x5f0] sm:$0xff]
  %v223 = vld [vmem:[%s1 + $0x5f8] sm:$0xff]
  %v224 = vld [vmem:[%s2] sm:$0x3]
  %v226 = vlaneseq
  %v227 = vshrl.u32 %v226, 7
  %v228 = vsub.s32 0, %v227
  %v229 = vrot.slane %v224, %v228
  %v230 = vlaneseq
  %v231 = vshrl.u32 %v230, 7
  %v232 = vsub.s32 1, %v231
  %v233 = vrot.slane %v224, %v232
  %v248 = vunpack.c.l.b16 %v20
  %v249 = vunpack.c.h.b16 %v20
  %v250 = vunpack.c.l.b16 %v21
  %v251 = vunpack.c.h.b16 %v21
  %v252 = vunpack.c.l.b16 %v22
  %v253 = vunpack.c.h.b16 %v22
  %v254 = vunpack.c.l.b16 %v23
  %v255 = vunpack.c.h.b16 %v23
  %v256 = vunpack.c.l.b16 %v24
  %v257 = vunpack.c.h.b16 %v24
  %v258 = vunpack.c.l.b16 %v25
  %v259 = vunpack.c.h.b16 %v25
  %v260 = vunpack.c.l.b16 %v26
  %v261 = vunpack.c.h.b16 %v26
  %v262 = vunpack.c.l.b16 %v27
  %v263 = vunpack.c.h.b16 %v27
  %v264 = vunpack.c.l.b16 %v28
  %v265 = vunpack.c.h.b16 %v28
  %v266 = vunpack.c.l.b16 %v29
  %v267 = vunpack.c.h.b16 %v29
  %v268 = vunpack.c.l.b16 %v30
  %v269 = vunpack.c.h.b16 %v30
  %v270 = vunpack.c.l.b16 %v31
  %v271 = vunpack.c.h.b16 %v31
  %v272 = vpack.c.b16 %v260, %v248
  %v273 = vpack.c.b16 %v261, %v249
  %v274 = vpack.c.b16 %v262, %v250
  %v275 = vpack.c.b16 %v263, %v251
  %v276 = vpack.c.b16 %v264, %v252
  %v277 = vpack.c.b16 %v265, %v253
  %v278 = vpack.c.b16 %v266, %v254
  %v279 = vpack.c.b16 %v267, %v255
  %v280 = vpack.c.b16 %v268, %v256
  %v281 = vpack.c.b16 %v269, %v257
  %v282 = vpack.c.b16 %v270, %v258
  %v283 = vpack.c.b16 %v271, %v259
  %v488 = vunpack.c.l.b16 %v32
  %v489 = vunpack.c.h.b16 %v32
  %v490 = vunpack.c.l.b16 %v33
  %v491 = vunpack.c.h.b16 %v33
  %v492 = vunpack.c.l.b16 %v34
  %v493 = vunpack.c.h.b16 %v34
  %v494 = vunpack.c.l.b16 %v35
  %v495 = vunpack.c.h.b16 %v35
  %v496 = vunpack.c.l.b16 %v36
  %v497 = vunpack.c.h.b16 %v36
  %v498 = vunpack.c.l.b16 %v37
  %v499 = vunpack.c.h.b16 %v37
  %v500 = vunpack.c.l.b16 %v38
  %v501 = vunpack.c.h.b16 %v38
  %v502 = vunpack.c.l.b16 %v39
  %v503 = vunpack.c.h.b16 %v39
  %v504 = vunpack.c.l.b16 %v40
  %v505 = vunpack.c.h.b16 %v40
  %v506 = vunpack.c.l.b16 %v41
  %v507 = vunpack.c.h.b16 %v41
  %v508 = vunpack.c.l.b16 %v42
  %v509 = vunpack.c.h.b16 %v42
  %v510 = vunpack.c.l.b16 %v43
  %v511 = vunpack.c.h.b16 %v43
  %v512 = vunpack.c.l.b16 %v44
  %v513 = vunpack.c.h.b16 %v44
  %v514 = vunpack.c.l.b16 %v45
  %v515 = vunpack.c.h.b16 %v45
  %v516 = vunpack.c.l.b16 %v46
  %v517 = vunpack.c.h.b16 %v46
  %v518 = vunpack.c.l.b16 %v47
  %v519 = vunpack.c.h.b16 %v47
  %v520 = vunpack.c.l.b16 %v48
  %v521 = vunpack.c.h.b16 %v48
  %v522 = vunpack.c.l.b16 %v49
  %v523 = vunpack.c.h.b16 %v49
  %v524 = vunpack.c.l.b16 %v50
  %v525 = vunpack.c.h.b16 %v50
  %v526 = vunpack.c.l.b16 %v51
  %v527 = vunpack.c.h.b16 %v51
  %v528 = vunpack.c.l.b16 %v52
  %v529 = vunpack.c.h.b16 %v52
  %v530 = vunpack.c.l.b16 %v53
  %v531 = vunpack.c.h.b16 %v53
  %v532 = vunpack.c.l.b16 %v54
  %v533 = vunpack.c.h.b16 %v54
  %v534 = vunpack.c.l.b16 %v55
  %v535 = vunpack.c.h.b16 %v55
  %v536 = vunpack.c.l.b16 %v56
  %v537 = vunpack.c.h.b16 %v56
  %v538 = vunpack.c.l.b16 %v57
  %v539 = vunpack.c.h.b16 %v57
  %v540 = vunpack.c.l.b16 %v58
  %v541 = vunpack.c.h.b16 %v58
  %v542 = vunpack.c.l.b16 %v59
  %v543 = vunpack.c.h.b16 %v59
  %v544 = vunpack.c.l.b16 %v60
  %v545 = vunpack.c.h.b16 %v60
  %v546 = vunpack.c.l.b16 %v61
  %v547 = vunpack.c.h.b16 %v61
  %v548 = vunpack.c.l.b16 %v62
  %v549 = vunpack.c.h.b16 %v62
  %v550 = vunpack.c.l.b16 %v63
  %v551 = vunpack.c.h.b16 %v63
  %v552 = vunpack.c.l.b16 %v64
  %v553 = vunpack.c.h.b16 %v64
  %v554 = vunpack.c.l.b16 %v65
  %v555 = vunpack.c.h.b16 %v65
  %v556 = vunpack.c.l.b16 %v66
  %v557 = vunpack.c.h.b16 %v66
  %v558 = vunpack.c.l.b16 %v67
  %v559 = vunpack.c.h.b16 %v67
  %v560 = vunpack.c.l.b16 %v68
  %v561 = vunpack.c.h.b16 %v68
  %v562 = vunpack.c.l.b16 %v69
  %v563 = vunpack.c.h.b16 %v69
  %v564 = vunpack.c.l.b16 %v70
  %v565 = vunpack.c.h.b16 %v70
  %v566 = vunpack.c.l.b16 %v71
  %v567 = vunpack.c.h.b16 %v71
  %v568 = vunpack.c.l.b16 %v72
  %v569 = vunpack.c.h.b16 %v72
  %v570 = vunpack.c.l.b16 %v73
  %v571 = vunpack.c.h.b16 %v73
  %v572 = vunpack.c.l.b16 %v74
  %v573 = vunpack.c.h.b16 %v74
  %v574 = vunpack.c.l.b16 %v75
  %v575 = vunpack.c.h.b16 %v75
  %v576 = vunpack.c.l.b16 %v76
  %v577 = vunpack.c.h.b16 %v76
  %v578 = vunpack.c.l.b16 %v77
  %v579 = vunpack.c.h.b16 %v77
  %v580 = vunpack.c.l.b16 %v78
  %v581 = vunpack.c.h.b16 %v78
  %v582 = vunpack.c.l.b16 %v79
  %v583 = vunpack.c.h.b16 %v79
  %v584 = vunpack.c.l.b16 %v80
  %v585 = vunpack.c.h.b16 %v80
  %v586 = vunpack.c.l.b16 %v81
  %v587 = vunpack.c.h.b16 %v81
  %v588 = vunpack.c.l.b16 %v82
  %v589 = vunpack.c.h.b16 %v82
  %v590 = vunpack.c.l.b16 %v83
  %v591 = vunpack.c.h.b16 %v83
  %v592 = vunpack.c.l.b16 %v84
  %v593 = vunpack.c.h.b16 %v84
  %v594 = vunpack.c.l.b16 %v85
  %v595 = vunpack.c.h.b16 %v85
  %v596 = vunpack.c.l.b16 %v86
  %v597 = vunpack.c.h.b16 %v86
  %v598 = vunpack.c.l.b16 %v87
  %v599 = vunpack.c.h.b16 %v87
  %v600 = vunpack.c.l.b16 %v88
  %v601 = vunpack.c.h.b16 %v88
  %v602 = vunpack.c.l.b16 %v89
  %v603 = vunpack.c.h.b16 %v89
  %v604 = vunpack.c.l.b16 %v90
  %v605 = vunpack.c.h.b16 %v90
  %v606 = vunpack.c.l.b16 %v91
  %v607 = vunpack.c.h.b16 %v91
  %v608 = vunpack.c.l.b16 %v92
  %v609 = vunpack.c.h.b16 %v92
  %v610 = vunpack.c.l.b16 %v93
  %v611 = vunpack.c.h.b16 %v93
  %v612 = vunpack.c.l.b16 %v94
  %v613 = vunpack.c.h.b16 %v94
  %v614 = vunpack.c.l.b16 %v95
  %v615 = vunpack.c.h.b16 %v95
  %v616 = vunpack.c.l.b16 %v96
  %v617 = vunpack.c.h.b16 %v96
  %v618 = vunpack.c.l.b16 %v97
  %v619 = vunpack.c.h.b16 %v97
  %v620 = vunpack.c.l.b16 %v98
  %v621 = vunpack.c.h.b16 %v98
  %v622 = vunpack.c.l.b16 %v99
  %v623 = vunpack.c.h.b16 %v99
  %v624 = vunpack.c.l.b16 %v100
  %v625 = vunpack.c.h.b16 %v100
  %v626 = vunpack.c.l.b16 %v101
  %v627 = vunpack.c.h.b16 %v101
  %v628 = vunpack.c.l.b16 %v102
  %v629 = vunpack.c.h.b16 %v102
  %v630 = vunpack.c.l.b16 %v103
  %v631 = vunpack.c.h.b16 %v103
  %v632 = vunpack.c.l.b16 %v104
  %v633 = vunpack.c.h.b16 %v104
  %v634 = vunpack.c.l.b16 %v105
  %v635 = vunpack.c.h.b16 %v105
  %v636 = vunpack.c.l.b16 %v106
  %v637 = vunpack.c.h.b16 %v106
  %v638 = vunpack.c.l.b16 %v107
  %v639 = vunpack.c.h.b16 %v107
  %v640 = vunpack.c.l.b16 %v108
  %v641 = vunpack.c.h.b16 %v108
  %v642 = vunpack.c.l.b16 %v109
  %v643 = vunpack.c.h.b16 %v109
  %v644 = vunpack.c.l.b16 %v110
  %v645 = vunpack.c.h.b16 %v110
  %v646 = vunpack.c.l.b16 %v111
  %v647 = vunpack.c.h.b16 %v111
  %v648 = vunpack.c.l.b16 %v112
  %v649 = vunpack.c.h.b16 %v112
  %v650 = vunpack.c.l.b16 %v113
  %v651 = vunpack.c.h.b16 %v113
  %v652 = vunpack.c.l.b16 %v114
  %v653 = vunpack.c.h.b16 %v114
  %v654 = vunpack.c.l.b16 %v115
  %v655 = vunpack.c.h.b16 %v115
  %v656 = vunpack.c.l.b16 %v116
  %v657 = vunpack.c.h.b16 %v116
  %v658 = vunpack.c.l.b16 %v117
  %v659 = vunpack.c.h.b16 %v117
  %v660 = vunpack.c.l.b16 %v118
  %v661 = vunpack.c.h.b16 %v118
  %v662 = vunpack.c.l.b16 %v119
  %v663 = vunpack.c.h.b16 %v119
  %v664 = vunpack.c.l.b16 %v120
  %v665 = vunpack.c.h.b16 %v120
  %v666 = vunpack.c.l.b16 %v121
  %v667 = vunpack.c.h.b16 %v121
  %v668 = vunpack.c.l.b16 %v122
  %v669 = vunpack.c.h.b16 %v122
  %v670 = vunpack.c.l.b16 %v123
  %v671 = vunpack.c.h.b16 %v123
  %v672 = vunpack.c.l.b16 %v124
  %v673 = vunpack.c.h.b16 %v124
  %v674 = vunpack.c.l.b16 %v125
  %v675 = vunpack.c.h.b16 %v125
  %v676 = vunpack.c.l.b16 %v126
  %v677 = vunpack.c.h.b16 %v126
  %v678 = vunpack.c.l.b16 %v127
  %v679 = vunpack.c.h.b16 %v127
  %v680 = vunpack.c.l.b16 %v128
  %v681 = vunpack.c.h.b16 %v128
  %v682 = vunpack.c.l.b16 %v129
  %v683 = vunpack.c.h.b16 %v129
  %v684 = vunpack.c.l.b16 %v130
  %v685 = vunpack.c.h.b16 %v130
  %v686 = vunpack.c.l.b16 %v131
  %v687 = vunpack.c.h.b16 %v131
  %v688 = vunpack.c.l.b16 %v132
  %v689 = vunpack.c.h.b16 %v132
  %v690 = vunpack.c.l.b16 %v133
  %v691 = vunpack.c.h.b16 %v133
  %v692 = vunpack.c.l.b16 %v134
  %v693 = vunpack.c.h.b16 %v134
  %v694 = vunpack.c.l.b16 %v135
  %v695 = vunpack.c.h.b16 %v135
  %v696 = vunpack.c.l.b16 %v136
  %v697 = vunpack.c.h.b16 %v136
  %v698 = vunpack.c.l.b16 %v137
  %v699 = vunpack.c.h.b16 %v137
  %v700 = vunpack.c.l.b16 %v138
  %v701 = vunpack.c.h.b16 %v138
  %v702 = vunpack.c.l.b16 %v139
  %v703 = vunpack.c.h.b16 %v139
  %v704 = vunpack.c.l.b16 %v140
  %v705 = vunpack.c.h.b16 %v140
  %v706 = vunpack.c.l.b16 %v141
  %v707 = vunpack.c.h.b16 %v141
  %v708 = vunpack.c.l.b16 %v142
  %v709 = vunpack.c.h.b16 %v142
  %v710 = vunpack.c.l.b16 %v143
  %v711 = vunpack.c.h.b16 %v143
  %v712 = vunpack.c.l.b16 %v144
  %v713 = vunpack.c.h.b16 %v144
  %v714 = vunpack.c.l.b16 %v145
  %v715 = vunpack.c.h.b16 %v145
  %v716 = vunpack.c.l.b16 %v146
  %v717 = vunpack.c.h.b16 %v146
  %v718 = vunpack.c.l.b16 %v147
  %v719 = vunpack.c.h.b16 %v147
  %v720 = vunpack.c.l.b16 %v148
  %v721 = vunpack.c.h.b16 %v148
  %v722 = vunpack.c.l.b16 %v149
  %v723 = vunpack.c.h.b16 %v149
  %v724 = vunpack.c.l.b16 %v150
  %v725 = vunpack.c.h.b16 %v150
  %v726 = vunpack.c.l.b16 %v151
  %v727 = vunpack.c.h.b16 %v151
  %v728 = vunpack.c.l.b16 %v152
  %v729 = vunpack.c.h.b16 %v152
  %v730 = vunpack.c.l.b16 %v153
  %v731 = vunpack.c.h.b16 %v153
  %v732 = vunpack.c.l.b16 %v154
  %v733 = vunpack.c.h.b16 %v154
  %v734 = vunpack.c.l.b16 %v155
  %v735 = vunpack.c.h.b16 %v155
  %v736 = vunpack.c.l.b16 %v156
  %v737 = vunpack.c.h.b16 %v156
  %v738 = vunpack.c.l.b16 %v157
  %v739 = vunpack.c.h.b16 %v157
  %v740 = vunpack.c.l.b16 %v158
  %v741 = vunpack.c.h.b16 %v158
  %v742 = vunpack.c.l.b16 %v159
  %v743 = vunpack.c.h.b16 %v159
  %v744 = vunpack.c.l.b16 %v160
  %v745 = vunpack.c.h.b16 %v160
  %v746 = vunpack.c.l.b16 %v161
  %v747 = vunpack.c.h.b16 %v161
  %v748 = vunpack.c.l.b16 %v162
  %v749 = vunpack.c.h.b16 %v162
  %v750 = vunpack.c.l.b16 %v163
  %v751 = vunpack.c.h.b16 %v163
  %v752 = vunpack.c.l.b16 %v164
  %v753 = vunpack.c.h.b16 %v164
  %v754 = vunpack.c.l.b16 %v165
  %v755 = vunpack.c.h.b16 %v165
  %v756 = vunpack.c.l.b16 %v166
  %v757 = vunpack.c.h.b16 %v166
  %v758 = vunpack.c.l.b16 %v167
  %v759 = vunpack.c.h.b16 %v167
  %v760 = vunpack.c.l.b16 %v168
  %v761 = vunpack.c.h.b16 %v168
  %v762 = vunpack.c.l.b16 %v169
  %v763 = vunpack.c.h.b16 %v169
  %v764 = vunpack.c.l.b16 %v170
  %v765 = vunpack.c.h.b16 %v170
  %v766 = vunpack.c.l.b16 %v171
  %v767 = vunpack.c.h.b16 %v171
  %v768 = vunpack.c.l.b16 %v172
  %v769 = vunpack.c.h.b16 %v172
  %v770 = vunpack.c.l.b16 %v173
  %v771 = vunpack.c.h.b16 %v173
  %v772 = vunpack.c.l.b16 %v174
  %v773 = vunpack.c.h.b16 %v174
  %v774 = vunpack.c.l.b16 %v175
  %v775 = vunpack.c.h.b16 %v175
  %v776 = vunpack.c.l.b16 %v176
  %v777 = vunpack.c.h.b16 %v176
  %v778 = vunpack.c.l.b16 %v177
  %v779 = vunpack.c.h.b16 %v177
  %v780 = vunpack.c.l.b16 %v178
  %v781 = vunpack.c.h.b16 %v178
  %v782 = vunpack.c.l.b16 %v179
  %v783 = vunpack.c.h.b16 %v179
  %v784 = vunpack.c.l.b16 %v180
  %v785 = vunpack.c.h.b16 %v180
  %v786 = vunpack.c.l.b16 %v181
  %v787 = vunpack.c.h.b16 %v181
  %v788 = vunpack.c.l.b16 %v182
  %v789 = vunpack.c.h.b16 %v182
  %v790 = vunpack.c.l.b16 %v183
  %v791 = vunpack.c.h.b16 %v183
  %v792 = vunpack.c.l.b16 %v184
  %v793 = vunpack.c.h.b16 %v184
  %v794 = vunpack.c.l.b16 %v185
  %v795 = vunpack.c.h.b16 %v185
  %v796 = vunpack.c.l.b16 %v186
  %v797 = vunpack.c.h.b16 %v186
  %v798 = vunpack.c.l.b16 %v187
  %v799 = vunpack.c.h.b16 %v187
  %v800 = vunpack.c.l.b16 %v188
  %v801 = vunpack.c.h.b16 %v188
  %v802 = vunpack.c.l.b16 %v189
  %v803 = vunpack.c.h.b16 %v189
  %v804 = vunpack.c.l.b16 %v190
  %v805 = vunpack.c.h.b16 %v190
  %v806 = vunpack.c.l.b16 %v191
  %v807 = vunpack.c.h.b16 %v191
  %v808 = vunpack.c.l.b16 %v192
  %v809 = vunpack.c.h.b16 %v192
  %v810 = vunpack.c.l.b16 %v193
  %v811 = vunpack.c.h.b16 %v193
  %v812 = vunpack.c.l.b16 %v194
  %v813 = vunpack.c.h.b16 %v194
  %v814 = vunpack.c.l.b16 %v195
  %v815 = vunpack.c.h.b16 %v195
  %v816 = vunpack.c.l.b16 %v196
  %v817 = vunpack.c.h.b16 %v196
  %v818 = vunpack.c.l.b16 %v197
  %v819 = vunpack.c.h.b16 %v197
  %v820 = vunpack.c.l.b16 %v198
  %v821 = vunpack.c.h.b16 %v198
  %v822 = vunpack.c.l.b16 %v199
  %v823 = vunpack.c.h.b16 %v199
  %v824 = vunpack.c.l.b16 %v200
  %v825 = vunpack.c.h.b16 %v200
  %v826 = vunpack.c.l.b16 %v201
  %v827 = vunpack.c.h.b16 %v201
  %v828 = vunpack.c.l.b16 %v202
  %v829 = vunpack.c.h.b16 %v202
  %v830 = vunpack.c.l.b16 %v203
  %v831 = vunpack.c.h.b16 %v203
  %v832 = vunpack.c.l.b16 %v204
  %v833 = vunpack.c.h.b16 %v204
  %v834 = vunpack.c.l.b16 %v205
  %v835 = vunpack.c.h.b16 %v205
  %v836 = vunpack.c.l.b16 %v206
  %v837 = vunpack.c.h.b16 %v206
  %v838 = vunpack.c.l.b16 %v207
  %v839 = vunpack.c.h.b16 %v207
  %v840 = vunpack.c.l.b16 %v208
  %v841 = vunpack.c.h.b16 %v208
  %v842 = vunpack.c.l.b16 %v209
  %v843 = vunpack.c.h.b16 %v209
  %v844 = vunpack.c.l.b16 %v210
  %v845 = vunpack.c.h.b16 %v210
  %v846 = vunpack.c.l.b16 %v211
  %v847 = vunpack.c.h.b16 %v211
  %v848 = vunpack.c.l.b16 %v212
  %v849 = vunpack.c.h.b16 %v212
  %v850 = vunpack.c.l.b16 %v213
  %v851 = vunpack.c.h.b16 %v213
  %v852 = vunpack.c.l.b16 %v214
  %v853 = vunpack.c.h.b16 %v214
  %v854 = vunpack.c.l.b16 %v215
  %v855 = vunpack.c.h.b16 %v215
  %v856 = vunpack.c.l.b16 %v216
  %v857 = vunpack.c.h.b16 %v216
  %v858 = vunpack.c.l.b16 %v217
  %v859 = vunpack.c.h.b16 %v217
  %v860 = vunpack.c.l.b16 %v218
  %v861 = vunpack.c.h.b16 %v218
  %v862 = vunpack.c.l.b16 %v219
  %v863 = vunpack.c.h.b16 %v219
  %v864 = vunpack.c.l.b16 %v220
  %v865 = vunpack.c.h.b16 %v220
  %v866 = vunpack.c.l.b16 %v221
  %v867 = vunpack.c.h.b16 %v221
  %v868 = vunpack.c.l.b16 %v222
  %v869 = vunpack.c.h.b16 %v222
  %v870 = vunpack.c.l.b16 %v223
  %v871 = vunpack.c.h.b16 %v223
  %v872 = vpack.c.b16 %v490, %v488
  %v873 = vpack.c.b16 %v491, %v489
  %v874 = vpack.c.b16 %v494, %v492
  %v875 = vpack.c.b16 %v495, %v493
  %v876 = vpack.c.b16 %v498, %v496
  %v877 = vpack.c.b16 %v499, %v497
  %v878 = vpack.c.b16 %v502, %v500
  %v879 = vpack.c.b16 %v503, %v501
  %v880 = vpack.c.b16 %v506, %v504
  %v881 = vpack.c.b16 %v507, %v505
  %v882 = vpack.c.b16 %v510, %v508
  %v883 = vpack.c.b16 %v511, %v509
  %v884 = vpack.c.b16 %v514, %v512
  %v885 = vpack.c.b16 %v515, %v513
  %v886 = vpack.c.b16 %v518, %v516
  %v887 = vpack.c.b16 %v519, %v517
  %v888 = vpack.c.b16 %v522, %v520
  %v889 = vpack.c.b16 %v523, %v521
  %v890 = vpack.c.b16 %v526, %v524
  %v891 = vpack.c.b16 %v527, %v525
  %v892 = vpack.c.b16 %v530, %v528
  %v893 = vpack.c.b16 %v531, %v529
  %v894 = vpack.c.b16 %v534, %v532
  %v895 = vpack.c.b16 %v535, %v533
  %v896 = vpack.c.b16 %v538, %v536
  %v897 = vpack.c.b16 %v539, %v537
  %v898 = vpack.c.b16 %v542, %v540
  %v899 = vpack.c.b16 %v543, %v541
  %v900 = vpack.c.b16 %v546, %v544
  %v901 = vpack.c.b16 %v547, %v545
  %v902 = vpack.c.b16 %v550, %v548
  %v903 = vpack.c.b16 %v551, %v549
  %v904 = vpack.c.b16 %v554, %v552
  %v905 = vpack.c.b16 %v555, %v553
  %v906 = vpack.c.b16 %v558, %v556
  %v907 = vpack.c.b16 %v559, %v557
  %v908 = vpack.c.b16 %v562, %v560
  %v909 = vpack.c.b16 %v563, %v561
  %v910 = vpack.c.b16 %v566, %v564
  %v911 = vpack.c.b16 %v567, %v565
  %v912 = vpack.c.b16 %v570, %v568
  %v913 = vpack.c.b16 %v571, %v569
  %v914 = vpack.c.b16 %v574, %v572
  %v915 = vpack.c.b16 %v575, %v573
  %v916 = vpack.c.b16 %v578, %v576
  %v917 = vpack.c.b16 %v579, %v577
  %v918 = vpack.c.b16 %v582, %v580
  %v919 = vpack.c.b16 %v583, %v581
  %v920 = vpack.c.b16 %v586, %v584
  %v921 = vpack.c.b16 %v587, %v585
  %v922 = vpack.c.b16 %v590, %v588
  %v923 = vpack.c.b16 %v591, %v589
  %v924 = vpack.c.b16 %v594, %v592
  %v925 = vpack.c.b16 %v595, %v593
  %v926 = vpack.c.b16 %v598, %v596
  %v927 = vpack.c.b16 %v599, %v597
  %v928 = vpack.c.b16 %v602, %v600
  %v929 = vpack.c.b16 %v603, %v601
  %v930 = vpack.c.b16 %v606, %v604
  %v931 = vpack.c.b16 %v607, %v605
  %v932 = vpack.c.b16 %v610, %v608
  %v933 = vpack.c.b16 %v611, %v609
  %v934 = vpack.c.b16 %v614, %v612
  %v935 = vpack.c.b16 %v615, %v613
  %v936 = vpack.c.b16 %v618, %v616
  %v937 = vpack.c.b16 %v619, %v617
  %v938 = vpack.c.b16 %v622, %v620
  %v939 = vpack.c.b16 %v623, %v621
  %v940 = vpack.c.b16 %v626, %v624
  %v941 = vpack.c.b16 %v627, %v625
  %v942 = vpack.c.b16 %v630, %v628
  %v943 = vpack.c.b16 %v631, %v629
  %v944 = vpack.c.b16 %v634, %v632
  %v945 = vpack.c.b16 %v635, %v633
  %v946 = vpack.c.b16 %v638, %v636
  %v947 = vpack.c.b16 %v639, %v637
  %v948 = vpack.c.b16 %v642, %v640
  %v949 = vpack.c.b16 %v643, %v641
  %v950 = vpack.c.b16 %v646, %v644
  %v951 = vpack.c.b16 %v647, %v645
  %v952 = vpack.c.b16 %v650, %v648
  %v953 = vpack.c.b16 %v651, %v649
  %v954 = vpack.c.b16 %v654, %v652
  %v955 = vpack.c.b16 %v655, %v653
  %v956 = vpack.c.b16 %v658, %v656
  %v957 = vpack.c.b16 %v659, %v657
  %v958 = vpack.c.b16 %v662, %v660
  %v959 = vpack.c.b16 %v663, %v661
  %v960 = vpack.c.b16 %v666, %v664
  %v961 = vpack.c.b16 %v667, %v665
  %v962 = vpack.c.b16 %v670, %v668
  %v963 = vpack.c.b16 %v671, %v669
  %v964 = vpack.c.b16 %v674, %v672
  %v965 = vpack.c.b16 %v675, %v673
  %v966 = vpack.c.b16 %v678, %v676
  %v967 = vpack.c.b16 %v679, %v677
  %v968 = vpack.c.b16 %v682, %v680
  %v969 = vpack.c.b16 %v683, %v681
  %v970 = vpack.c.b16 %v686, %v684
  %v971 = vpack.c.b16 %v687, %v685
  %v972 = vpack.c.b16 %v690, %v688
  %v973 = vpack.c.b16 %v691, %v689
  %v974 = vpack.c.b16 %v694, %v692
  %v975 = vpack.c.b16 %v695, %v693
  %v976 = vpack.c.b16 %v698, %v696
  %v977 = vpack.c.b16 %v699, %v697
  %v978 = vpack.c.b16 %v702, %v700
  %v979 = vpack.c.b16 %v703, %v701
  %v980 = vpack.c.b16 %v706, %v704
  %v981 = vpack.c.b16 %v707, %v705
  %v982 = vpack.c.b16 %v710, %v708
  %v983 = vpack.c.b16 %v711, %v709
  %v984 = vpack.c.b16 %v714, %v712
  %v985 = vpack.c.b16 %v715, %v713
  %v986 = vpack.c.b16 %v718, %v716
  %v987 = vpack.c.b16 %v719, %v717
  %v988 = vpack.c.b16 %v722, %v720
  %v989 = vpack.c.b16 %v723, %v721
  %v990 = vpack.c.b16 %v726, %v724
  %v991 = vpack.c.b16 %v727, %v725
  %v992 = vpack.c.b16 %v730, %v728
  %v993 = vpack.c.b16 %v731, %v729
  %v994 = vpack.c.b16 %v734, %v732
  %v995 = vpack.c.b16 %v735, %v733
  %v996 = vpack.c.b16 %v738, %v736
  %v997 = vpack.c.b16 %v739, %v737
  %v998 = vpack.c.b16 %v742, %v740
  %v999 = vpack.c.b16 %v743, %v741
  %v1000 = vpack.c.b16 %v746, %v744
  %v1001 = vpack.c.b16 %v747, %v745
  %v1002 = vpack.c.b16 %v750, %v748
  %v1003 = vpack.c.b16 %v751, %v749
  %v1004 = vpack.c.b16 %v754, %v752
  %v1005 = vpack.c.b16 %v755, %v753
  %v1006 = vpack.c.b16 %v758, %v756
  %v1007 = vpack.c.b16 %v759, %v757
  %v1008 = vpack.c.b16 %v762, %v760
  %v1009 = vpack.c.b16 %v763, %v761
  %v1010 = vpack.c.b16 %v766, %v764
  %v1011 = vpack.c.b16 %v767, %v765
  %v1012 = vpack.c.b16 %v770, %v768
  %v1013 = vpack.c.b16 %v771, %v769
  %v1014 = vpack.c.b16 %v774, %v772
  %v1015 = vpack.c.b16 %v775, %v773
  %v1016 = vpack.c.b16 %v778, %v776
  %v1017 = vpack.c.b16 %v779, %v777
  %v1018 = vpack.c.b16 %v782, %v780
  %v1019 = vpack.c.b16 %v783, %v781
  %v1020 = vpack.c.b16 %v786, %v784
  %v1021 = vpack.c.b16 %v787, %v785
  %v1022 = vpack.c.b16 %v790, %v788
  %v1023 = vpack.c.b16 %v791, %v789
  %v1024 = vpack.c.b16 %v794, %v792
  %v1025 = vpack.c.b16 %v795, %v793
  %v1026 = vpack.c.b16 %v798, %v796
  %v1027 = vpack.c.b16 %v799, %v797
  %v1028 = vpack.c.b16 %v802, %v800
  %v1029 = vpack.c.b16 %v803, %v801
  %v1030 = vpack.c.b16 %v806, %v804
  %v1031 = vpack.c.b16 %v807, %v805
  %v1032 = vpack.c.b16 %v810, %v808
  %v1033 = vpack.c.b16 %v811, %v809
  %v1034 = vpack.c.b16 %v814, %v812
  %v1035 = vpack.c.b16 %v815, %v813
  %v1036 = vpack.c.b16 %v818, %v816
  %v1037 = vpack.c.b16 %v819, %v817
  %v1038 = vpack.c.b16 %v822, %v820
  %v1039 = vpack.c.b16 %v823, %v821
  %v1040 = vpack.c.b16 %v826, %v824
  %v1041 = vpack.c.b16 %v827, %v825
  %v1042 = vpack.c.b16 %v830, %v828
  %v1043 = vpack.c.b16 %v831, %v829
  %v1044 = vpack.c.b16 %v834, %v832
  %v1045 = vpack.c.b16 %v835, %v833
  %v1046 = vpack.c.b16 %v838, %v836
  %v1047 = vpack.c.b16 %v839, %v837
  %v1048 = vpack.c.b16 %v842, %v840
  %v1049 = vpack.c.b16 %v843, %v841
  %v1050 = vpack.c.b16 %v846, %v844
  %v1051 = vpack.c.b16 %v847, %v845
  %v1052 = vpack.c.b16 %v850, %v848
  %v1053 = vpack.c.b16 %v851, %v849
  %v1054 = vpack.c.b16 %v854, %v852
  %v1055 = vpack.c.b16 %v855, %v853
  %v1056 = vpack.c.b16 %v858, %v856
  %v1057 = vpack.c.b16 %v859, %v857
  %v1058 = vpack.c.b16 %v862, %v860
  %v1059 = vpack.c.b16 %v863, %v861
  %v1060 = vpack.c.b16 %v866, %v864
  %v1061 = vpack.c.b16 %v867, %v865
  %v1062 = vpack.c.b16 %v870, %v868
  %v1063 = vpack.c.b16 %v871, %v869
  %1256 = vmatprep.subr.bf16.mxu0 %v873
  %1257 = vmatpush1.bf16.msra.mxu0 %v872
  %1258 = vmatprep.subr.bf16.mxu0 %v875
  %1259 = vmatpush1.bf16.msra.mxu0 %v874
  %1260 = vmatprep.subr.bf16.mxu0 %v877
  %1261 = vmatpush1.bf16.msra.mxu0 %v876
  %1262 = vmatprep.subr.bf16.mxu0 %v879
  %1263 = vmatpush1.bf16.msra.mxu0 %v878
  %1264 = vmatprep.subr.bf16.mxu0 %v881
  %1265 = vmatpush1.bf16.msra.mxu0 %v880
  %1266 = vmatprep.subr.bf16.mxu0 %v883
  %1267 = vmatpush1.bf16.msra.mxu0 %v882
  %1268 = vmatprep.subr.bf16.mxu0 %v885
  %1269 = vmatpush1.bf16.msra.mxu0 %v884
  %1270 = vmatprep.subr.bf16.mxu0 %v887
  %1271 = vmatpush1.bf16.msra.mxu0 %v886
  %1272 = vmatprep.subr.bf16.mxu0 %v889
  %1273 = vmatpush1.bf16.msra.mxu0 %v888
  %1274 = vmatprep.subr.bf16.mxu0 %v891
  %1275 = vmatpush1.bf16.msra.mxu0 %v890
  %1276 = vmatprep.subr.bf16.mxu0 %v893
  %1277 = vmatpush1.bf16.msra.mxu0 %v892
  %1278 = vmatprep.subr.bf16.mxu0 %v895
  %1279 = vmatpush1.bf16.msra.mxu0 %v894
  %1280 = vmatprep.subr.bf16.mxu0 %v897
  %1281 = vmatpush1.bf16.msra.mxu0 %v896
  %1282 = vmatprep.subr.bf16.mxu0 %v899
  %1283 = vmatpush1.bf16.msra.mxu0 %v898
  %1284 = vmatprep.subr.bf16.mxu0 %v901
  %1285 = vmatpush1.bf16.msra.mxu0 %v900
  %1286 = vmatprep.subr.bf16.mxu0 %v903
  %1287 = vmatpush1.bf16.msra.mxu0 %v902
  %1288 = vmatprep.mubr.bf16.mxu0 %v273
  %1289 = vmatmul.mubr.bf16.gmra.mrb[0].mxu0 %v272
  %v1290 = vpop.f32.mrb[0].mxu0
  %v1291 = vadd.f32 %v229, %v1290
  %v1292 = vpop.f32.mrb[0].mxu0
  %v1293 = vadd.f32 %v233, %v1292
  %v1294 = vpop.f32.mrb[0].mxu0
  %v1295 = vadd.f32 %v229, %v1294
  %v1296 = vpop.f32.mrb[0].mxu0
  %v1297 = vadd.f32 %v233, %v1296
  %1298 = vdwg.mxu0
  %1299 = vmatprep.subr.bf16.mxu0 %v905
  %1300 = vmatpush1.bf16.msra.mxu0 %v904
  %1301 = vmatprep.subr.bf16.mxu0 %v907
  %1302 = vmatpush1.bf16.msra.mxu0 %v906
  %1303 = vmatprep.subr.bf16.mxu0 %v909
  %1304 = vmatpush1.bf16.msra.mxu0 %v908
  %1305 = vmatprep.subr.bf16.mxu0 %v911
  %1306 = vmatpush1.bf16.msra.mxu0 %v910
  %1307 = vmatprep.subr.bf16.mxu0 %v913
  %1308 = vmatpush1.bf16.msra.mxu0 %v912
  %1309 = vmatprep.subr.bf16.mxu0 %v915
  %1310 = vmatpush1.bf16.msra.mxu0 %v914
  %1311 = vmatprep.subr.bf16.mxu0 %v917
  %1312 = vmatpush1.bf16.msra.mxu0 %v916
  %1313 = vmatprep.subr.bf16.mxu0 %v919
  %1314 = vmatpush1.bf16.msra.mxu0 %v918
  %1315 = vmatprep.subr.bf16.mxu0 %v921
  %1316 = vmatpush1.bf16.msra.mxu0 %v920
  %1317 = vmatprep.subr.bf16.mxu0 %v923
  %1318 = vmatpush1.bf16.msra.mxu0 %v922
  %1319 = vmatprep.subr.bf16.mxu0 %v925
  %1320 = vmatpush1.bf16.msra.mxu0 %v924
  %1321 = vmatprep.subr.bf16.mxu0 %v927
  %1322 = vmatpush1.bf16.msra.mxu0 %v926
  %1323 = vmatprep.subr.bf16.mxu0 %v929
  %1324 = vmatpush1.bf16.msra.mxu0 %v928
  %1325 = vmatprep.subr.bf16.mxu0 %v931
  %1326 = vmatpush1.bf16.msra.mxu0 %v930
  %1327 = vmatprep.subr.bf16.mxu0 %v933
  %1328 = vmatpush1.bf16.msra.mxu0 %v932
  %1329 = vmatprep.subr.bf16.mxu0 %v935
  %1330 = vmatpush1.bf16.msra.mxu0 %v934
  %1331 = vmatprep.mubr.bf16.mxu0 %v275
  %1332 = vmatmul.mubr.bf16.gmra.mrb[0].mxu0 %v274
  %v1333 = vpop.f32.mrb[0].mxu0
  %v1334 = vadd.f32 %v1291, %v1333
  %v1335 = vpop.f32.mrb[0].mxu0
  %v1336 = vadd.f32 %v1293, %v1335
  %v1337 = vpop.f32.mrb[0].mxu0
  %v1338 = vadd.f32 %v1295, %v1337
  %v1339 = vpop.f32.mrb[0].mxu0
  %v1340 = vadd.f32 %v1297, %v1339
  %1341 = vdwg.mxu0
  %1342 = vmatprep.subr.bf16.mxu0 %v937
  %1343 = vmatpush1.bf16.msra.mxu0 %v936
  %1344 = vmatprep.subr.bf16.mxu0 %v939
  %1345 = vmatpush1.bf16.msra.mxu0 %v938
  %1346 = vmatprep.subr.bf16.mxu0 %v941
  %1347 = vmatpush1.bf16.msra.mxu0 %v940
  %1348 = vmatprep.subr.bf16.mxu0 %v943
  %1349 = vmatpush1.bf16.msra.mxu0 %v942
  %1350 = vmatprep.subr.bf16.mxu0 %v945
  %1351 = vmatpush1.bf16.msra.mxu0 %v944
  %1352 = vmatprep.subr.bf16.mxu0 %v947
  %1353 = vmatpush1.bf16.msra.mxu0 %v946
  %1354 = vmatprep.subr.bf16.mxu0 %v949
  %1355 = vmatpush1.bf16.msra.mxu0 %v948
  %1356 = vmatprep.subr.bf16.mxu0 %v951
  %1357 = vmatpush1.bf16.msra.mxu0 %v950
  %1358 = vmatprep.subr.bf16.mxu0 %v953
  %1359 = vmatpush1.bf16.msra.mxu0 %v952
  %1360 = vmatprep.subr.bf16.mxu0 %v955
  %1361 = vmatpush1.bf16.msra.mxu0 %v954
  %1362 = vmatprep.subr.bf16.mxu0 %v957
  %1363 = vmatpush1.bf16.msra.mxu0 %v956
  %1364 = vmatprep.subr.bf16.mxu0 %v959
  %1365 = vmatpush1.bf16.msra.mxu0 %v958
  %1366 = vmatprep.subr.bf16.mxu0 %v961
  %1367 = vmatpush1.bf16.msra.mxu0 %v960
  %1368 = vmatprep.subr.bf16.mxu0 %v963
  %1369 = vmatpush1.bf16.msra.mxu0 %v962
  %1370 = vmatprep.subr.bf16.mxu0 %v965
  %1371 = vmatpush1.bf16.msra.mxu0 %v964
  %1372 = vmatprep.subr.bf16.mxu0 %v967
  %1373 = vmatpush1.bf16.msra.mxu0 %v966
  %1374 = vmatprep.mubr.bf16.mxu0 %v277
  %1375 = vmatmul.mubr.bf16.gmra.mrb[0].mxu0 %v276
  %v1376 = vpop.f32.mrb[0].mxu0
  %v1377 = vadd.f32 %v1334, %v1376
  %v1378 = vpop.f32.mrb[0].mxu0
  %v1379 = vadd.f32 %v1336, %v1378
  %v1380 = vpop.f32.mrb[0].mxu0
  %v1381 = vadd.f32 %v1338, %v1380
  %v1382 = vpop.f32.mrb[0].mxu0
  %v1383 = vadd.f32 %v1340, %v1382
  %1384 = vdwg.mxu0
  %1385 = vmatprep.subr.bf16.mxu0 %v969
  %1386 = vmatpush1.bf16.msra.mxu0 %v968
  %1387 = vmatprep.subr.bf16.mxu0 %v971
  %1388 = vmatpush1.bf16.msra.mxu0 %v970
  %1389 = vmatprep.subr.bf16.mxu0 %v973
  %1390 = vmatpush1.bf16.msra.mxu0 %v972
  %1391 = vmatprep.subr.bf16.mxu0 %v975
  %1392 = vmatpush1.bf16.msra.mxu0 %v974
  %1393 = vmatprep.subr.bf16.mxu0 %v977
  %1394 = vmatpush1.bf16.msra.mxu0 %v976
  %1395 = vmatprep.subr.bf16.mxu0 %v979
  %1396 = vmatpush1.bf16.msra.mxu0 %v978
  %1397 = vmatprep.subr.bf16.mxu0 %v981
  %1398 = vmatpush1.bf16.msra.mxu0 %v980
  %1399 = vmatprep.subr.bf16.mxu0 %v983
  %1400 = vmatpush1.bf16.msra.mxu0 %v982
  %1401 = vmatprep.subr.bf16.mxu0 %v985
  %1402 = vmatpush1.bf16.msra.mxu0 %v984
  %1403 = vmatprep.subr.bf16.mxu0 %v987
  %1404 = vmatpush1.bf16.msra.mxu0 %v986
  %1405 = vmatprep.subr.bf16.mxu0 %v989
  %1406 = vmatpush1.bf16.msra.mxu0 %v988
  %1407 = vmatprep.subr.bf16.mxu0 %v991
  %1408 = vmatpush1.bf16.msra.mxu0 %v990
  %1409 = vmatprep.subr.bf16.mxu0 %v993
  %1410 = vmatpush1.bf16.msra.mxu0 %v992
  %1411 = vmatprep.subr.bf16.mxu0 %v995
  %1412 = vmatpush1.bf16.msra.mxu0 %v994
  %1413 = vmatprep.subr.bf16.mxu0 %v997
  %1414 = vmatpush1.bf16.msra.mxu0 %v996
  %1415 = vmatprep.subr.bf16.mxu0 %v999
  %1416 = vmatpush1.bf16.msra.mxu0 %v998
  %1417 = vmatprep.mubr.bf16.mxu0 %v279
  %1418 = vmatmul.mubr.bf16.gmra.mrb[0].mxu0 %v278
  %v1419 = vpop.f32.mrb[0].mxu0
  %v1420 = vadd.f32 %v1377, %v1419
  %v1421 = vpop.f32.mrb[0].mxu0
  %v1422 = vadd.f32 %v1379, %v1421
  %v1423 = vpop.f32.mrb[0].mxu0
  %v1424 = vadd.f32 %v1381, %v1423
  %v1425 = vpop.f32.mrb[0].mxu0
  %v1426 = vadd.f32 %v1383, %v1425
  %1427 = vdwg.mxu0
  %1428 = vmatprep.subr.bf16.mxu0 %v1001
  %1429 = vmatpush1.bf16.msra.mxu0 %v1000
  %1430 = vmatprep.subr.bf16.mxu0 %v1003
  %1431 = vmatpush1.bf16.msra.mxu0 %v1002
  %1432 = vmatprep.subr.bf16.mxu0 %v1005
  %1433 = vmatpush1.bf16.msra.mxu0 %v1004
  %1434 = vmatprep.subr.bf16.mxu0 %v1007
  %1435 = vmatpush1.bf16.msra.mxu0 %v1006
  %1436 = vmatprep.subr.bf16.mxu0 %v1009
  %1437 = vmatpush1.bf16.msra.mxu0 %v1008
  %1438 = vmatprep.subr.bf16.mxu0 %v1011
  %1439 = vmatpush1.bf16.msra.mxu0 %v1010
  %1440 = vmatprep.subr.bf16.mxu0 %v1013
  %1441 = vmatpush1.bf16.msra.mxu0 %v1012
  %1442 = vmatprep.subr.bf16.mxu0 %v1015
  %1443 = vmatpush1.bf16.msra.mxu0 %v1014
  %1444 = vmatprep.subr.bf16.mxu0 %v1017
  %1445 = vmatpush1.bf16.msra.mxu0 %v1016
  %1446 = vmatprep.subr.bf16.mxu0 %v1019
  %1447 = vmatpush1.bf16.msra.mxu0 %v1018
  %1448 = vmatprep.subr.bf16.mxu0 %v1021
  %1449 = vmatpush1.bf16.msra.mxu0 %v1020
  %1450 = vmatprep.subr.bf16.mxu0 %v1023
  %1451 = vmatpush1.bf16.msra.mxu0 %v1022
  %1452 = vmatprep.subr.bf16.mxu0 %v1025
  %1453 = vmatpush1.bf16.msra.mxu0 %v1024
  %1454 = vmatprep.subr.bf16.mxu0 %v1027
  %1455 = vmatpush1.bf16.msra.mxu0 %v1026
  %1456 = vmatprep.subr.bf16.mxu0 %v1029
  %1457 = vmatpush1.bf16.msra.mxu0 %v1028
  %1458 = vmatprep.subr.bf16.mxu0 %v1031
  %1459 = vmatpush1.bf16.msra.mxu0 %v1030
  %1460 = vmatprep.mubr.bf16.mxu0 %v281
  %1461 = vmatmul.mubr.bf16.gmra.mrb[0].mxu0 %v280
  %v1462 = vpop.f32.mrb[0].mxu0
  %v1463 = vadd.f32 %v1420, %v1462
  %v1464 = vpop.f32.mrb[0].mxu0
  %v1465 = vadd.f32 %v1422, %v1464
  %v1466 = vpop.f32.mrb[0].mxu0
  %v1467 = vadd.f32 %v1424, %v1466
  %v1468 = vpop.f32.mrb[0].mxu0
  %v1469 = vadd.f32 %v1426, %v1468
  %1470 = vdwg.mxu0
  %1471 = vmatprep.subr.bf16.mxu0 %v1033
  %1472 = vmatpush1.bf16.msra.mxu0 %v1032
  %1473 = vmatprep.subr.bf16.mxu0 %v1035
  %1474 = vmatpush1.bf16.msra.mxu0 %v1034
  %1475 = vmatprep.subr.bf16.mxu0 %v1037
  %1476 = vmatpush1.bf16.msra.mxu0 %v1036
  %1477 = vmatprep.subr.bf16.mxu0 %v1039
  %1478 = vmatpush1.bf16.msra.mxu0 %v1038
  %1479 = vmatprep.subr.bf16.mxu0 %v1041
  %1480 = vmatpush1.bf16.msra.mxu0 %v1040
  %1481 = vmatprep.subr.bf16.mxu0 %v1043
  %1482 = vmatpush1.bf16.msra.mxu0 %v1042
  %1483 = vmatprep.subr.bf16.mxu0 %v1045
  %1484 = vmatpush1.bf16.msra.mxu0 %v1044
  %1485 = vmatprep.subr.bf16.mxu0 %v1047
  %1486 = vmatpush1.bf16.msra.mxu0 %v1046
  %1487 = vmatprep.subr.bf16.mxu0 %v1049
  %1488 = vmatpush1.bf16.msra.mxu0 %v1048
  %1489 = vmatprep.subr.bf16.mxu0 %v1051
  %1490 = vmatpush1.bf16.msra.mxu0 %v1050
  %1491 = vmatprep.subr.bf16.mxu0 %v1053
  %1492 = vmatpush1.bf16.msra.mxu0 %v1052
  %1493 = vmatprep.subr.bf16.mxu0 %v1055
  %1494 = vmatpush1.bf16.msra.mxu0 %v1054
  %1495 = vmatprep.subr.bf16.mxu0 %v1057
  %1496 = vmatpush1.bf16.msra.mxu0 %v1056
  %1497 = vmatprep.subr.bf16.mxu0 %v1059
  %1498 = vmatpush1.bf16.msra.mxu0 %v1058
  %1499 = vmatprep.subr.bf16.mxu0 %v1061
  %1500 = vmatpush1.bf16.msra.mxu0 %v1060
  %1501 = vmatprep.subr.bf16.mxu0 %v1063
  %1502 = vmatpush1.bf16.msra.mxu0 %v1062
  %1503 = vmatprep.mubr.bf16.mxu0 %v283
  %1504 = vmatmul.mubr.bf16.gmra.mrb[0].mxu0 %v282
  %v1505 = vpop.f32.mrb[0].mxu0
  %v1506 = vadd.f32 %v1463, %v1505
  %v1507 = vpop.f32.mrb[0].mxu0
  %v1508 = vadd.f32 %v1465, %v1507
  %v1509 = vpop.f32.mrb[0].mxu0
  %v1510 = vadd.f32 %v1467, %v1509
  %v1511 = vpop.f32.mrb[0].mxu0
  %v1512 = vadd.f32 %v1469, %v1511
  %1513 = vdwg.mxu0
  %v1514 = vld [vmem:[%s4] sm:$0x3]
  %v1515 = vlaneseq
  %vm1516 = vcmp.ge.s32.totalorder %v1515, 0
  %vm1517 = vcmp.lt.s32.totalorder %v1515, 256
  %vm1518 = vmand %vm1516, %vm1517
  %1519 = vst.msk [vmem:[%s5] ss:$8 sm:$0x3] %vm1518, %v1514
  %1520 = vst.msk [vmem:[%s5] ss:$8 sm:$0x0] %vm1518, %v1514
  %v1521 = vld [vmem:[%s3] sm:$0xff]
  %v1522 = vld [vmem:[%s3 + $0x8] sm:$0xff]
  %v1523 = vadd.f32 %v1506, %v1521
  %v1524 = vadd.f32 %v1508, %v1522
  %v1527 = vrot.slane %v1523, 7
  %v1528 = vrot.slane %v1524, 7
  %1531 = vst [vmem:[%s5] sm:$0xfe] %v1527
  %1532 = vst [vmem:[%s5 + $0x8] sm:$0xfe] %v1528
  %1533 = vst [vmem:[%s5 + $0x10] sm:$0x1] %v1527
  %1534 = vst [vmem:[%s5 + $0x18] sm:$0x1] %v1528
  %v1535 = vld [vmem:[%s4] sm:$0x3]
  %s1536 = scalar_lea.vmem %s5, 17
  %1537 = vst.msk [vmem:[%s1536] ss:$8 sm:$0x3] %vm1518, %v1535
  %1538 = vst.msk [vmem:[%s1536] ss:$8 sm:$0x0] %vm1518, %v1535
  %v1539 = vld [vmem:[%s3] sm:$0xff]
  %v1540 = vld [vmem:[%s3 + $0x8] sm:$0xff]
  %v1541 = vadd.f32 %v1510, %v1539
  %v1542 = vadd.f32 %v1512, %v1540
  %v1545 = vrot.slane %v1541, 6
  %v1546 = vrot.slane %v1542, 6
  %1549 = vst [vmem:[%s5 + $0x10] sm:$0xfc] %v1545
  %1550 = vst [vmem:[%s5 + $0x18] sm:$0xfc] %v1546
  %1551 = vst [vmem:[%s5 + $0x20] sm:$0x3] %v1545
  %1552 = vst [vmem:[%s5 + $0x28] sm:$0x3] %v1546
  // Predicated region
  $region22: #{vit3d_forward.3} parent=0 // pred_check
    _
  $region23: #{vit3d_forward.3} parent=0 // pred_check_branch
    %1554 = sbr.rel (0) target = $region25
  $region24: #{vit3d_forward.3} parent=0 // pred_region
    _
  $region25: #{vit3d_forward.3} parent=0 // pred_fallthru
    _
  // Predicated region
  $region26: #{vit3d_forward.3} parent=0 // pred_check
    _
  $region27: #{vit3d_forward.3} parent=0 // pred_check_branch
    %1556 = sbr.rel (0) target = $region29
  $region28: #{vit3d_forward.3} parent=0 // pred_region
    _
  $region29: #{vit3d_forward.3} parent=0 // pred_fallthru
    _

// kernel: vit3d_forward.4
$region0: #{vit3d_forward.4}
  #allocation0 [shape = 'u32[]', space=smem, size = 0x4, offset = 0x4, fixed_abs, tag = 'smem constant byte address 0x4 - core index']
  #allocation1 [shape = 'u32[144,128]{1,0:T(1,128)}', space=vmem, size = 0x12000, scoped, tag = 'internal scratch']
  #allocation2 [shape = 'f32[18,256]{1,0:T(8,128)}', space=vmem, size = 0x6000, scoped, tag = 'scratch operand']
  #allocation3 [shape = 'f32[18,256]{1,0:T(8,128)}', space=vmem, size = 0x6000, scoped, tag = 'scratch operand']
  %s0 = inlined_call_operand.vmem [shape: f32[18,256], index: 0, kind: input, shape index: {}]
  %s1 = inlined_call_operand.vmem [shape: f32[18,18], index: 1, kind: input, shape index: {}]
  %s2 = inlined_call_operand.vmem [shape: f32[2,1,256], index: 2, kind: input, shape index: {}]
  %s3 = inlined_call_operand.vmem [shape: f32[2,1,256], index: 3, kind: input, shape index: {}]
  %s4 = inlined_call_operand.vmem [shape: bf16[2,256,768], index: 4, kind: input, shape index: {}]
  %s5 = inlined_call_operand.vmem [shape: bf16[2,256,256], index: 5, kind: input, shape index: {}]
  %s6 = inlined_call_operand.vmem [shape: f32[2,1,256], index: 6, kind: input, shape index: {}]
  %s7 = inlined_call_operand.vmem [shape: f32[2,1,256], index: 7, kind: input, shape index: {}]
  %s8 = inlined_call_operand.vmem [shape: f32[2,1,256], index: 8, kind: input, shape index: {}]
  %s9 = inlined_call_operand.vmem [shape: bf16[2,256,512], index: 9, kind: input, shape index: {}]
  %s10 = inlined_call_operand.vmem [shape: f32[2,1,512], index: 10, kind: input, shape index: {}]
  %s11 = inlined_call_operand.vmem [shape: bf16[2,512,256], index: 11, kind: input, shape index: {}]
  %s12 = inlined_call_operand.vmem [shape: f32[2,1,256], index: 12, kind: input, shape index: {}]
  %s13 = inlined_call_operand.vmem [shape: f32[18,256], index: 13, kind: output, shape index: {}]
  %s14 = sld [smem:[#allocation0]]
  $region93: #{vit3d_forward.4} parent=0
    _
  %s16 = ssub.s32 1, %s14
  %s17 = scalar_select 0, %s16, %s14
  loop: start=0, step=1, limit=4
  $region2: #{vit3d_forward.4} parent=0 // loop_pre_header
    _
  $region3: #{vit3d_forward.4} parent=0 // loop_header
    %s19 = sphi 0, %s23
    %p20 = scmp.ge.s32.totalorder %s19, 4
    %s27 = sphi 0, %s27
    %s29 = sphi 0, %s27
    %s30 = sphi 0, %s29
    %s44 = sphi 0, %s30
    %s48 = sphi 0, %s48
    %s50 = sphi 0, %s48
    %s51 = sphi 0, %s50
    %s65 = sphi 0, %s51
    %s71 = sphi 0, %s73
    %s74 = sphi 0, %s71
    %s75 = sphi 0, %s74
    %s91 = sphi 0, %s75
    %s97 = sphi 0, %s99
    %s100 = sphi 0, %s97
    %s101 = sphi 0, %s100
    %s117 = sphi 0, %s101
    %s123 = sphi 0, %s125
    %s126 = sphi 0, %s123
    %s127 = sphi 0, %s126
    %s143 = sphi 0, %s127
    %s149 = sphi 0, %s151
    %s152 = sphi 0, %s149
    %s153 = sphi 0, %s152
    %s169 = sphi 0, %s153
    %s175 = sphi 0, %s177
    %s178 = sphi 0, %s175
    %s179 = sphi 0, %s178
    %s195 = sphi 0, %s179
    %s201 = sphi 0, %s203
    %s204 = sphi 0, %s201
    %s205 = sphi 0, %s204
    %s221 = sphi 0, %s205
    %s227 = sphi 0, %s229
    %s230 = sphi 0, %s227
    %s231 = sphi 0, %s230
    %s247 = sphi 0, %s231
    %s253 = sphi 0, %s255
    %s256 = sphi 0, %s253
    %s257 = sphi 0, %s256
    %s273 = sphi 0, %s257
    %s279 = sphi 0, %s281
    %s282 = sphi 0, %s279
    %s283 = sphi 0, %s282
    %s299 = sphi 0, %s283
    %s305 = sphi 0, %s307
    %s308 = sphi 0, %s305
    %s309 = sphi 0, %s308
    %s325 = sphi 0, %s309
    %s331 = sphi 0, %s333
    %s334 = sphi 0, %s331
    %s335 = sphi 0, %s334
    %s351 = sphi 0, %s335
    %s355 = sphi 0, %s355
    %s357 = sphi 0, %s355
    %s358 = sphi 0, %s357
    %s372 = sphi 0, %s358
  $region4: #{vit3d_forward.4} parent=0 // loop_header_branch
    %22 = sbr.rel (%p20) target = $region8
  $region5: #{vit3d_forward.4} parent=0 // loop_body
    %s24 = ssub.s32 %s19, 1
    %s25 = ssub.s32 %s19, 2
    %s26 = sadd.s32 %s19, 1
    %s28 = sadd.s32 %s27, 1
    %p31 = scmp.eq.s32.totalorder %s19, 1
    %p32 = scmp.ne.s32.totalorder %s27, %s29
    %p33 = scmp.eq.s32.totalorder %s19, 0
    %p34 = por %p32, %p33
    %p35 = scmp.ne.s32.totalorder %s27, %s29
    %p36 = scmp.eq.s32.totalorder %s24, 1
    %p37 = por %p35, %p36
    %p38 = scmp.ne.s32.totalorder %s29, %s30
    %p39 = scmp.eq.s32.totalorder %s24, 0
    %p40 = por %p38, %p39
    %p41 = scmp.ne.s32.totalorder %s29, %s30
    %p42 = scmp.eq.s32.totalorder %s25, 1
    %p43 = por %p41, %p42
    %p45 = scmp.ne.s32.totalorder %s30, %s44
    %p46 = scmp.eq.s32.totalorder %s25, 0
    %p47 = por %p45, %p46
    %s49 = sadd.s32 %s48, 1
    %p52 = scmp.eq.s32.totalorder %s19, 1
    %p53 = scmp.ne.s32.totalorder %s48, %s50
    %p54 = scmp.eq.s32.totalorder %s19, 0
    %p55 = por %p53, %p54
    %p56 = scmp.ne.s32.totalorder %s48, %s50
    %p57 = scmp.eq.s32.totalorder %s24, 1
    %p58 = por %p56, %p57
    %p59 = scmp.ne.s32.totalorder %s50, %s51
    %p60 = scmp.eq.s32.totalorder %s24, 0
    %p61 = por %p59, %p60
    %p62 = scmp.ne.s32.totalorder %s50, %s51
    %p63 = scmp.eq.s32.totalorder %s25, 1
    %p64 = por %p62, %p63
    %p66 = scmp.ne.s32.totalorder %s51, %s65
    %p67 = scmp.eq.s32.totalorder %s25, 0
    %p68 = por %p66, %p67
    %s69 = ssub.s32 %s19, %s26
    %p70 = scmp.eq.s32.totalorder %s69, 0
    %s72 = sadd.s32 %s71, 1
    %s73 = scalar_select %p70, %s71, %s72
    %p76 = pneg %p70
    %p77 = scmp.eq.s32.totalorder %s19, 1
    %p78 = por %p76, %p77
    %p79 = scmp.ne.s32.totalorder %s71, %s74
    %p80 = scmp.eq.s32.totalorder %s19, 0
    %p81 = por %p79, %p80
    %p82 = scmp.ne.s32.totalorder %s71, %s74
    %p83 = scmp.eq.s32.totalorder %s24, 1
    %p84 = por %p82, %p83
    %p85 = scmp.ne.s32.totalorder %s74, %s75
    %p86 = scmp.eq.s32.totalorder %s24, 0
    %p87 = por %p85, %p86
    %p88 = scmp.ne.s32.totalorder %s74, %s75
    %p89 = scmp.eq.s32.totalorder %s25, 1
    %p90 = por %p88, %p89
    %p92 = scmp.ne.s32.totalorder %s75, %s91
    %p93 = scmp.eq.s32.totalorder %s25, 0
    %p94 = por %p92, %p93
    %s95 = ssub.s32 %s19, %s26
    %p96 = scmp.eq.s32.totalorder %s95, 0
    %s98 = sadd.s32 %s97, 1
    %s99 = scalar_select %p96, %s97, %s98
    %p102 = pneg %p96
    %p103 = scmp.eq.s32.totalorder %s19, 1
    %p104 = por %p102, %p103
    %p105 = scmp.ne.s32.totalorder %s97, %s100
    %p106 = scmp.eq.s32.totalorder %s19, 0
    %p107 = por %p105, %p106
    %p108 = scmp.ne.s32.totalorder %s97, %s100
    %p109 = scmp.eq.s32.totalorder %s24, 1
    %p110 = por %p108, %p109
    %p111 = scmp.ne.s32.totalorder %s100, %s101
    %p112 = scmp.eq.s32.totalorder %s24, 0
    %p113 = por %p111, %p112
    %p114 = scmp.ne.s32.totalorder %s100, %s101
    %p115 = scmp.eq.s32.totalorder %s25, 1
    %p116 = por %p114, %p115
    %p118 = scmp.ne.s32.totalorder %s101, %s117
    %p119 = scmp.eq.s32.totalorder %s25, 0
    %p120 = por %p118, %p119
    %s121 = ssub.s32 %s19, %s26
    %p122 = scmp.eq.s32.totalorder %s121, 0
    %s124 = sadd.s32 %s123, 1
    %s125 = scalar_select %p122, %s123, %s124
    %p128 = pneg %p122
    %p129 = scmp.eq.s32.totalorder %s19, 1
    %p130 = por %p128, %p129
    %p131 = scmp.ne.s32.totalorder %s123, %s126
    %p132 = scmp.eq.s32.totalorder %s19, 0
    %p133 = por %p131, %p132
    %p134 = scmp.ne.s32.totalorder %s123, %s126
    %p135 = scmp.eq.s32.totalorder %s24, 1
    %p136 = por %p134, %p135
    %p137 = scmp.ne.s32.totalorder %s126, %s127
    %p138 = scmp.eq.s32.totalorder %s24, 0
    %p139 = por %p137, %p138
    %p140 = scmp.ne.s32.totalorder %s126, %s127
    %p141 = scmp.eq.s32.totalorder %s25, 1
    %p142 = por %p140, %p141
    %p144 = scmp.ne.s32.totalorder %s127, %s143
    %p145 = scmp.eq.s32.totalorder %s25, 0
    %p146 = por %p144, %p145
    %s147 = ssub.s32 %s19, %s26
    %p148 = scmp.eq.s32.totalorder %s147, 0
    %s150 = sadd.s32 %s149, 1
    %s151 = scalar_select %p148, %s149, %s150
    %p154 = pneg %p148
    %p155 = scmp.eq.s32.totalorder %s19, 1
    %p156 = por %p154, %p155
    %p157 = scmp.ne.s32.totalorder %s149, %s152
    %p158 = scmp.eq.s32.totalorder %s19, 0
    %p159 = por %p157, %p158
    %p160 = scmp.ne.s32.totalorder %s149, %s152
    %p161 = scmp.eq.s32.totalorder %s24, 1
    %p162 = por %p160, %p161
    %p163 = scmp.ne.s32.totalorder %s152, %s153
    %p164 = scmp.eq.s32.totalorder %s24, 0
    %p165 = por %p163, %p164
    %p166 = scmp.ne.s32.totalorder %s152, %s153
    %p167 = scmp.eq.s32.totalorder %s25, 1
    %p168 = por %p166, %p167
    %p170 = scmp.ne.s32.totalorder %s153, %s169
    %p171 = scmp.eq.s32.totalorder %s25, 0
    %p172 = por %p170, %p171
    %s173 = ssub.s32 %s19, %s26
    %p174 = scmp.eq.s32.totalorder %s173, 0
    %s176 = sadd.s32 %s175, 1
    %s177 = scalar_select %p174, %s175, %s176
    %p180 = pneg %p174
    %p181 = scmp.eq.s32.totalorder %s19, 1
    %p182 = por %p180, %p181
    %p183 = scmp.ne.s32.totalorder %s175, %s178
    %p184 = scmp.eq.s32.totalorder %s19, 0
    %p185 = por %p183, %p184
    %p186 = scmp.ne.s32.totalorder %s175, %s178
    %p187 = scmp.eq.s32.totalorder %s24, 1
    %p188 = por %p186, %p187
    %p189 = scmp.ne.s32.totalorder %s178, %s179
    %p190 = scmp.eq.s32.totalorder %s24, 0
    %p191 = por %p189, %p190
    %p192 = scmp.ne.s32.totalorder %s178, %s179
    %p193 = scmp.eq.s32.totalorder %s25, 1
    %p194 = por %p192, %p193
    %p196 = scmp.ne.s32.totalorder %s179, %s195
    %p197 = scmp.eq.s32.totalorder %s25, 0
    %p198 = por %p196, %p197
    %s199 = ssub.s32 %s19, %s26
    %p200 = scmp.eq.s32.totalorder %s199, 0
    %s202 = sadd.s32 %s201, 1
    %s203 = scalar_select %p200, %s201, %s202
    %p206 = pneg %p200
    %p207 = scmp.eq.s32.totalorder %s19, 1
    %p208 = por %p206, %p207
    %p209 = scmp.ne.s32.totalorder %s201, %s204
    %p210 = scmp.eq.s32.totalorder %s19, 0
    %p211 = por %p209, %p210
    %p212 = scmp.ne.s32.totalorder %s201, %s204
    %p213 = scmp.eq.s32.totalorder %s24, 1
    %p214 = por %p212, %p213
    %p215 = scmp.ne.s32.totalorder %s204, %s205
    %p216 = scmp.eq.s32.totalorder %s24, 0
    %p217 = por %p215, %p216
    %p218 = scmp.ne.s32.totalorder %s204, %s205
    %p219 = scmp.eq.s32.totalorder %s25, 1
    %p220 = por %p218, %p219
    %p222 = scmp.ne.s32.totalorder %s205, %s221
    %p223 = scmp.eq.s32.totalorder %s25, 0
    %p224 = por %p222, %p223
    %s225 = ssub.s32 %s19, %s26
    %p226 = scmp.eq.s32.totalorder %s225, 0
    %s228 = sadd.s32 %s227, 1
    %s229 = scalar_select %p226, %s227, %s228
    %p232 = pneg %p226
    %p233 = scmp.eq.s32.totalorder %s19, 1
    %p234 = por %p232, %p233
    %p235 = scmp.ne.s32.totalorder %s227, %s230
    %p236 = scmp.eq.s32.totalorder %s19, 0
    %p237 = por %p235, %p236
    %p238 = scmp.ne.s32.totalorder %s227, %s230
    %p239 = scmp.eq.s32.totalorder %s24, 1
    %p240 = por %p238, %p239
    %p241 = scmp.ne.s32.totalorder %s230, %s231
    %p242 = scmp.eq.s32.totalorder %s24, 0
    %p243 = por %p241, %p242
    %p244 = scmp.ne.s32.totalorder %s230, %s231
    %p245 = scmp.eq.s32.totalorder %s25, 1
    %p246 = por %p244, %p245
    %p248 = scmp.ne.s32.totalorder %s231, %s247
    %p249 = scmp.eq.s32.totalorder %s25, 0
    %p250 = por %p248, %p249
    %s251 = ssub.s32 %s19, %s26
    %p252 = scmp.eq.s32.totalorder %s251, 0
    %s254 = sadd.s32 %s253, 1
    %s255 = scalar_select %p252, %s253, %s254
    %p258 = pneg %p252
    %p259 = scmp.eq.s32.totalorder %s19, 1
    %p260 = por %p258, %p259
    %p261 = scmp.ne.s32.totalorder %s253, %s256
    %p262 = scmp.eq.s32.totalorder %s19, 0
    %p263 = por %p261, %p262
    %p264 = scmp.ne.s32.totalorder %s253, %s256
    %p265 = scmp.eq.s32.totalorder %s24, 1
    %p266 = por %p264, %p265
    %p267 = scmp.ne.s32.totalorder %s256, %s257
    %p268 = scmp.eq.s32.totalorder %s24, 0
    %p269 = por %p267, %p268
    %p270 = scmp.ne.s32.totalorder %s256, %s257
    %p271 = scmp.eq.s32.totalorder %s25, 1
    %p272 = por %p270, %p271
    %p274 = scmp.ne.s32.totalorder %s257, %s273
    %p275 = scmp.eq.s32.totalorder %s25, 0
    %p276 = por %p274, %p275
    %s277 = ssub.s32 %s19, %s26
    %p278 = scmp.eq.s32.totalorder %s277, 0
    %s280 = sadd.s32 %s279, 1
    %s281 = scalar_select %p278, %s279, %s280
    %p284 = pneg %p278
    %p285 = scmp.eq.s32.totalorder %s19, 1
    %p286 = por %p284, %p285
    %p287 = scmp.ne.s32.totalorder %s279, %s282
    %p288 = scmp.eq.s32.totalorder %s19, 0
    %p289 = por %p287, %p288
    %p290 = scmp.ne.s32.totalorder %s279, %s282
    %p291 = scmp.eq.s32.totalorder %s24, 1
    %p292 = por %p290, %p291
    %p293 = scmp.ne.s32.totalorder %s282, %s283
    %p294 = scmp.eq.s32.totalorder %s24, 0
    %p295 = por %p293, %p294
    %p296 = scmp.ne.s32.totalorder %s282, %s283
    %p297 = scmp.eq.s32.totalorder %s25, 1
    %p298 = por %p296, %p297
    %p300 = scmp.ne.s32.totalorder %s283, %s299
    %p301 = scmp.eq.s32.totalorder %s25, 0
    %p302 = por %p300, %p301
    %s303 = ssub.s32 %s19, %s26
    %p304 = scmp.eq.s32.totalorder %s303, 0
    %s306 = sadd.s32 %s305, 1
    %s307 = scalar_select %p304, %s305, %s306
    %p310 = pneg %p304
    %p311 = scmp.eq.s32.totalorder %s19, 1
    %p312 = por %p310, %p311
    %p313 = scmp.ne.s32.totalorder %s305, %s308
    %p314 = scmp.eq.s32.totalorder %s19, 0
    %p315 = por %p313, %p314
    %p316 = scmp.ne.s32.totalorder %s305, %s308
    %p317 = scmp.eq.s32.totalorder %s24, 1
    %p318 = por %p316, %p317
    %p319 = scmp.ne.s32.totalorder %s308, %s309
    %p320 = scmp.eq.s32.totalorder %s24, 0
    %p321 = por %p319, %p320
    %p322 = scmp.ne.s32.totalorder %s308, %s309
    %p323 = scmp.eq.s32.totalorder %s25, 1
    %p324 = por %p322, %p323
    %p326 = scmp.ne.s32.totalorder %s309, %s325
    %p327 = scmp.eq.s32.totalorder %s25, 0
    %p328 = por %p326, %p327
    %s329 = ssub.s32 %s19, %s26
    %p330 = scmp.eq.s32.totalorder %s329, 0
    %s332 = sadd.s32 %s331, 1
    %s333 = scalar_select %p330, %s331, %s332
    %p336 = pneg %p330
    %p337 = scmp.eq.s32.totalorder %s19, 1
    %p338 = por %p336, %p337
    %p339 = scmp.ne.s32.totalorder %s331, %s334
    %p340 = scmp.eq.s32.totalorder %s19, 0
    %p341 = por %p339, %p340
    %p342 = scmp.ne.s32.totalorder %s331, %s334
    %p343 = scmp.eq.s32.totalorder %s24, 1
    %p344 = por %p342, %p343
    %p345 = scmp.ne.s32.totalorder %s334, %s335
    %p346 = scmp.eq.s32.totalorder %s24, 0
    %p347 = por %p345, %p346
    %p348 = scmp.ne.s32.totalorder %s334, %s335
    %p349 = scmp.eq.s32.totalorder %s25, 1
    %p350 = por %p348, %p349
    %p352 = scmp.ne.s32.totalorder %s335, %s351
    %p353 = scmp.eq.s32.totalorder %s25, 0
    %p354 = por %p352, %p353
    %s356 = sadd.s32 %s355, 1
    %p359 = scmp.eq.s32.totalorder %s19, 1
    %p360 = scmp.ne.s32.totalorder %s355, %s357
    %p361 = scmp.eq.s32.totalorder %s19, 0
    %p362 = por %p360, %p361
    %p363 = scmp.ne.s32.totalorder %s355, %s357
    %p364 = scmp.eq.s32.totalorder %s24, 1
    %p365 = por %p363, %p364
    %p366 = scmp.ne.s32.totalorder %s357, %s358
    %p367 = scmp.eq.s32.totalorder %s24, 0
    %p368 = por %p366, %p367
    %p369 = scmp.ne.s32.totalorder %s357, %s358
    %p370 = scmp.eq.s32.totalorder %s25, 1
    %p371 = por %p369, %p370
    %p373 = scmp.ne.s32.totalorder %s358, %s372
    %p374 = scmp.eq.s32.totalorder %s25, 0
    %p375 = por %p373, %p374
    %p376 = scmp.le.s32.totalorder 1, %s19
    %p377 = scmp.lt.s32.totalorder %s19, 3
    %p378 = pnand %p376, %p377
    %p379 = pneg %p378
    // Predicated region
    $region9: #{vit3d_forward.4} parent=5 // pred_check
      _
    $region10: #{vit3d_forward.4} parent=5 // pred_check_branch
      %381 = sbr.rel (%p378) target = $region12
    $region11: #{vit3d_forward.4} parent=5 // pred_region
      %s382 = ssub.s32 %s19, 1
      // Predicated region
      $region13: #{vit3d_forward.4} parent=11 // pred_check
        %p383 = pneg %p40
      $region14: #{vit3d_forward.4} parent=11 // pred_check_branch
        %385 = sbr.rel (%p383) target = $region16
      $region15: #{vit3d_forward.4} parent=11 // pred_region
        _
      $region16: #{vit3d_forward.4} parent=11 // pred_fallthru
        _
      // Predicated region
      $region17: #{vit3d_forward.4} parent=11 // pred_check
        %p386 = pneg %p61
      $region18: #{vit3d_forward.4} parent=11 // pred_check_branch
        %388 = sbr.rel (%p386) target = $region20
      $region19: #{vit3d_forward.4} parent=11 // pred_region
        _
      $region20: #{vit3d_forward.4} parent=11 // pred_fallthru
        _
    $region12: #{vit3d_forward.4} parent=5 // pred_fallthru
      _
    %p389 = scmp.lt.s32.totalorder %s19, 2
    // Predicated region
    $region21: #{vit3d_forward.4} parent=5 // pred_check
      %p390 = pneg %p389
    $region22: #{vit3d_forward.4} parent=5 // pred_check_branch
      %392 = sbr.rel (%p390) target = $region24
    $region23: #{vit3d_forward.4} parent=5 // pred_region
      // Predicated region
      $region25: #{vit3d_forward.4} parent=23 // pred_check
        %p393 = pneg %p81
      $region26: #{vit3d_forward.4} parent=23 // pred_check_branch
        %395 = sbr.rel (%p393) target = $region28
      $region27: #{vit3d_forward.4} parent=23 // pred_region
        %p396 = scmp.lt.s32.totalorder %s19, 1
        %s397 = scalar_select %p396, %s19, 1
        %s398 = smul.addr %s397, 2
        %s399 = scalar_lea.vmem %s2, %s398
      $region28: #{vit3d_forward.4} parent=23 // pred_fallthru
        _
      // Predicated region
      $region29: #{vit3d_forward.4} parent=23 // pred_check
        %p400 = pneg %p107
      $region30: #{vit3d_forward.4} parent=23 // pred_check_branch
        %402 = sbr.rel (%p400) target = $region32
      $region31: #{vit3d_forward.4} parent=23 // pred_region
        %p403 = scmp.lt.s32.totalorder %s19, 1
        %s404 = scalar_select %p403, %s19, 1
        %s405 = smul.addr %s404, 2
        %s406 = scalar_lea.vmem %s3, %s405
      $region32: #{vit3d_forward.4} parent=23 // pred_fallthru
        _
      // Predicated region
      $region33: #{vit3d_forward.4} parent=23 // pred_check
        %p407 = pneg %p133
      $region34: #{vit3d_forward.4} parent=23 // pred_check_branch
        %409 = sbr.rel (%p407) target = $region36
      $region35: #{vit3d_forward.4} parent=23 // pred_region
        %p410 = scmp.lt.s32.totalorder %s19, 1
        %s411 = scalar_select %p410, %s19, 1
        %s412 = smul.addr %s411, 192
        %s413 = smul.addr %s412, 4
        %s414 = scalar_lea.vmem %s4, %s413
      $region36: #{vit3d_forward.4} parent=23 // pred_fallthru
        _
      // Predicated region
      $region37: #{vit3d_forward.4} parent=23 // pred_check
        %p415 = pneg %p159
      $region38: #{vit3d_forward.4} parent=23 // pred_check_branch
        %417 = sbr.rel (%p415) target = $region40
      $region39: #{vit3d_forward.4} parent=23 // pred_region
        %p418 = scmp.lt.s32.totalorder %s19, 1
        %s419 = scalar_select %p418, %s19, 1
        %s420 = smul.addr %s419, 64
        %s421 = smul.addr %s420, 4
        %s422 = scalar_lea.vmem %s5, %s421
      $region40: #{vit3d_forward.4} parent=23 // pred_fallthru
        _
      // Predicated region
      $region41: #{vit3d_forward.4} parent=23 // pred_check
        %p423 = pneg %p185
      $region42: #{vit3d_forward.4} parent=23 // pred_check_branch
        %425 = sbr.rel (%p423) target = $region44
      $region43: #{vit3d_forward.4} parent=23 // pred_region
        %p426 = scmp.lt.s32.totalorder %s19, 1
        %s427 = scalar_select %p426, %s19, 1
        %s428 = smul.addr %s427, 2
        %s429 = scalar_lea.vmem %s6, %s428
      $region44: #{vit3d_forward.4} parent=23 // pred_fallthru
        _
      // Predicated region
      $region45: #{vit3d_forward.4} parent=23 // pred_check
        %p430 = pneg %p211
      $region46: #{vit3d_forward.4} parent=23 // pred_check_branch
        %432 = sbr.rel (%p430) target = $region48
      $region47: #{vit3d_forward.4} parent=23 // pred_region
        %p433 = scmp.lt.s32.totalorder %s19, 1
        %s434 = scalar_select %p433, %s19, 1
        %s435 = smul.addr %s434, 2
        %s436 = scalar_lea.vmem %s7, %s435
      $region48: #{vit3d_forward.4} parent=23 // pred_fallthru
        _
      // Predicated region
      $region49: #{vit3d_forward.4} parent=23 // pred_check
        %p437 = pneg %p237
      $region50: #{vit3d_forward.4} parent=23 // pred_check_branch
        %439 = sbr.rel (%p437) target = $region52
      $region51: #{vit3d_forward.4} parent=23 // pred_region
        %p440 = scmp.lt.s32.totalorder %s19, 1
        %s441 = scalar_select %p440, %s19, 1
        %s442 = smul.addr %s441, 2
        %s443 = scalar_lea.vmem %s8, %s442
      $region52: #{vit3d_forward.4} parent=23 // pred_fallthru
        _
      // Predicated region
      $region53: #{vit3d_forward.4} parent=23 // pred_check
        %p444 = pneg %p263
      $region54: #{vit3d_forward.4} parent=23 // pred_check_branch
        %446 = sbr.rel (%p444) target = $region56
      $region55: #{vit3d_forward.4} parent=23 // pred_region
        %p447 = scmp.lt.s32.totalorder %s19, 1
        %s448 = scalar_select %p447, %s19, 1
        %s449 = smul.addr %s448, 128
        %s450 = smul.addr %s449, 4
        %s451 = scalar_lea.vmem %s9, %s450
      $region56: #{vit3d_forward.4} parent=23 // pred_fallthru
        _
      // Predicated region
      $region57: #{vit3d_forward.4} parent=23 // pred_check
        %p452 = pneg %p289
      $region58: #{vit3d_forward.4} parent=23 // pred_check_branch
        %454 = sbr.rel (%p452) target = $region60
      $region59: #{vit3d_forward.4} parent=23 // pred_region
        %p455 = scmp.lt.s32.totalorder %s19, 1
        %s456 = scalar_select %p455, %s19, 1
        %s457 = smul.addr %s456, 4
        %s458 = scalar_lea.vmem %s10, %s457
      $region60: #{vit3d_forward.4} parent=23 // pred_fallthru
        _
      // Predicated region
      $region61: #{vit3d_forward.4} parent=23 // pred_check
        %p459 = pneg %p315
      $region62: #{vit3d_forward.4} parent=23 // pred_check_branch
        %461 = sbr.rel (%p459) target = $region64
      $region63: #{vit3d_forward.4} parent=23 // pred_region
        %p462 = scmp.lt.s32.totalorder %s19, 1
        %s463 = scalar_select %p462, %s19, 1
        %s464 = smul.addr %s463, 128
        %s465 = smul.addr %s464, 4
        %s466 = scalar_lea.vmem %s11, %s465
      $region64: #{vit3d_forward.4} parent=23 // pred_fallthru
        _
      // Predicated region
      $region65: #{vit3d_forward.4} parent=23 // pred_check
        %p467 = pneg %p341
      $region66: #{vit3d_forward.4} parent=23 // pred_check_branch
        %469 = sbr.rel (%p467) target = $region68
      $region67: #{vit3d_forward.4} parent=23 // pred_region
        %p470 = scmp.lt.s32.totalorder %s19, 1
        %s471 = scalar_select %p470, %s19, 1
        %s472 = smul.addr %s471, 2
        %s473 = scalar_lea.vmem %s12, %s472
      $region68: #{vit3d_forward.4} parent=23 // pred_fallthru
        _
    $region24: #{vit3d_forward.4} parent=5 // pred_fallthru
      _
    %p474 = scmp.le.s32.totalorder 1, %s19
    %p475 = scmp.lt.s32.totalorder %s19, 3
    %p476 = pnand %p474, %p475
    %p477 = pneg %p476
    // Predicated region
    $region69: #{vit3d_forward.4} parent=5 // pred_check
      _
    $region70: #{vit3d_forward.4} parent=5 // pred_check_branch
      %479 = sbr.rel (%p476) target = $region72
    $region71: #{vit3d_forward.4} parent=5 // pred_region
      %s480 = ssub.s32 %s19, 1
      %p481 = pneg %p40
      %p482 = pneg %p37
      %p483 = pneg %p61
      %p484 = pneg %p58
      %p485 = scmp.lt.s32.totalorder %s24, 1
      %s486 = scalar_select %p485, %s24, 1
      %s487 = smul.addr %s486, 2
      %s488 = scalar_lea.vmem %s2, %s487
      %p489 = pneg %p87
      %p490 = pneg %p84
      %p491 = scmp.lt.s32.totalorder %s24, 1
      %s492 = scalar_select %p491, %s24, 1
      %s493 = smul.addr %s492, 2
      %s494 = scalar_lea.vmem %s3, %s493
      %p495 = pneg %p113
      %p496 = pneg %p110
      %p497 = scmp.lt.s32.totalorder %s24, 1
      %s498 = scalar_select %p497, %s24, 1
      %s499 = smul.addr %s498, 192
      %s500 = smul.addr %s499, 4
      %s501 = scalar_lea.vmem %s4, %s500
      %p502 = pneg %p139
      %p503 = pneg %p136
      %p504 = scmp.lt.s32.totalorder %s24, 1
      %s505 = scalar_select %p504, %s24, 1
      %s506 = smul.addr %s505, 64
      %s507 = smul.addr %s506, 4
      %s508 = scalar_lea.vmem %s5, %s507
      %p509 = pneg %p165
      %p510 = pneg %p162
      %p511 = scmp.lt.s32.totalorder %s24, 1
      %s512 = scalar_select %p511, %s24, 1
      %s513 = smul.addr %s512, 2
      %s514 = scalar_lea.vmem %s6, %s513
      %p515 = pneg %p191
      %p516 = pneg %p188
      %p517 = scmp.lt.s32.totalorder %s24, 1
      %s518 = scalar_select %p517, %s24, 1
      %s519 = smul.addr %s518, 2
      %s520 = scalar_lea.vmem %s7, %s519
      %p521 = pneg %p217
      %p522 = pneg %p214
      %p523 = scmp.lt.s32.totalorder %s24, 1
      %s524 = scalar_select %p523, %s24, 1
      %s525 = smul.addr %s524, 2
      %s526 = scalar_lea.vmem %s8, %s525
      %p527 = pneg %p243
      %p528 = pneg %p240
      %p529 = scmp.lt.s32.totalorder %s24, 1
      %s530 = scalar_select %p529, %s24, 1
      %s531 = smul.addr %s530, 128
      %s532 = smul.addr %s531, 4
      %s533 = scalar_lea.vmem %s9, %s532
      %p534 = pneg %p269
      %p535 = pneg %p266
      %p536 = scmp.lt.s32.totalorder %s24, 1
      %s537 = scalar_select %p536, %s24, 1
      %s538 = smul.addr %s537, 4
      %s539 = scalar_lea.vmem %s10, %s538
      %p540 = pneg %p295
      %p541 = pneg %p292
      %p542 = scmp.lt.s32.totalorder %s24, 1
      %s543 = scalar_select %p542, %s24, 1
      %s544 = smul.addr %s543, 128
      %s545 = smul.addr %s544, 4
      %s546 = scalar_lea.vmem %s11, %s545
      %p547 = pneg %p321
      %p548 = pneg %p318
      %p549 = scmp.lt.s32.totalorder %s24, 1
      %s550 = scalar_select %p549, %s24, 1
      %s551 = smul.addr %s550, 2
      %s552 = scalar_lea.vmem %s12, %s551
      %p553 = pneg %p347
      %p554 = pneg %p344
      %p555 = pneg %p368
      %p556 = pneg %p365
      %p557 = scmp.lt.s32.totalorder %s24, 1
      %s558 = scalar_select %p557, %s24, 1
      %s559 = smul.addr %s558, 2
      %s560 = scalar_lea.vmem %s2, %s559
      %p561 = scmp.lt.s32.totalorder %s24, 1
      %s562 = scalar_select %p561, %s24, 1
      %s563 = smul.addr %s562, 2
      %s564 = scalar_lea.vmem %s3, %s563
      %p565 = scmp.lt.s32.totalorder %s24, 1
      %s566 = scalar_select %p565, %s24, 1
      %s567 = smul.addr %s566, 192
      %s568 = smul.addr %s567, 4
      %s569 = scalar_lea.vmem %s4, %s568
      %p570 = scmp.lt.s32.totalorder %s24, 1
      %s571 = scalar_select %p570, %s24, 1
      %s572 = smul.addr %s571, 64
      %s573 = smul.addr %s572, 4
      %s574 = scalar_lea.vmem %s5, %s573
      %p575 = scmp.lt.s32.totalorder %s24, 1
      %s576 = scalar_select %p575, %s24, 1
      %s577 = smul.addr %s576, 2
      %s578 = scalar_lea.vmem %s6, %s577
      %p579 = scmp.lt.s32.totalorder %s24, 1
      %s580 = scalar_select %p579, %s24, 1
      %s581 = smul.addr %s580, 2
      %s582 = scalar_lea.vmem %s7, %s581
      %p583 = scmp.lt.s32.totalorder %s24, 1
      %s584 = scalar_select %p583, %s24, 1
      %s585 = smul.addr %s584, 2
      %s586 = scalar_lea.vmem %s8, %s585
      %p587 = scmp.lt.s32.totalorder %s24, 1
      %s588 = scalar_select %p587, %s24, 1
      %s589 = smul.addr %s588, 128
      %s590 = smul.addr %s589, 4
      %s591 = scalar_lea.vmem %s9, %s590
      %p592 = scmp.lt.s32.totalorder %s24, 1
      %s593 = scalar_select %p592, %s24, 1
      %s594 = smul.addr %s593, 4
      %s595 = scalar_lea.vmem %s10, %s594
      %p596 = scmp.lt.s32.totalorder %s24, 1
      %s597 = scalar_select %p596, %s24, 1
      %s598 = smul.addr %s597, 128
      %s599 = smul.addr %s598, 4
      %s600 = scalar_lea.vmem %s11, %s599
      %p601 = scmp.lt.s32.totalorder %s24, 1
      %s602 = scalar_select %p601, %s24, 1
      %s603 = smul.addr %s602, 2
      %s604 = scalar_lea.vmem %s12, %s603
      %p606 = scmp.eq.s32.totalorder %s24, 0
      // Predicated region
      $region73: #{vit3d_forward.4} parent=71 // pred_check
        %p607 = pneg %p606
      $region74: #{vit3d_forward.4} parent=71 // pred_check_branch
        %609 = sbr.rel (%p607) target = $region76
      $region75: #{vit3d_forward.4} parent=71 // pred_region
        %v610 = vld [vmem:[%s0] sm:$0xff]
        %v611 = vld [vmem:[%s0 + $0x8] sm:$0xff]
        %v612 = vld [vmem:[%s0 + $0x10] sm:$0xff]
        %v613 = vld [vmem:[%s0 + $0x18] sm:$0xff]
        %v614 = vld [vmem:[%s0 + $0x20] sm:$0x3]
        %v615 = vld [vmem:[%s0 + $0x28] sm:$0x3]
        %616 = vst [vmem:[#allocation2] sm:$0xff] %v610
        %617 = vst [vmem:[#allocation2 + $0x8] sm:$0xff] %v611
        %618 = vst [vmem:[#allocation2 + $0x10] sm:$0xff] %v612
        %619 = vst [vmem:[#allocation2 + $0x18] sm:$0xff] %v613
        %620 = vst [vmem:[#allocation2 + $0x20] sm:$0x3] %v614
        %621 = vst [vmem:[#allocation2 + $0x28] sm:$0x3] %v615
      $region76: #{vit3d_forward.4} parent=71 // pred_fallthru
        _
      %v622 = vld [vmem:[#allocation2] sm:$0xff]
      %v623 = vld [vmem:[#allocation2 + $0x8] sm:$0xff]
      %v624 = vld [vmem:[#allocation2 + $0x10] sm:$0xff]
      %v625 = vld [vmem:[#allocation2 + $0x18] sm:$0xff]
      %v626 = vld [vmem:[#allocation2 + $0x20] sm:$0x3]
      %v627 = vld [vmem:[#allocation2 + $0x28] sm:$0x3]
      %v628 = vld [vmem:[%s1] sm:$0xff]
      %v629 = vld [vmem:[%s1 + $0x8] sm:$0xff]
      %v630 = vld [vmem:[%s1 + $0x10] sm:$0x3]
      %v631 = vld [vmem:[%s560] sm:$0x3]
      %v632 = vld [vmem:[%s564] sm:$0x3]
      %v633 = vadd.f32 %v622, %v623
      %634 = vadd.xlane.f32.xlu0 %v633
      %v635 = vpop.xlane.xlu0 %634
      %v636 = vadd.f32 %v624, %v625
      %637 = vadd.xlane.f32.xlu0 %v636
      %v638 = vpop.xlane.xlu0 %637
      %vm639 = vcmask 1041408
      %v640 = vsel %vm639, %v626, 0.0
      %v641 = vsel %vm639, %v627, 0.0
      %v642 = vadd.f32 %v640, %v641
      %643 = vadd.xlane.f32.xlu0 %v642
      %v644 = vpop.xlane.xlu0 %643
      %v645 = vrcp.pop 256.0
      %v646 = vmul.f32 %v635, %v645
      %v647 = vmul.f32 %v638, %v645
      %v648 = vmul.f32 %v644, %v645
      %v649 = vsub.f32 %v622, %v646
      %v650 = vsub.f32 %v623, %v646
      %v651 = vsub.f32 %v624, %v647
      %v652 = vsub.f32 %v625, %v647
      %v653 = vsub.f32 %v626, %v648
      %v654 = vsub.f32 %v627, %v648
      %v655 = vmul.f32 %v649, %v649
      %v656 = vmul.f32 %v650, %v650
      %v657 = vmul.f32 %v651, %v651
      %v658 = vmul.f32 %v652, %v652
      %v659 = vmul.f32 %v653, %v653
      %v660 = vmul.f32 %v654, %v654
      %v661 = vadd.f32 %v655, %v656
      %662 = vadd.xlane.f32.xlu0 %v661
      %v663 = vpop.xlane.xlu0 %662
      %v664 = vadd.f32 %v657, %v658
      %665 = vadd.xlane.f32.xlu0 %v664
      %v666 = vpop.xlane.xlu0 %665
      %v667 = vsel %vm639, %v659, 0.0
      %v668 = vsel %vm639, %v660, 0.0
      %v669 = vadd.f32 %v667, %v668
      %670 = vadd.xlane.f32.xlu0 %v669
      %v671 = vpop.xlane.xlu0 %670
      %v672 = vmul.f32 %v663, %v645
      %v673 = vmul.f32 %v666, %v645
      %v674 = vmul.f32 %v671, %v645
      %v675 = vadd.f32 %v672, 1e-05
      %v676 = vadd.f32 %v673, 1e-05
      %v677 = vadd.f32 %v674, 1e-05
      %v678 = vrsqrt.pop %v675
      %v679 = vrsqrt.pop %v676
      %v680 = vrsqrt.pop %v677
      %v681 = vmul.f32 %v649, %v678
      %v682 = vmul.f32 %v650, %v678
      %v683 = vmul.f32 %v651, %v679
      %v684 = vmul.f32 %v652, %v679
      %v685 = vmul.f32 %v653, %v680
      %v686 = vmul.f32 %v654, %v680
      %v688 = vlaneseq
      %v689 = vshrl.u32 %v688, 7
      %v690 = vsub.s32 0, %v689
      %v691 = vrot.slane %v631, %v690
      %v692 = vlaneseq
      %v693 = vshrl.u32 %v692, 7
      %v694 = vsub.s32 1, %v693
      %v695 = vrot.slane %v631, %v694
      %v698 = vmul.f32 %v681, %v691
      %v699 = vmul.f32 %v682, %v695
      %v700 = vmul.f32 %v683, %v691
      %v701 = vmul.f32 %v684, %v695
      %v702 = vmul.f32 %v685, %v691
      %v703 = vmul.f32 %v686, %v695
      %v705 = vlaneseq
      %v706 = vshrl.u32 %v705, 7
      %v707 = vsub.s32 0, %v706
      %v708 = vrot.slane %v632, %v707
      %v709 = vlaneseq
      %v710 = vshrl.u32 %v709, 7
      %v711 = vsub.s32 1, %v710
      %v712 = vrot.slane %v632, %v711
      %v715 = vadd.f32 %v698, %v708
      %v716 = vadd.f32 %v699, %v712
      %v717 = vadd.f32 %v700, %v708
      %v718 = vadd.f32 %v701, %v712
      %v719 = vadd.f32 %v702, %v708
      %v720 = vadd.f32 %v703, %v712
      %v721 = vpack.c.bf16 %v717, %v715
      %v722 = vpack.c.bf16 %v718, %v716
      %v723 = vpack.c.bf16 %v719, %v719
      %v724 = vpack.c.bf16 %v720, %v720
      %v725 = vld [vmem:[%s569] sm:$0xff]
      %v726 = vld [vmem:[%s569 + $0x8] sm:$0xff]
      %v727 = vld [vmem:[%s569 + $0x10] sm:$0xff]
      %v728 = vld [vmem:[%s569 + $0x18] sm:$0xff]
      %v729 = vld [vmem:[%s569 + $0x20] sm:$0xff]
      %v730 = vld [vmem:[%s569 + $0x28] sm:$0xff]
      %v731 = vld [vmem:[%s569 + $0x30] sm:$0xff]
      %v732 = vld [vmem:[%s569 + $0x38] sm:$0xff]
      %v733 = vld [vmem:[%s569 + $0x40] sm:$0xff]
      %v734 = vld [vmem:[%s569 + $0x48] sm:$0xff]
      %v735 = vld [vmem:[%s569 + $0x50] sm:$0xff]
      %v736 = vld [vmem:[%s569 + $0x58] sm:$0xff]
      %v737 = vld [vmem:[%s569 + $0x60] sm:$0xff]
      %v738 = vld [vmem:[%s569 + $0x68] sm:$0xff]
      %v739 = vld [vmem:[%s569 + $0x70] sm:$0xff]
      %v740 = vld [vmem:[%s569 + $0x78] sm:$0xff]
      %v741 = vld [vmem:[%s569 + $0x80] sm:$0xff]
      %v742 = vld [vmem:[%s569 + $0x88] sm:$0xff]
      %v743 = vld [vmem:[%s569 + $0x90] sm:$0xff]
      %v744 = vld [vmem:[%s569 + $0x98] sm:$0xff]
      %v745 = vld [vmem:[%s569 + $0xa0] sm:$0xff]
      %v746 = vld [vmem:[%s569 + $0xa8] sm:$0xff]
      %v747 = vld [vmem:[%s569 + $0xb0] sm:$0xff]
      %v748 = vld [vmem:[%s569 + $0xb8] sm:$0xff]
      %v749 = vld [vmem:[%s569 + $0xc0] sm:$0xff]
      %v750 = vld [vmem:[%s569 + $0xc8] sm:$0xff]
      %v751 = vld [vmem:[%s569 + $0xd0] sm:$0xff]
      %v752 = vld [vmem:[%s569 + $0xd8] sm:$0xff]
      %v753 = vld [vmem:[%s569 + $0xe0] sm:$0xff]
      %v754 = vld [vmem:[%s569 + $0xe8] sm:$0xff]
      %v755 = vld [vmem:[%s569 + $0xf0] sm:$0xff]
      %v756 = vld [vmem:[%s569 + $0xf8] sm:$0xff]
      %v757 = vld [vmem:[%s569 + $0x100] sm:$0xff]
      %v758 = vld [vmem:[%s569 + $0x108] sm:$0xff]
      %v759 = vld [vmem:[%s569 + $0x110] sm:$0xff]
      %v760 = vld [vmem:[%s569 + $0x118] sm:$0xff]
      %v761 = vld [vmem:[%s569 + $0x120] sm:$0xff]
      %v762 = vld [vmem:[%s569 + $0x128] sm:$0xff]
      %v763 = vld [vmem:[%s569 + $0x130] sm:$0xff]
      %v764 = vld [vmem:[%s569 + $0x138] sm:$0xff]
      %v765 = vld [vmem:[%s569 + $0x140] sm:$0xff]
      %v766 = vld [vmem:[%s569 + $0x148] sm:$0xff]
      %v767 = vld [vmem:[%s569 + $0x150] sm:$0xff]
      %v768 = vld [vmem:[%s569 + $0x158] sm:$0xff]
      %v769 = vld [vmem:[%s569 + $0x160] sm:$0xff]
      %v770 = vld [vmem:[%s569 + $0x168] sm:$0xff]
      %v771 = vld [vmem:[%s569 + $0x170] sm:$0xff]
      %v772 = vld [vmem:[%s569 + $0x178] sm:$0xff]
      %v773 = vld [vmem:[%s569 + $0x180] sm:$0xff]
      %v774 = vld [vmem:[%s569 + $0x188] sm:$0xff]
      %v775 = vld [vmem:[%s569 + $0x190] sm:$0xff]
      %v776 = vld [vmem:[%s569 + $0x198] sm:$0xff]
      %v777 = vld [vmem:[%s569 + $0x1a0] sm:$0xff]
      %v778 = vld [vmem:[%s569 + $0x1a8] sm:$0xff]
      %v779 = vld [vmem:[%s569 + $0x1b0] sm:$0xff]
      %v780 = vld [vmem:[%s569 + $0x1b8] sm:$0xff]
      %v781 = vld [vmem:[%s569 + $0x1c0] sm:$0xff]
      %v782 = vld [vmem:[%s569 + $0x1c8] sm:$0xff]
      %v783 = vld [vmem:[%s569 + $0x1d0] sm:$0xff]
      %v784 = vld [vmem:[%s569 + $0x1d8] sm:$0xff]
      %v785 = vld [vmem:[%s569 + $0x1e0] sm:$0xff]
      %v786 = vld [vmem:[%s569 + $0x1e8] sm:$0xff]
      %v787 = vld [vmem:[%s569 + $0x1f0] sm:$0xff]
      %v788 = vld [vmem:[%s569 + $0x1f8] sm:$0xff]
      %v789 = vld [vmem:[%s569 + $0x200] sm:$0xff]
      %v790 = vld [vmem:[%s569 + $0x208] sm:$0xff]
      %v791 = vld [vmem:[%s569 + $0x210] sm:$0xff]
      %v792 = vld [vmem:[%s569 + $0x218] sm:$0xff]
      %v793 = vld [vmem:[%s569 + $0x220] sm:$0xff]
      %v794 = vld [vmem:[%s569 + $0x228] sm:$0xff]
      %v795 = vld [vmem:[%s569 + $0x230] sm:$0xff]
      %v796 = vld [vmem:[%s569 + $0x238] sm:$0xff]
      %v797 = vld [vmem:[%s569 + $0x240] sm:$0xff]
      %v798 = vld [vmem:[%s569 + $0x248] sm:$0xff]
      %v799 = vld [vmem:[%s569 + $0x250] sm:$0xff]
      %v800 = vld [vmem:[%s569 + $0x258] sm:$0xff]
      %v801 = vld [vmem:[%s569 + $0x260] sm:$0xff]
      %v802 = vld [vmem:[%s569 + $0x268] sm:$0xff]
      %v803 = vld [vmem:[%s569 + $0x270] sm:$0xff]
      %v804 = vld [vmem:[%s569 + $0x278] sm:$0xff]
      %v805 = vld [vmem:[%s569 + $0x280] sm:$0xff]
      %v806 = vld [vmem:[%s569 + $0x288] sm:$0xff]
      %v807 = vld [vmem:[%s569 + $0x290] sm:$0xff]
      %v808 = vld [vmem:[%s569 + $0x298] sm:$0xff]
      %v809 = vld [vmem:[%s569 + $0x2a0] sm:$0xff]
      %v810 = vld [vmem:[%s569 + $0x2a8] sm:$0xff]
      %v811 = vld [vmem:[%s569 + $0x2b0] sm:$0xff]
      %v812 = vld [vmem:[%s569 + $0x2b8] sm:$0xff]
      %v813 = vld [vmem:[%s569 + $0x2c0] sm:$0xff]
      %v814 = vld [vmem:[%s569 + $0x2c8] sm:$0xff]
      %v815 = vld [vmem:[%s569 + $0x2d0] sm:$0xff]
      %v816 = vld [vmem:[%s569 + $0x2d8] sm:$0xff]
      %v817 = vld [vmem:[%s569 + $0x2e0] sm:$0xff]
      %v818 = vld [vmem:[%s569 + $0x2e8] sm:$0xff]
      %v819 = vld [vmem:[%s569 + $0x2f0] sm:$0xff]
      %v820 = vld [vmem:[%s569 + $0x2f8] sm:$0xff]
      %v917 = vunpack.c.l.b16 %v725
      %v918 = vunpack.c.h.b16 %v725
      %v919 = vunpack.c.l.b16 %v726
      %v920 = vunpack.c.h.b16 %v726
      %v921 = vunpack.c.l.b16 %v727
      %v922 = vunpack.c.h.b16 %v727
      %v923 = vunpack.c.l.b16 %v728
      %v924 = vunpack.c.h.b16 %v728
      %v925 = vunpack.c.l.b16 %v729
      %v926 = vunpack.c.h.b16 %v729
      %v927 = vunpack.c.l.b16 %v730
      %v928 = vunpack.c.h.b16 %v730
      %v929 = vunpack.c.l.b16 %v731
      %v930 = vunpack.c.h.b16 %v731
      %v931 = vunpack.c.l.b16 %v732
      %v932 = vunpack.c.h.b16 %v732
      %v933 = vunpack.c.l.b16 %v733
      %v934 = vunpack.c.h.b16 %v733
      %v935 = vunpack.c.l.b16 %v734
      %v936 = vunpack.c.h.b16 %v734
      %v937 = vunpack.c.l.b16 %v735
      %v938 = vunpack.c.h.b16 %v735
      %v939 = vunpack.c.l.b16 %v736
      %v940 = vunpack.c.h.b16 %v736
      %v941 = vunpack.c.l.b16 %v737
      %v942 = vunpack.c.h.b16 %v737
      %v943 = vunpack.c.l.b16 %v738
      %v944 = vunpack.c.h.b16 %v738
      %v945 = vunpack.c.l.b16 %v739
      %v946 = vunpack.c.h.b16 %v739
      %v947 = vunpack.c.l.b16 %v740
      %v948 = vunpack.c.h.b16 %v740
      %v949 = vunpack.c.l.b16 %v741
      %v950 = vunpack.c.h.b16 %v741
      %v951 = vunpack.c.l.b16 %v742
      %v952 = vunpack.c.h.b16 %v742
      %v953 = vunpack.c.l.b16 %v743
      %v954 = vunpack.c.h.b16 %v743
      %v955 = vunpack.c.l.b16 %v744
      %v956 = vunpack.c.h.b16 %v744
      %v957 = vunpack.c.l.b16 %v745
      %v958 = vunpack.c.h.b16 %v745
      %v959 = vunpack.c.l.b16 %v746
      %v960 = vunpack.c.h.b16 %v746
      %v961 = vunpack.c.l.b16 %v747
      %v962 = vunpack.c.h.b16 %v747
      %v963 = vunpack.c.l.b16 %v748
      %v964 = vunpack.c.h.b16 %v748
      %v965 = vunpack.c.l.b16 %v749
      %v966 = vunpack.c.h.b16 %v749
      %v967 = vunpack.c.l.b16 %v750
      %v968 = vunpack.c.h.b16 %v750
      %v969 = vunpack.c.l.b16 %v751
      %v970 = vunpack.c.h.b16 %v751
      %v971 = vunpack.c.l.b16 %v752
      %v972 = vunpack.c.h.b16 %v752
      %v973 = vunpack.c.l.b16 %v753
      %v974 = vunpack.c.h.b16 %v753
      %v975 = vunpack.c.l.b16 %v754
      %v976 = vunpack.c.h.b16 %v754
      %v977 = vunpack.c.l.b16 %v755
      %v978 = vunpack.c.h.b16 %v755
      %v979 = vunpack.c.l.b16 %v756
      %v980 = vunpack.c.h.b16 %v756
      %v981 = vunpack.c.l.b16 %v757
      %v982 = vunpack.c.h.b16 %v757
      %v983 = vunpack.c.l.b16 %v758
      %v984 = vunpack.c.h.b16 %v758
      %v985 = vunpack.c.l.b16 %v759
      %v986 = vunpack.c.h.b16 %v759
      %v987 = vunpack.c.l.b16 %v760
      %v988 = vunpack.c.h.b16 %v760
      %v989 = vunpack.c.l.b16 %v761
      %v990 = vunpack.c.h.b16 %v761
      %v991 = vunpack.c.l.b16 %v762
      %v992 = vunpack.c.h.b16 %v762
      %v993 = vunpack.c.l.b16 %v763
      %v994 = vunpack.c.h.b16 %v763
      %v995 = vunpack.c.l.b16 %v764
      %v996 = vunpack.c.h.b16 %v764
      %v997 = vunpack.c.l.b16 %v765
      %v998 = vunpack.c.h.b16 %v765
      %v999 = vunpack.c.l.b16 %v766
      %v1000 = vunpack.c.h.b16 %v766
      %v1001 = vunpack.c.l.b16 %v767
      %v1002 = vunpack.c.h.b16 %v767
      %v1003 = vunpack.c.l.b16 %v768
      %v1004 = vunpack.c.h.b16 %v768
      %v1005 = vunpack.c.l.b16 %v769
      %v1006 = vunpack.c.h.b16 %v769
      %v1007 = vunpack.c.l.b16 %v770
      %v1008 = vunpack.c.h.b16 %v770
      %v1009 = vunpack.c.l.b16 %v771
      %v1010 = vunpack.c.h.b16 %v771
      %v1011 = vunpack.c.l.b16 %v772
      %v1012 = vunpack.c.h.b16 %v772
      %v1013 = vunpack.c.l.b16 %v773
      %v1014 = vunpack.c.h.b16 %v773
      %v1015 = vunpack.c.l.b16 %v774
      %v1016 = vunpack.c.h.b16 %v774
      %v1017 = vunpack.c.l.b16 %v775
      %v1018 = vunpack.c.h.b16 %v775
      %v1019 = vunpack.c.l.b16 %v776
      %v1020 = vunpack.c.h.b16 %v776
      %v1021 = vunpack.c.l.b16 %v777
      %v1022 = vunpack.c.h.b16 %v777
      %v1023 = vunpack.c.l.b16 %v778
      %v1024 = vunpack.c.h.b16 %v778
      %v1025 = vunpack.c.l.b16 %v779
      %v1026 = vunpack.c.h.b16 %v779
      %v1027 = vunpack.c.l.b16 %v780
      %v1028 = vunpack.c.h.b16 %v780
      %v1029 = vunpack.c.l.b16 %v781
      %v1030 = vunpack.c.h.b16 %v781
      %v1031 = vunpack.c.l.b16 %v782
      %v1032 = vunpack.c.h.b16 %v782
      %v1033 = vunpack.c.l.b16 %v783
      %v1034 = vunpack.c.h.b16 %v783
      %v1035 = vunpack.c.l.b16 %v784
      %v1036 = vunpack.c.h.b16 %v784
      %v1037 = vunpack.c.l.b16 %v785
      %v1038 = vunpack.c.h.b16 %v785
      %v1039 = vunpack.c.l.b16 %v786
      %v1040 = vunpack.c.h.b16 %v786
      %v1041 = vunpack.c.l.b16 %v787
      %v1042 = vunpack.c.h.b16 %v787
      %v1043 = vunpack.c.l.b16 %v788
      %v1044 = vunpack.c.h.b16 %v788
      %v1045 = vunpack.c.l.b16 %v789
      %v1046 = vunpack.c.h.b16 %v789
      %v1047 = vunpack.c.l.b16 %v790
      %v1048 = vunpack.c.h.b16 %v790
      %v1049 = vunpack.c.l.b16 %v791
      %v1050 = vunpack.c.h.b16 %v791
      %v1051 = vunpack.c.l.b16 %v792
      %v1052 = vunpack.c.h.b16 %v792
      %v1053 = vunpack.c.l.b16 %v793
      %v1054 = vunpack.c.h.b16 %v793
      %v1055 = vunpack.c.l.b16 %v794
      %v1056 = vunpack.c.h.b16 %v794
      %v1057 = vunpack.c.l.b16 %v795
      %v1058 = vunpack.c.h.b16 %v795
      %v1059 = vunpack.c.l.b16 %v796
      %v1060 = vunpack.c.h.b16 %v796
      %v1061 = vunpack.c.l.b16 %v797
      %v1062 = vunpack.c.h.b16 %v797
      %v1063 = vunpack.c.l.b16 %v798
      %v1064 = vunpack.c.h.b16 %v798
      %v1065 = vunpack.c.l.b16 %v799
      %v1066 = vunpack.c.h.b16 %v799
      %v1067 = vunpack.c.l.b16 %v800
      %v1068 = vunpack.c.h.b16 %v800
      %v1069 = vunpack.c.l.b16 %v801
      %v1070 = vunpack.c.h.b16 %v801
      %v1071 = vunpack.c.l.b16 %v802
      %v1072 = vunpack.c.h.b16 %v802
      %v1073 = vunpack.c.l.b16 %v803
      %v1074 = vunpack.c.h.b16 %v803
      %v1075 = vunpack.c.l.b16 %v804
      %v1076 = vunpack.c.h.b16 %v804
      %v1077 = vunpack.c.l.b16 %v805
      %v1078 = vunpack.c.h.b16 %v805
      %v1079 = vunpack.c.l.b16 %v806
      %v1080 = vunpack.c.h.b16 %v806
      %v1081 = vunpack.c.l.b16 %v807
      %v1082 = vunpack.c.h.b16 %v807
      %v1083 = vunpack.c.l.b16 %v808
      %v1084 = vunpack.c.h.b16 %v808
      %v1085 = vunpack.c.l.b16 %v809
      %v1086 = vunpack.c.h.b16 %v809
      %v1087 = vunpack.c.l.b16 %v810
      %v1088 = vunpack.c.h.b16 %v810
      %v1089 = vunpack.c.l.b16 %v811
      %v1090 = vunpack.c.h.b16 %v811
      %v1091 = vunpack.c.l.b16 %v812
      %v1092 = vunpack.c.h.b16 %v812
      %v1093 = vunpack.c.l.b16 %v813
      %v1094 = vunpack.c.h.b16 %v813
      %v1095 = vunpack.c.l.b16 %v814
      %v1096 = vunpack.c.h.b16 %v814
      %v1097 = vunpack.c.l.b16 %v815
      %v1098 = vunpack.c.h.b16 %v815
      %v1099 = vunpack.c.l.b16 %v816
      %v1100 = vunpack.c.h.b16 %v816
      %v1101 = vunpack.c.l.b16 %v817
      %v1102 = vunpack.c.h.b16 %v817
      %v1103 = vunpack.c.l.b16 %v818
      %v1104 = vunpack.c.h.b16 %v818
      %v1105 = vunpack.c.l.b16 %v819
      %v1106 = vunpack.c.h.b16 %v819
      %v1107 = vunpack.c.l.b16 %v820
      %v1108 = vunpack.c.h.b16 %v820
      %v1109 = vpack.c.b16 %v923, %v917
      %v1110 = vpack.c.b16 %v924, %v918
      %v1111 = vpack.c.b16 %v925, %v919
      %v1112 = vpack.c.b16 %v926, %v920
      %v1113 = vpack.c.b16 %v927, %v921
      %v1114 = vpack.c.b16 %v928, %v922
      %v1115 = vpack.c.b16 %v935, %v929
      %v1116 = vpack.c.b16 %v936, %v930
      %v1117 = vpack.c.b16 %v937, %v931
      %v1118 = vpack.c.b16 %v938, %v932
      %v1119 = vpack.c.b16 %v939, %v933
      %v1120 = vpack.c.b16 %v940, %v934
      %v1121 = vpack.c.b16 %v947, %v941
      %v1122 = vpack.c.b16 %v948, %v942
      %v1123 = vpack.c.b16 %v949, %v943
      %v1124 = vpack.c.b16 %v950, %v944
      %v1125 = vpack.c.b16 %v951, %v945
      %v1126 = vpack.c.b16 %v952, %v946
      %v1127 = vpack.c.b16 %v959, %v953
      %v1128 = vpack.c.b16 %v960, %v954
      %v1129 = vpack.c.b16 %v961, %v955
      %v1130 = vpack.c.b16 %v962, %v956
      %v1131 = vpack.c.b16 %v963, %v957
      %v1132 = vpack.c.b16 %v964, %v958
      %v1133 = vpack.c.b16 %v971, %v965
      %v1134 = vpack.c.b16 %v972, %v966
      %v1135 = vpack.c.b16 %v973, %v967
      %v1136 = vpack.c.b16 %v974, %v968
      %v1137 = vpack.c.b16 %v975, %v969
      %v1138 = vpack.c.b16 %v976, %v970
      %v1139 = vpack.c.b16 %v983, %v977
      %v1140 = vpack.c.b16 %v984, %v978
      %v1141 = vpack.c.b16 %v985, %v979
      %v1142 = vpack.c.b16 %v986, %v980
      %v1143 = vpack.c.b16 %v987, %v981
      %v1144 = vpack.c.b16 %v988, %v982
      %v1145 = vpack.c.b16 %v995, %v989
      %v1146 = vpack.c.b16 %v996, %v990
      %v1147 = vpack.c.b16 %v997, %v991
      %v1148 = vpack.c.b16 %v998, %v992
      %v1149 = vpack.c.b16 %v999, %v993
      %v1150 = vpack.c.b16 %v1000, %v994
      %v1151 = vpack.c.b16 %v1007, %v1001
      %v1152 = vpack.c.b16 %v1008, %v1002
      %v1153 = vpack.c.b16 %v1009, %v1003
      %v1154 = vpack.c.b16 %v1010, %v1004
      %v1155 = vpack.c.b16 %v1011, %v1005
      %v1156 = vpack.c.b16 %v1012, %v1006
      %v1157 = vpack.c.b16 %v1019, %v1013
      %v1158 = vpack.c.b16 %v1020, %v1014
      %v1159 = vpack.c.b16 %v1021, %v1015
      %v1160 = vpack.c.b16 %v1022, %v1016
      %v1161 = vpack.c.b16 %v1023, %v1017
      %v1162 = vpack.c.b16 %v1024, %v1018
      %v1163 = vpack.c.b16 %v1031, %v1025
      %v1164 = vpack.c.b16 %v1032, %v1026
      %v1165 = vpack.c.b16 %v1033, %v1027
      %v1166 = vpack.c.b16 %v1034, %v1028
      %v1167 = vpack.c.b16 %v1035, %v1029
      %v1168 = vpack.c.b16 %v1036, %v1030
      %v1169 = vpack.c.b16 %v1043, %v1037
      %v1170 = vpack.c.b16 %v1044, %v1038
      %v1171 = vpack.c.b16 %v1045, %v1039
      %v1172 = vpack.c.b16 %v1046, %v1040
      %v1173 = vpack.c.b16 %v1047, %v1041
      %v1174 = vpack.c.b16 %v1048, %v1042
      %v1175 = vpack.c.b16 %v1055, %v1049
      %v1176 = vpack.c.b16 %v1056, %v1050
      %v1177 = vpack.c.b16 %v1057, %v1051
      %v1178 = vpack.c.b16 %v1058, %v1052
      %v1179 = vpack.c.b16 %v1059, %v1053
      %v1180 = vpack.c.b16 %v1060, %v1054
      %v1181 = vpack.c.b16 %v1067, %v1061
      %v1182 = vpack.c.b16 %v1068, %v1062
      %v1183 = vpack.c.b16 %v1069, %v1063
      %v1184 = vpack.c.b16 %v1070, %v1064
      %v1185 = vpack.c.b16 %v1071, %v1065
      %v1186 = vpack.c.b16 %v1072, %v1066
      %v1187 = vpack.c.b16 %v1079, %v1073
      %v1188 = vpack.c.b16 %v1080, %v1074
      %v1189 = vpack.c.b16 %v1081, %v1075
      %v1190 = vpack.c.b16 %v1082, %v1076
      %v1191 = vpack.c.b16 %v1083, %v1077
      %v1192 = vpack.c.b16 %v1084, %v1078
      %v1193 = vpack.c.b16 %v1091, %v1085
      %v1194 = vpack.c.b16 %v1092, %v1086
      %v1195 = vpack.c.b16 %v1093, %v1087
      %v1196 = vpack.c.b16 %v1094, %v1088
      %v1197 = vpack.c.b16 %v1095, %v1089
      %v1198 = vpack.c.b16 %v1096, %v1090
      %v1199 = vpack.c.b16 %v1103, %v1097
      %v1200 = vpack.c.b16 %v1104, %v1098
      %v1201 = vpack.c.b16 %v1105, %v1099
      %v1202 = vpack.c.b16 %v1106, %v1100
      %v1203 = vpack.c.b16 %v1107, %v1101
      %v1204 = vpack.c.b16 %v1108, %v1102
      %1301 = vmatprep.subr.bf16.mxu0 %v1110
      %1302 = vmatpush1.bf16.msra.mxu0 %v1109
      %1303 = vmatprep.subr.bf16.mxu0 %v1116
      %1304 = vmatpush1.bf16.msra.mxu0 %v1115
      %1305 = vmatprep.subr.bf16.mxu0 %v1122
      %1306 = vmatpush1.bf16.msra.mxu0 %v1121
      %1307 = vmatprep.subr.bf16.mxu0 %v1128
      %1308 = vmatpush1.bf16.msra.mxu0 %v1127
      %1309 = vmatprep.subr.bf16.mxu0 %v1134
      %1310 = vmatpush1.bf16.msra.mxu0 %v1133
      %1311 = vmatprep.subr.bf16.mxu0 %v1140
      %1312 = vmatpush1.bf16.msra.mxu0 %v1139
      %1313 = vmatprep.subr.bf16.mxu0 %v1146
      %1314 = vmatpush1.bf16.msra.mxu0 %v1145
      %1315 = vmatprep.subr.bf16.mxu0 %v1152
      %1316 = vmatpush1.bf16.msra.mxu0 %v1151
      %1317 = vmatprep.subr.bf16.mxu0 %v1158
      %1318 = vmatpush1.bf16.msra.mxu0 %v1157
      %1319 = vmatprep.subr.bf16.mxu0 %v1164
      %1320 = vmatpush1.bf16.msra.mxu0 %v1163
      %1321 = vmatprep.subr.bf16.mxu0 %v1170
      %1322 = vmatpush1.bf16.msra.mxu0 %v1169
      %1323 = vmatprep.subr.bf16.mxu0 %v1176
      %1324 = vmatpush1.bf16.msra.mxu0 %v1175
      %1325 = vmatprep.subr.bf16.mxu0 %v1182
      %1326 = vmatpush1.bf16.msra.mxu0 %v1181
      %1327 = vmatprep.subr.bf16.mxu0 %v1188
      %1328 = vmatpush1.bf16.msra.mxu0 %v1187
      %1329 = vmatprep.subr.bf16.mxu0 %v1194
      %1330 = vmatpush1.bf16.msra.mxu0 %v1193
      %1331 = vmatprep.subr.bf16.mxu0 %v1200
      %1332 = vmatpush1.bf16.msra.mxu0 %v1199
      %1333 = vmatprep.mubr.bf16.mxu0 %v722
      %1334 = vmatmul.mubr.bf16.gmra.mrb[0].mxu0 %v721
      %v1335 = vpop.f32.mrb[0].mxu0
      %v1336 = vadd.f32 0.0, %v1335
      %v1337 = vpop.f32.mrb[0].mxu0
      %v1338 = vadd.f32 0.0, %v1337
      %v1339 = vpop.f32.mrb[0].mxu0
      %v1340 = vadd.f32 0.0, %v1339
      %v1341 = vpop.f32.mrb[0].mxu0
      %v1342 = vadd.f32 0.0, %v1341
      %1343 = vmatprep.mubr.bf16.mxu0 %v724
      %1344 = vmatmul.mubr.bf16.gmra.mrb[0].mxu0 %v723
      %v1345 = vpop.f32.mrb[0].mxu0
      %v1346 = vadd.f32 0.0, %v1345
      %v1347 = vpop.f32.mrb[0].mxu0
      %v1348 = vadd.f32 0.0, %v1347
      %v1349 = vpop.f32.mrb[0].mxu0
      %v1350 = vpop.f32.mrb[0].mxu0
      %1351 = vdwg.mxu0
      %1352 = vmatprep.subr.bf16.mxu0 %v1112
      %1353 = vmatpush1.bf16.msra.mxu0 %v1111
      %1354 = vmatprep.subr.bf16.mxu0 %v1118
      %1355 = vmatpush1.bf16.msra.mxu0 %v1117
      %1356 = vmatprep.subr.bf16.mxu0 %v1124
      %1357 = vmatpush1.bf16.msra.mxu0 %v1123
      %1358 = vmatprep.subr.bf16.mxu0 %v1130
      %1359 = vmatpush1.bf16.msra.mxu0 %v1129
      %1360 = vmatprep.subr.bf16.mxu0 %v1136
      %1361 = vmatpush1.bf16.msra.mxu0 %v1135
      %1362 = vmatprep.subr.bf16.mxu0 %v1142
      %1363 = vmatpush1.bf16.msra.mxu0 %v1141
      %1364 = vmatprep.subr.bf16.mxu0 %v1148
      %1365 = vmatpush1.bf16.msra.mxu0 %v1147
      %1366 = vmatprep.subr.bf16.mxu0 %v1154
      %1367 = vmatpush1.bf16.msra.mxu0 %v1153
      %1368 = vmatprep.subr.bf16.mxu0 %v1160
      %1369 = vmatpush1.bf16.msra.mxu0 %v1159
      %1370 = vmatprep.subr.bf16.mxu0 %v1166
      %1371 = vmatpush1.bf16.msra.mxu0 %v1165
      %1372 = vmatprep.subr.bf16.mxu0 %v1172
      %1373 = vmatpush1.bf16.msra.mxu0 %v1171
      %1374 = vmatprep.subr.bf16.mxu0 %v1178
      %1375 = vmatpush1.bf16.msra.mxu0 %v1177
      %1376 = vmatprep.subr.bf16.mxu0 %v1184
      %1377 = vmatpush1.bf16.msra.mxu0 %v1183
      %1378 = vmatprep.subr.bf16.mxu0 %v1190
      %1379 = vmatpush1.bf16.msra.mxu0 %v1189
      %1380 = vmatprep.subr.bf16.mxu0 %v1196
      %1381 = vmatpush1.bf16.msra.mxu0 %v1195
      %1382 = vmatprep.subr.bf16.mxu0 %v1202
      %1383 = vmatpush1.bf16.msra.mxu0 %v1201
      %1384 = vmatprep.mubr.bf16.mxu0 %v722
      %1385 = vmatmul.mubr.bf16.gmra.mrb[0].mxu0 %v721
      %v1386 = vpop.f32.mrb[0].mxu0
      %v1387 = vadd.f32 0.0, %v1386
      %v1388 = vpop.f32.mrb[0].mxu0
      %v1389 = vadd.f32 0.0, %v1388
      %v1390 = vpop.f32.mrb[0].mxu0
      %v1391 = vadd.f32 0.0, %v1390
      %v1392 = vpop.f32.mrb[0].mxu0
      %v1393 = vadd.f32 0.0, %v1392
      %1394 = vmatprep.mubr.bf16.mxu0 %v724
      %1395 = vmatmul.mubr.bf16.gmra.mrb[0].mxu0 %v723
      %v1396 = vpop.f32.mrb[0].mxu0
      %v1397 = vadd.f32 0.0, %v1396
      %v1398 = vpop.f32.mrb[0].mxu0
      %v1399 = vadd.f32 0.0, %v1398
      %v1400 = vpop.f32.mrb[0].mxu0
      %v1401 = vpop.f32.mrb[0].mxu0
      %1402 = vdwg.mxu0
      %1403 = vmatprep.subr.bf16.mxu0 %v1114
      %1404 = vmatpush1.bf16.msra.mxu0 %v1113
      %1405 = vmatprep.subr.bf16.mxu0 %v1120
      %1406 = vmatpush1.bf16.msra.mxu0 %v1119
      %1407 = vmatprep.subr.bf16.mxu0 %v1126
      %1408 = vmatpush1.bf16.msra.mxu0 %v1125
      %1409 = vmatprep.subr.bf16.mxu0 %v1132
      %1410 = vmatpush1.bf16.msra.mxu0 %v1131
      %1411 = vmatprep.subr.bf16.mxu0 %v1138
      %1412 = vmatpush1.bf16.msra.mxu0 %v1137
      %1413 = vmatprep.subr.bf16.mxu0 %v1144
      %1414 = vmatpush1.bf16.msra.mxu0 %v1143
      %1415 = vmatprep.subr.bf16.mxu0 %v1150
      %1416 = vmatpush1.bf16.msra.mxu0 %v1149
      %1417 = vmatprep.subr.bf16.mxu0 %v1156
      %1418 = vmatpush1.bf16.msra.mxu0 %v1155
      %1419 = vmatprep.subr.bf16.mxu0 %v1162
      %1420 = vmatpush1.bf16.msra.mxu0 %v1161
      %1421 = vmatprep.subr.bf16.mxu0 %v1168
      %1422 = vmatpush1.bf16.msra.mxu0 %v1167
      %1423 = vmatprep.subr.bf16.mxu0 %v1174
      %1424 = vmatpush1.bf16.msra.mxu0 %v1173
      %1425 = vmatprep.subr.bf16.mxu0 %v1180
      %1426 = vmatpush1.bf16.msra.mxu0 %v1179
      %1427 = vmatprep.subr.bf16.mxu0 %v1186
      %1428 = vmatpush1.bf16.msra.mxu0 %v1185
      %1429 = vmatprep.subr.bf16.mxu0 %v1192
      %1430 = vmatpush1.bf16.msra.mxu0 %v1191
      %1431 = vmatprep.subr.bf16.mxu0 %v1198
      %1432 = vmatpush1.bf16.msra.mxu0 %v1197
      %1433 = vmatprep.subr.bf16.mxu0 %v1204
      %1434 = vmatpush1.bf16.msra.mxu0 %v1203
      %1435 = vmatprep.mubr.bf16.mxu0 %v722
      %1436 = vmatmul.mubr.bf16.gmra.mrb[0].mxu0 %v721
      %v1437 = vpop.f32.mrb[0].mxu0
      %v1438 = vadd.f32 0.0, %v1437
      %v1439 = vpop.f32.mrb[0].mxu0
      %v1440 = vadd.f32 0.0, %v1439
      %v1441 = vpop.f32.mrb[0].mxu0
      %v1442 = vadd.f32 0.0, %v1441
      %v1443 = vpop.f32.mrb[0].mxu0
      %v1444 = vadd.f32 0.0, %v1443
      %1445 = vmatprep.mubr.bf16.mxu0 %v724
      %1446 = vmatmul.mubr.bf16.gmra.mrb[0].mxu0 %v723
      %v1447 = vpop.f32.mrb[0].mxu0
      %v1448 = vadd.f32 0.0, %v1447
      %v1449 = vpop.f32.mrb[0].mxu0
      %v1450 = vadd.f32 0.0, %v1449
      %v1451 = vpop.f32.mrb[0].mxu0
      %v1452 = vpop.f32.mrb[0].mxu0
      %1453 = vdwg.mxu0
      %v1454 = vmul.f32 %v1336, 0.088388346
      %v1455 = vmul.f32 %v1340, 0.088388346
      %v1456 = vmul.f32 %v1346, 0.088388346
      %v1457 = vpack.c.bf16 %v1455, %v1454
      %v1458 = vpack.c.bf16 %v1456, %v1456
      %v1459 = vpack.c.bf16 %v1391, %v1387
      %v1460 = vpack.c.bf16 %v1397, %v1397
      %v1461 = vpack.c.bf16 %v1442, %v1438
      %v1462 = vpack.c.bf16 %v1448, %v1448
      %1463 = vmatprep.subr.bf16.mxu0 0
      %1464 = vmatpush1.bf16.xpose.msra.mxu0 %v1459
      %1465 = vmatprep.subr.bf16.mxu0 0
      %1466 = vmatpush1.bf16.xpose.msra.mxu0 %v1460
      %1467 = vmatprep.subr.bf16.mxu0 0
      %1468 = vmatpush1.bf16.xpose.msra.mxu0 0
      %1469 = vmatprep.subr.bf16.mxu0 0
      %1470 = vmatpush1.bf16.xpose.msra.mxu0 0
      %1471 = vmatprep.subr.bf16.mxu0 0
      %1472 = vmatpush1.bf16.xpose.msra.mxu0 0
      %1473 = vmatprep.subr.bf16.mxu0 0
      %1474 = vmatpush1.bf16.xpose.msra.mxu0 0
      %1475 = vmatprep.subr.bf16.mxu0 0
      %1476 = vmatpush1.bf16.xpose.msra.mxu0 0
      %1477 = vmatprep.subr.bf16.mxu0 0
      %1478 = vmatpush1.bf16.xpose.msra.mxu0 0
      %1479 = vmatprep.subr.bf16.mxu0 0
      %1480 = vmatpush1.bf16.xpose.msra.mxu0 0
      %1481 = vmatprep.subr.bf16.mxu0 0
      %1482 = vmatpush1.bf16.xpose.msra.mxu0 0
      %1483 = vmatprep.subr.bf16.mxu0 0
      %1484 = vmatpush1.bf16.xpose.msra.mxu0 0
      %1485 = vmatprep.subr.bf16.mxu0 0
      %1486 = vmatpush1.bf16.xpose.msra.mxu0 0
      %1487 = vmatprep.subr.bf16.mxu0 0
      %1488 = vmatpush1.bf16.xpose.msra.mxu0 0
      %1489 = vmatprep.subr.bf16.mxu0 0
      %1490 = vmatpush1.bf16.xpose.msra.mxu0 0
      %1491 = vmatprep.subr.bf16.mxu0 0
      %1492 = vmatpush1.bf16.xpose.msra.mxu0 0
      %1493 = vmatprep.subr.bf16.mxu0 0
      %1494 = vmatpush1.bf16.xpose.msra.mxu0 0
      %1495 = vmatprep.mubr.bf16.mxu0 0
      %1496 = vmatmul.mubr.bf16.gmra.mrb[0].mxu0 %v1457
      %v1497 = vpop.f32.mrb[0].mxu0
      %v1498 = vadd.f32 %v628, %v1497
      %v1499 = vpop.f32.mrb[0].mxu0
      %v1500 = vpop.f32.mrb[0].mxu0
      %v1501 = vadd.f32 %v629, %v1500
      %v1502 = vpop.f32.mrb[0].mxu0
      %1503 = vmatprep.mubr.bf16.mxu0 0
      %1504 = vmatmul.mubr.bf16.gmra.mrb[0].mxu0 %v1458
      %v1505 = vpop.f32.mrb[0].mxu0
      %v1506 = vadd.f32 %v630, %v1505
      %v1507 = vpop.f32.mrb[0].mxu0
      %v1508 = vpop.f32.mrb[0].mxu0
      %v1509 = vpop.f32.mrb[0].mxu0
      %1510 = vdwg.mxu0
      %vm1511 = vcmask 146432
      %v1512 = vsel %vm1511, %v1498, -inf
      %1513 = vmax.xlane.f32.xlu0 %v1512
      %v1514 = vpop.xlane.xlu0 %1513
      %v1515 = vsel %vm1511, %v1501, -inf
      %1516 = vmax.xlane.f32.xlu0 %v1515
      %v1517 = vpop.xlane.xlu0 %1516
      %vm1518 = vcmask 140288
      %v1519 = vsel %vm1518, %v1506, -inf
      %1520 = vmax.xlane.f32.xlu0 %v1519
      %v1521 = vpop.xlane.xlu0 %1520
      %v1522 = vsub.f32 %v1498, %v1514
      %v1523 = vsub.f32 %v1501, %v1517
      %v1524 = vsub.f32 %v1506, %v1521
      %v1525 = vmul.f32 %v1522, 1.442695
      %v1526 = vpow.pop %v1525
      %v1527 = vmul.f32 %v1523, 1.442695
      %v1528 = vpow.pop %v1527
      %v1529 = vmul.f32 %v1524, 1.442695
      %v1530 = vpow.pop %v1529
      %v1531 = vsel %vm1511, %v1526, 0.0
      %1532 = vadd.xlane.f32.xlu0 %v1531
      %v1533 = vpop.xlane.xlu0 %1532
      %v1534 = vsel %vm1511, %v1528, 0.0
      %1535 = vadd.xlane.f32.xlu0 %v1534
      %v1536 = vpop.xlane.xlu0 %1535
      %v1537 = vsel %vm1518, %v1530, 0.0
      %1538 = vadd.xlane.f32.xlu0 %v1537
      %v1539 = vpop.xlane.xlu0 %1538
      %v1540 = vrcp.pop %v1533
      %v1541 = vrcp.pop %v1536
      %v1542 = vrcp.pop %v1539
      %v1543 = vmul.f32 %v1526, %v1540
      %v1544 = vmul.f32 %v1528, %v1541
      %v1545 = vmul.f32 %v1530, %v1542
      %v1546 = vpack.c.bf16 %v1544, %v1543
      %v1547 = vpack.c.bf16 %v1545, %v1545
      %v1549 = vsel %vm1511, %v1546, 0
      %v1552 = vsel %vm1511, %v1547, 0
      %vm1554 = vcmask 1040384
      %v1556 = vsel %vm1554, %v1462, 0
      %1558 = vmatprep.subr.bf16.mxu0 0
      %1559 = vmatpush1.bf16.msra.mxu0 %v1461
      %1560 = vmatprep.subr.bf16.mxu0 0
      %1561 = vmatpush1.bf16.msra.mxu0 %v1556
      %1562 = vmatprep.subr.bf16.mxu0 0
      %1563 = vmatpush1.bf16.msra.mxu0 0
      %1564 = vmatprep.subr.bf16.mxu0 0
      %1565 = vmatpush1.bf16.msra.mxu0 0
      %1566 = vmatprep.subr.bf16.mxu0 0
      %1567 = vmatpush1.bf16.msra.mxu0 0
      %1568 = vmatprep.subr.bf16.mxu0 0
      %1569 = vmatpush1.bf16.msra.mxu0 0
      %1570 = vmatprep.subr.bf16.mxu0 0
      %1571 = vmatpush1.bf16.msra.mxu0 0
      %1572 = vmatprep.subr.bf16.mxu0 0
      %1573 = vmatpush1.bf16.msra.mxu0 0
      %1574 = vmatprep.subr.bf16.mxu0 0
      %1575 = vmatpush1.bf16.msra.mxu0 0
      %1576 = vmatprep.subr.bf16.mxu0 0
      %1577 = vmatpush1.bf16.msra.mxu0 0
      %1578 = vmatprep.subr.bf16.mxu0 0
      %1579 = vmatpush1.bf16.msra.mxu0 0
      %1580 = vmatprep.subr.bf16.mxu0 0
      %1581 = vmatpush1.bf16.msra.mxu0 0
      %1582 = vmatprep.subr.bf16.mxu0 0
      %1583 = vmatpush1.bf16.msra.mxu0 0
      %1584 = vmatprep.subr.bf16.mxu0 0
      %1585 = vmatpush1.bf16.msra.mxu0 0
      %1586 = vmatprep.subr.bf16.mxu0 0
      %1587 = vmatpush1.bf16.msra.mxu0 0
      %1588 = vmatprep.subr.bf16.mxu0 0
      %1589 = vmatpush1.bf16.msra.mxu0 0
      %1590 = vmatprep.mubr.bf16.mxu0 0
      %1591 = vmatmul.mubr.bf16.gmra.mrb[0].mxu0 %v1549
      %v1592 = vpop.f32.mrb[0].mxu0
      %v1593 = vadd.f32 0.0, %v1592
      %v1594 = vpop.f32.mrb[0].mxu0
      %v1595 = vpop.f32.mrb[0].mxu0
      %v1596 = vadd.f32 0.0, %v1595
      %v1597 = vpop.f32.mrb[0].mxu0
      %1598 = vmatprep.mubr.bf16.mxu0 0
      %1599 = vmatmul.mubr.bf16.gmra.mrb[0].mxu0 %v1552
      %v1600 = vpop.f32.mrb[0].mxu0
      %v1601 = vadd.f32 0.0, %v1600
      %v1602 = vpop.f32.mrb[0].mxu0
      %v1603 = vpop.f32.mrb[0].mxu0
      %v1604 = vpop.f32.mrb[0].mxu0
      %1605 = vdwg.mxu0
      %1606 = vst [vmem:[#allocation3] sm:$0xff] %v1593
      %1607 = vst [vmem:[#allocation3 + $0x10] sm:$0xff] %v1596
      %1608 = vst [vmem:[#allocation3 + $0x20] sm:$0x3] %v1601
      %v1609 = vmul.f32 %v1338, 0.088388346
      %v1610 = vmul.f32 %v1342, 0.088388346
      %v1611 = vmul.f32 %v1348, 0.088388346
      %v1612 = vpack.c.bf16 %v1610, %v1609
      %v1613 = vpack.c.bf16 %v1611, %v1611
      %v1614 = vpack.c.bf16 %v1393, %v1389
      %v1615 = vpack.c.bf16 %v1399, %v1399
      %v1616 = vpack.c.bf16 %v1444, %v1440
      %v1617 = vpack.c.bf16 %v1450, %v1450
      %1618 = vmatprep.subr.bf16.mxu0 0
      %1619 = vmatpush1.bf16.xpose.msra.mxu0 %v1614
      %1620 = vmatprep.subr.bf16.mxu0 0
      %1621 = vmatpush1.bf16.xpose.msra.mxu0 %v1615
      %1622 = vmatprep.subr.bf16.mxu0 0
      %1623 = vmatpush1.bf16.xpose.msra.mxu0 0
      %1624 = vmatprep.subr.bf16.mxu0 0
      %1625 = vmatpush1.bf16.xpose.msra.mxu0 0
      %1626 = vmatprep.subr.bf16.mxu0 0
      %1627 = vmatpush1.bf16.xpose.msra.mxu0 0
      %1628 = vmatprep.subr.bf16.mxu0 0
      %1629 = vmatpush1.bf16.xpose.msra.mxu0 0
      %1630 = vmatprep.subr.bf16.mxu0 0
      %1631 = vmatpush1.bf16.xpose.msra.mxu0 0
      %1632 = vmatprep.subr.bf16.mxu0 0
      %1633 = vmatpush1.bf16.xpose.msra.mxu0 0
      %1634 = vmatprep.subr.bf16.mxu0 0
      %1635 = vmatpush1.bf16.xpose.msra.mxu0 0
      %1636 = vmatprep.subr.bf16.mxu0 0
      %1637 = vmatpush1.bf16.xpose.msra.mxu0 0
      %1638 = vmatprep.subr.bf16.mxu0 0
      %1639 = vmatpush1.bf16.xpose.msra.mxu0 0
      %1640 = vmatprep.subr.bf16.mxu0 0
      %1641 = vmatpush1.bf16.xpose.msra.mxu0 0
      %1642 = vmatprep.subr.bf16.mxu0 0
      %1643 = vmatpush1.bf16.xpose.msra.mxu0 0
      %1644 = vmatprep.subr.bf16.mxu0 0
      %1645 = vmatpush1.bf16.xpose.msra.mxu0 0
      %1646 = vmatprep.subr.bf16.mxu0 0
      %1647 = vmatpush1.bf16.xpose.msra.mxu0 0
      %1648 = vmatprep.subr.bf16.mxu0 0
      %1649 = vmatpush1.bf16.xpose.msra.mxu0 0
      %1650 = vmatprep.mubr.bf16.mxu0 0
      %1651 = vmatmul.mubr.bf16.gmra.mrb[0].mxu0 %v1612
      %v1652 = vpop.f32.mrb[0].mxu0
      %v1653 = vadd.f32 %v628, %v1652
      %v1654 = vpop.f32.mrb[0].mxu0
      %v1655 = vpop.f32.mrb[0].mxu0
      %v1656 = vadd.f32 %v629, %v1655
      %v1657 = vpop.f32.mrb[0].mxu0
      %1658 = vmatprep.mubr.bf16.mxu0 0
      %1659 = vmatmul.mubr.bf16.gmra.mrb[0].mxu0 %v1613
      %v1660 = vpop.f32.mrb[0].mxu0
      %v1661 = vadd.f32 %v630, %v1660
      %v1662 = vpop.f32.mrb[0].mxu0
      %v1663 = vpop.f32.mrb[0].mxu0
      %v1664 = vpop.f32.mrb[0].mxu0
      %1665 = vdwg.mxu0
      %v1666 = vsel %vm1511, %v1653, -inf
      %1667 = vmax.xlane.f32.xlu0 %v1666
      %v1668 = vpop.xlane.xlu0 %1667
      %v1669 = vsel %vm1511, %v1656, -inf
      %1670 = vmax.xlane.f32.xlu0 %v1669
      %v1671 = vpop.xlane.xlu0 %1670
      %v1672 = vsel %vm1518, %v1661, -inf
      %1673 = vmax.xlane.f32.xlu0 %v1672
      %v1674 = vpop.xlane.xlu0 %1673
      %v1675 = vsub.f32 %v1653, %v1668
      %v1676 = vsub.f32 %v1656, %v1671
      %v1677 = vsub.f32 %v1661, %v1674
      %v1678 = vmul.f32 %v1675, 1.442695
      %v1679 = vpow.pop %v1678
      %v1680 = vmul.f32 %v1676, 1.442695
      %v1681 = vpow.pop %v1680
      %v1682 = vmul.f32 %v1677, 1.442695
      %v1683 = vpow.pop %v1682
      %v1684 = vsel %vm1511, %v1679, 0.0
      %1685 = vadd.xlane.f32.xlu0 %v1684
      %v1686 = vpop.xlane.xlu0 %1685
      %v1687 = vsel %vm1511, %v1681, 0.0
      %1688 = vadd.xlane.f32.xlu0 %v1687
      %v1689 = vpop.xlane.xlu0 %1688
      %v1690 = vsel %vm1518, %v1683, 0.0
      %1691 = vadd.xlane.f32.xlu0 %v1690
      %v1692 = vpop.xlane.xlu0 %1691
      %v1693 = vrcp.pop %v1686
      %v1694 = vrcp.pop %v1689
      %v1695 = vrcp.pop %v1692
      %v1696 = vmul.f32 %v1679, %v1693
      %v1697 = vmul.f32 %v1681, %v1694
      %v1698 = vmul.f32 %v1683, %v1695
      %v1699 = vpack.c.bf16 %v1697, %v1696
      %v1700 = vpack.c.bf16 %v1698, %v1698
      %v1702 = vsel %vm1511, %v1699, 0
      %v1705 = vsel %vm1511, %v1700, 0
      %v1708 = vsel %vm1554, %v1617, 0
      %1710 = vmatprep.subr.bf16.mxu0 0
      %1711 = vmatpush1.bf16.msra.mxu0 %v1616
      %1712 = vmatprep.subr.bf16.mxu0 0
      %1713 = vmatpush1.bf16.msra.mxu0 %v1708
      %1714 = vmatprep.subr.bf16.mxu0 0
      %1715 = vmatpush1.bf16.msra.mxu0 0
      %1716 = vmatprep.subr.bf16.mxu0 0
      %1717 = vmatpush1.bf16.msra.mxu0 0
      %1718 = vmatprep.subr.bf16.mxu0 0
      %1719 = vmatpush1.bf16.msra.mxu0 0
      %1720 = vmatprep.subr.bf16.mxu0 0
      %1721 = vmatpush1.bf16.msra.mxu0 0
      %1722 = vmatprep.subr.bf16.mxu0 0
      %1723 = vmatpush1.bf16.msra.mxu0 0
      %1724 = vmatprep.subr.bf16.mxu0 0
      %1725 = vmatpush1.bf16.msra.mxu0 0
      %1726 = vmatprep.subr.bf16.mxu0 0
      %1727 = vmatpush1.bf16.msra.mxu0 0
      %1728 = vmatprep.subr.bf16.mxu0 0
      %1729 = vmatpush1.bf16.msra.mxu0 0
      %1730 = vmatprep.subr.bf16.mxu0 0
      %1731 = vmatpush1.bf16.msra.mxu0 0
      %1732 = vmatprep.subr.bf16.mxu0 0
      %1733 = vmatpush1.bf16.msra.mxu0 0
      %1734 = vmatprep.subr.bf16.mxu0 0
      %1735 = vmatpush1.bf16.msra.mxu0 0
      %1736 = vmatprep.subr.bf16.mxu0 0
      %1737 = vmatpush1.bf16.msra.mxu0 0
      %1738 = vmatprep.subr.bf16.mxu0 0
      %1739 = vmatpush1.bf16.msra.mxu0 0
      %1740 = vmatprep.subr.bf16.mxu0 0
      %1741 = vmatpush1.bf16.msra.mxu0 0
      %1742 = vmatprep.mubr.bf16.mxu0 0
      %1743 = vmatmul.mubr.bf16.gmra.mrb[0].mxu0 %v1702
      %v1744 = vpop.f32.mrb[0].mxu0
      %v1745 = vadd.f32 0.0, %v1744
      %v1746 = vpop.f32.mrb[0].mxu0
      %v1747 = vpop.f32.mrb[0].mxu0
      %v1748 = vadd.f32 0.0, %v1747
      %v1749 = vpop.f32.mrb[0].mxu0
      %1750 = vmatprep.mubr.bf16.mxu0 0
      %1751 = vmatmul.mubr.bf16.gmra.mrb[0].mxu0 %v1705
      %v1752 = vpop.f32.mrb[0].mxu0
      %v1753 = vadd.f32 0.0, %v1752
      %v1754 = vpop.f32.mrb[0].mxu0
      %v1755 = vpop.f32.mrb[0].mxu0
      %v1756 = vpop.f32.mrb[0].mxu0
      %1757 = vdwg.mxu0
      %1758 = vst [vmem:[#allocation3 + $0x8] sm:$0xff] %v1745
      %1759 = vst [vmem:[#allocation3 + $0x18] sm:$0xff] %v1748
      %1760 = vst [vmem:[#allocation3 + $0x28] sm:$0x3] %v1753
      %v1761 = vld [vmem:[#allocation3] sm:$0xff]
      %v1762 = vld [vmem:[#allocation3 + $0x8] sm:$0xff]
      %v1763 = vld [vmem:[#allocation3 + $0x10] sm:$0xff]
      %v1764 = vld [vmem:[#allocation3 + $0x18] sm:$0xff]
      %v1765 = vld [vmem:[#allocation3 + $0x20] sm:$0x3]
      %v1766 = vld [vmem:[#allocation3 + $0x28] sm:$0x3]
      %v1767 = vpack.c.bf16 %v1763, %v1761
      %v1768 = vpack.c.bf16 %v1764, %v1762
      %v1769 = vpack.c.bf16 %v1765, %v1765
      %v1770 = vpack.c.bf16 %v1766, %v1766
      %v1771 = vld [vmem:[%s574] sm:$0xff]
      %v1772 = vld [vmem:[%s574 + $0x8] sm:$0xff]
      %v1773 = vld [vmem:[%s574 + $0x10] sm:$0xff]
      %v1774 = vld [vmem:[%s574 + $0x18] sm:$0xff]
      %v1775 = vld [vmem:[%s574 + $0x20] sm:$0xff]
      %v1776 = vld [vmem:[%s574 + $0x28] sm:$0xff]
      %v1777 = vld [vmem:[%s574 + $0x30] sm:$0xff]
      %v1778 = vld [vmem:[%s574 + $0x38] sm:$0xff]
      %v1779 = vld [vmem:[%s574 + $0x40] sm:$0xff]
      %v1780 = vld [vmem:[%s574 + $0x48] sm:$0xff]
      %v1781 = vld [vmem:[%s574 + $0x50] sm:$0xff]
      %v1782 = vld [vmem:[%s574 + $0x58] sm:$0xff]
      %v1783 = vld [vmem:[%s574 + $0x60] sm:$0xff]
      %v1784 = vld [vmem:[%s574 + $0x68] sm:$0xff]
      %v1785 = vld [vmem:[%s574 + $0x70] sm:$0xff]
      %v1786 = vld [vmem:[%s574 + $0x78] sm:$0xff]
      %v1787 = vld [vmem:[%s574 + $0x80] sm:$0xff]
      %v1788 = vld [vmem:[%s574 + $0x88] sm:$0xff]
      %v1789 = vld [vmem:[%s574 + $0x90] sm:$0xff]
      %v1790 = vld [vmem:[%s574 + $0x98] sm:$0xff]
      %v1791 = vld [vmem:[%s574 + $0xa0] sm:$0xff]
      %v1792 = vld [vmem:[%s574 + $0xa8] sm:$0xff]
      %v1793 = vld [vmem:[%s574 + $0xb0] sm:$0xff]
      %v1794 = vld [vmem:[%s574 + $0xb8] sm:$0xff]
      %v1795 = vld [vmem:[%s574 + $0xc0] sm:$0xff]
      %v1796 = vld [vmem:[%s574 + $0xc8] sm:$0xff]
      %v1797 = vld [vmem:[%s574 + $0xd0] sm:$0xff]
      %v1798 = vld [vmem:[%s574 + $0xd8] sm:$0xff]
      %v1799 = vld [vmem:[%s574 + $0xe0] sm:$0xff]
      %v1800 = vld [vmem:[%s574 + $0xe8] sm:$0xff]
      %v1801 = vld [vmem:[%s574 + $0xf0] sm:$0xff]
      %v1802 = vld [vmem:[%s574 + $0xf8] sm:$0xff]
      %v1803 = vld [vmem:[%s578] sm:$0x3]
      %v1805 = vlaneseq
      %v1806 = vshrl.u32 %v1805, 7
      %v1807 = vsub.s32 0, %v1806
      %v1808 = vrot.slane %v1803, %v1807
      %v1809 = vlaneseq
      %v1810 = vshrl.u32 %v1809, 7
      %v1811 = vsub.s32 1, %v1810
      %v1812 = vrot.slane %v1803, %v1811
      %v1847 = vunpack.c.l.b16 %v1771
      %v1848 = vunpack.c.h.b16 %v1771
      %v1849 = vunpack.c.l.b16 %v1772
      %v1850 = vunpack.c.h.b16 %v1772
      %v1851 = vunpack.c.l.b16 %v1773
      %v1852 = vunpack.c.h.b16 %v1773
      %v1853 = vunpack.c.l.b16 %v1774
      %v1854 = vunpack.c.h.b16 %v1774
      %v1855 = vunpack.c.l.b16 %v1775
      %v1856 = vunpack.c.h.b16 %v1775
      %v1857 = vunpack.c.l.b16 %v1776
      %v1858 = vunpack.c.h.b16 %v1776
      %v1859 = vunpack.c.l.b16 %v1777
      %v1860 = vunpack.c.h.b16 %v1777
      %v1861 = vunpack.c.l.b16 %v1778
      %v1862 = vunpack.c.h.b16 %v1778
      %v1863 = vunpack.c.l.b16 %v1779
      %v1864 = vunpack.c.h.b16 %v1779
      %v1865 = vunpack.c.l.b16 %v1780
      %v1866 = vunpack.c.h.b16 %v1780
      %v1867 = vunpack.c.l.b16 %v1781
      %v1868 = vunpack.c.h.b16 %v1781
      %v1869 = vunpack.c.l.b16 %v1782
      %v1870 = vunpack.c.h.b16 %v1782
      %v1871 = vunpack.c.l.b16 %v1783
      %v1872 = vunpack.c.h.b16 %v1783
      %v1873 = vunpack.c.l.b16 %v1784
      %v1874 = vunpack.c.h.b16 %v1784
      %v1875 = vunpack.c.l.b16 %v1785
      %v1876 = vunpack.c.h.b16 %v1785
      %v1877 = vunpack.c.l.b16 %v1786
      %v1878 = vunpack.c.h.b16 %v1786
      %v1879 = vunpack.c.l.b16 %v1787
      %v1880 = vunpack.c.h.b16 %v1787
      %v1881 = vunpack.c.l.b16 %v1788
      %v1882 = vunpack.c.h.b16 %v1788
      %v1883 = vunpack.c.l.b16 %v1789
      %v1884 = vunpack.c.h.b16 %v1789
      %v1885 = vunpack.c.l.b16 %v1790
      %v1886 = vunpack.c.h.b16 %v1790
      %v1887 = vunpack.c.l.b16 %v1791
      %v1888 = vunpack.c.h.b16 %v1791
      %v1889 = vunpack.c.l.b16 %v1792
      %v1890 = vunpack.c.h.b16 %v1792
      %v1891 = vunpack.c.l.b16 %v1793
      %v1892 = vunpack.c.h.b16 %v1793
      %v1893 = vunpack.c.l.b16 %v1794
      %v1894 = vunpack.c.h.b16 %v1794
      %v1895 = vunpack.c.l.b16 %v1795
      %v1896 = vunpack.c.h.b16 %v1795
      %v1897 = vunpack.c.l.b16 %v1796
      %v1898 = vunpack.c.h.b16 %v1796
      %v1899 = vunpack.c.l.b16 %v1797
      %v1900 = vunpack.c.h.b16 %v1797
      %v1901 = vunpack.c.l.b16 %v1798
      %v1902 = vunpack.c.h.b16 %v1798
      %v1903 = vunpack.c.l.b16 %v1799
      %v1904 = vunpack.c.h.b16 %v1799
      %v1905 = vunpack.c.l.b16 %v1800
      %v1906 = vunpack.c.h.b16 %v1800
      %v1907 = vunpack.c.l.b16 %v1801
      %v1908 = vunpack.c.h.b16 %v1801
      %v1909 = vunpack.c.l.b16 %v1802
      %v1910 = vunpack.c.h.b16 %v1802
      %v1911 = vpack.c.b16 %v1849, %v1847
      %v1912 = vpack.c.b16 %v1850, %v1848
      %v1913 = vpack.c.b16 %v1853, %v1851
      %v1914 = vpack.c.b16 %v1854, %v1852
      %v1915 = vpack.c.b16 %v1857, %v1855
      %v1916 = vpack.c.b16 %v1858, %v1856
      %v1917 = vpack.c.b16 %v1861, %v1859
      %v1918 = vpack.c.b16 %v1862, %v1860
      %v1919 = vpack.c.b16 %v1865, %v1863
      %v1920 = vpack.c.b16 %v1866, %v1864
      %v1921 = vpack.c.b16 %v1869, %v1867
      %v1922 = vpack.c.b16 %v1870, %v1868
      %v1923 = vpack.c.b16 %v1873, %v1871
      %v1924 = vpack.c.b16 %v1874, %v1872
      %v1925 = vpack.c.b16 %v1877, %v1875
      %v1926 = vpack.c.b16 %v1878, %v1876
      %v1927 = vpack.c.b16 %v1881, %v1879
      %v1928 = vpack.c.b16 %v1882, %v1880
      %v1929 = vpack.c.b16 %v1885, %v1883
      %v1930 = vpack.c.b16 %v1886, %v1884
      %v1931 = vpack.c.b16 %v1889, %v1887
      %v1932 = vpack.c.b16 %v1890, %v1888
      %v1933 = vpack.c.b16 %v1893, %v1891
      %v1934 = vpack.c.b16 %v1894, %v1892
      %v1935 = vpack.c.b16 %v1897, %v1895
      %v1936 = vpack.c.b16 %v1898, %v1896
      %v1937 = vpack.c.b16 %v1901, %v1899
      %v1938 = vpack.c.b16 %v1902, %v1900
      %v1939 = vpack.c.b16 %v1905, %v1903
      %v1940 = vpack.c.b16 %v1906, %v1904
      %v1941 = vpack.c.b16 %v1909, %v1907
      %v1942 = vpack.c.b16 %v1910, %v1908
      %1975 = vmatprep.subr.bf16.mxu0 %v1912
      %1976 = vmatpush1.bf16.msra.mxu0 %v1911
      %1977 = vmatprep.subr.bf16.mxu0 %v1914
      %1978 = vmatpush1.bf16.msra.mxu0 %v1913
      %1979 = vmatprep.subr.bf16.mxu0 %v1916
      %1980 = vmatpush1.bf16.msra.mxu0 %v1915
      %1981 = vmatprep.subr.bf16.mxu0 %v1918
      %1982 = vmatpush1.bf16.msra.mxu0 %v1917
      %1983 = vmatprep.subr.bf16.mxu0 %v1920
      %1984 = vmatpush1.bf16.msra.mxu0 %v1919
      %1985 = vmatprep.subr.bf16.mxu0 %v1922
      %1986 = vmatpush1.bf16.msra.mxu0 %v1921
      %1987 = vmatprep.subr.bf16.mxu0 %v1924
      %1988 = vmatpush1.bf16.msra.mxu0 %v1923
      %1989 = vmatprep.subr.bf16.mxu0 %v1926
      %1990 = vmatpush1.bf16.msra.mxu0 %v1925
      %1991 = vmatprep.subr.bf16.mxu0 %v1928
      %1992 = vmatpush1.bf16.msra.mxu0 %v1927
      %1993 = vmatprep.subr.bf16.mxu0 %v1930
      %1994 = vmatpush1.bf16.msra.mxu0 %v1929
      %1995 = vmatprep.subr.bf16.mxu0 %v1932
      %1996 = vmatpush1.bf16.msra.mxu0 %v1931
      %1997 = vmatprep.subr.bf16.mxu0 %v1934
      %1998 = vmatpush1.bf16.msra.mxu0 %v1933
      %1999 = vmatprep.subr.bf16.mxu0 %v1936
      %2000 = vmatpush1.bf16.msra.mxu0 %v1935
      %2001 = vmatprep.subr.bf16.mxu0 %v1938
      %2002 = vmatpush1.bf16.msra.mxu0 %v1937
      %2003 = vmatprep.subr.bf16.mxu0 %v1940
      %2004 = vmatpush1.bf16.msra.mxu0 %v1939
      %2005 = vmatprep.subr.bf16.mxu0 %v1942
      %2006 = vmatpush1.bf16.msra.mxu0 %v1941
      %2007 = vmatprep.mubr.bf16.mxu0 %v1768
      %2008 = vmatmul.mubr.bf16.gmra.mrb[0].mxu0 %v1767
      %v2009 = vpop.f32.mrb[0].mxu0
      %v2010 = vadd.f32 %v1808, %v2009
      %v2011 = vpop.f32.mrb[0].mxu0
      %v2012 = vadd.f32 %v1812, %v2011
      %v2013 = vpop.f32.mrb[0].mxu0
      %v2014 = vadd.f32 %v1808, %v2013
      %v2015 = vpop.f32.mrb[0].mxu0
      %v2016 = vadd.f32 %v1812, %v2015
      %2017 = vmatprep.mubr.bf16.mxu0 %v1770
      %2018 = vmatmul.mubr.bf16.gmra.mrb[0].mxu0 %v1769
      %v2019 = vpop.f32.mrb[0].mxu0
      %v2020 = vadd.f32 %v1808, %v2019
      %v2021 = vpop.f32.mrb[0].mxu0
      %v2022 = vadd.f32 %v1812, %v2021
      %v2023 = vpop.f32.mrb[0].mxu0
      %v2024 = vpop.f32.mrb[0].mxu0
      %2025 = vdwg.mxu0
      %v2026 = vadd.f32 %v622, %v2010
      %v2027 = vadd.f32 %v623, %v2012
      %v2028 = vadd.f32 %v624, %v2014
      %v2029 = vadd.f32 %v625, %v2016
      %v2030 = vadd.f32 %v626, %v2020
      %v2031 = vadd.f32 %v627, %v2022
      %v2032 = vld [vmem:[%s582] sm:$0x3]
      %v2033 = vld [vmem:[%s586] sm:$0x3]
      %v2034 = vadd.f32 %v2026, %v2027
      %2035 = vadd.xlane.f32.xlu0 %v2034
      %v2036 = vpop.xlane.xlu0 %2035
      %v2037 = vadd.f32 %v2028, %v2029
      %2038 = vadd.xlane.f32.xlu0 %v2037
      %v2039 = vpop.xlane.xlu0 %2038
      %v2040 = vsel %vm639, %v2030, 0.0
      %v2041 = vsel %vm639, %v2031, 0.0
      %v2042 = vadd.f32 %v2040, %v2041
      %2043 = vadd.xlane.f32.xlu0 %v2042
      %v2044 = vpop.xlane.xlu0 %2043
      %v2045 = vmul.f32 %v2036, %v645
      %v2046 = vmul.f32 %v2039, %v645
      %v2047 = vmul.f32 %v2044, %v645
      %v2048 = vsub.f32 %v2026, %v2045
      %v2049 = vsub.f32 %v2027, %v2045
      %v2050 = vsub.f32 %v2028, %v2046
      %v2051 = vsub.f32 %v2029, %v2046
      %v2052 = vsub.f32 %v2030, %v2047
      %v2053 = vsub.f32 %v2031, %v2047
      %v2054 = vmul.f32 %v2048, %v2048
      %v2055 = vmul.f32 %v2049, %v2049
      %v2056 = vmul.f32 %v2050, %v2050
      %v2057 = vmul.f32 %v2051, %v2051
      %v2058 = vmul.f32 %v2052, %v2052
      %v2059 = vmul.f32 %v2053, %v2053
      %v2060 = vadd.f32 %v2054, %v2055
      %2061 = vadd.xlane.f32.xlu0 %v2060
      %v2062 = vpop.xlane.xlu0 %2061
      %v2063 = vadd.f32 %v2056, %v2057
      %2064 = vadd.xlane.f32.xlu0 %v2063
      %v2065 = vpop.xlane.xlu0 %2064
      %v2066 = vsel %vm639, %v2058, 0.0
      %v2067 = vsel %vm639, %v2059, 0.0
      %v2068 = vadd.f32 %v2066, %v2067
      %2069 = vadd.xlane.f32.xlu0 %v2068
      %v2070 = vpop.xlane.xlu0 %2069
      %v2071 = vmul.f32 %v2062, %v645
      %v2072 = vmul.f32 %v2065, %v645
      %v2073 = vmul.f32 %v2070, %v645
      %v2074 = vadd.f32 %v2071, 1e-05
      %v2075 = vadd.f32 %v2072, 1e-05
      %v2076 = vadd.f32 %v2073, 1e-05
      %v2077 = vrsqrt.pop %v2074
      %v2078 = vrsqrt.pop %v2075
      %v2079 = vrsqrt.pop %v2076
      %v2080 = vmul.f32 %v2048, %v2077
      %v2081 = vmul.f32 %v2049, %v2077
      %v2082 = vmul.f32 %v2050, %v2078
      %v2083 = vmul.f32 %v2051, %v2078
      %v2084 = vmul.f32 %v2052, %v2079
      %v2085 = vmul.f32 %v2053, %v2079
      %v2087 = vlaneseq
      %v2088 = vshrl.u32 %v2087, 7
      %v2089 = vsub.s32 0, %v2088
      %v2090 = vrot.slane %v2032, %v2089
      %v2091 = vlaneseq
      %v2092 = vshrl.u32 %v2091, 7
      %v2093 = vsub.s32 1, %v2092
      %v2094 = vrot.slane %v2032, %v2093
      %v2097 = vmul.f32 %v2080, %v2090
      %v2098 = vmul.f32 %v2081, %v2094
      %v2099 = vmul.f32 %v2082, %v2090
      %v2100 = vmul.f32 %v2083, %v2094
      %v2101 = vmul.f32 %v2084, %v2090
      %v2102 = vmul.f32 %v2085, %v2094
      %v2104 = vlaneseq
      %v2105 = vshrl.u32 %v2104, 7
      %v2106 = vsub.s32 0, %v2105
      %v2107 = vrot.slane %v2033, %v2106
      %v2108 = vlaneseq
      %v2109 = vshrl.u32 %v2108, 7
      %v2110 = vsub.s32 1, %v2109
      %v2111 = vrot.slane %v2033, %v2110
      %v2114 = vadd.f32 %v2097, %v2107
      %v2115 = vadd.f32 %v2098, %v2111
      %v2116 = vadd.f32 %v2099, %v2107
      %v2117 = vadd.f32 %v2100, %v2111
      %v2118 = vadd.f32 %v2101, %v2107
      %v2119 = vadd.f32 %v2102, %v2111
      %v2120 = vpack.c.bf16 %v2116, %v2114
      %v2121 = vpack.c.bf16 %v2117, %v2115
      %v2122 = vpack.c.bf16 %v2118, %v2118
      %v2123 = vpack.c.bf16 %v2119, %v2119
      %v2124 = vld [vmem:[%s591] sm:$0xff]
      %v2125 = vld [vmem:[%s591 + $0x8] sm:$0xff]
      %v2126 = vld [vmem:[%s591 + $0x10] sm:$0xff]
      %v2127 = vld [vmem:[%s591 + $0x18] sm:$0xff]
      %v2128 = vld [vmem:[%s591 + $0x20] sm:$0xff]
      %v2129 = vld [vmem:[%s591 + $0x28] sm:$0xff]
      %v2130 = vld [vmem:[%s591 + $0x30] sm:$0xff]
      %v2131 = vld [vmem:[%s591 + $0x38] sm:$0xff]
      %v2132 = vld [vmem:[%s591 + $0x40] sm:$0xff]
      %v2133 = vld [vmem:[%s591 + $0x48] sm:$0xff]
      %v2134 = vld [vmem:[%s591 + $0x50] sm:$0xff]
      %v2135 = vld [vmem:[%s591 + $0x58] sm:$0xff]
      %v2136 = vld [vmem:[%s591 + $0x60] sm:$0xff]
      %v2137 = vld [vmem:[%s591 + $0x68] sm:$0xff]
      %v2138 = vld [vmem:[%s591 + $0x70] sm:$0xff]
      %v2139 = vld [vmem:[%s591 + $0x78] sm:$0xff]
      %v2140 = vld [vmem:[%s591 + $0x80] sm:$0xff]
      %v2141 = vld [vmem:[%s591 + $0x88] sm:$0xff]
      %v2142 = vld [vmem:[%s591 + $0x90] sm:$0xff]
      %v2143 = vld [vmem:[%s591 + $0x98] sm:$0xff]
      %v2144 = vld [vmem:[%s591 + $0xa0] sm:$0xff]
      %v2145 = vld [vmem:[%s591 + $0xa8] sm:$0xff]
      %v2146 = vld [vmem:[%s591 + $0xb0] sm:$0xff]
      %v2147 = vld [vmem:[%s591 + $0xb8] sm:$0xff]
      %v2148 = vld [vmem:[%s591 + $0xc0] sm:$0xff]
      %v2149 = vld [vmem:[%s591 + $0xc8] sm:$0xff]
      %v2150 = vld [vmem:[%s591 + $0xd0] sm:$0xff]
      %v2151 = vld [vmem:[%s591 + $0xd8] sm:$0xff]
      %v2152 = vld [vmem:[%s591 + $0xe0] sm:$0xff]
      %v2153 = vld [vmem:[%s591 + $0xe8] sm:$0xff]
      %v2154 = vld [vmem:[%s591 + $0xf0] sm:$0xff]
      %v2155 = vld [vmem:[%s591 + $0xf8] sm:$0xff]
      %v2156 = vld [vmem:[%s591 + $0x100] sm:$0xff]
      %v2157 = vld [vmem:[%s591 + $0x108] sm:$0xff]
      %v2158 = vld [vmem:[%s591 + $0x110] sm:$0xff]
      %v2159 = vld [vmem:[%s591 + $0x118] sm:$0xff]
      %v2160 = vld [vmem:[%s591 + $0x120] sm:$0xff]
      %v2161 = vld [vmem:[%s591 + $0x128] sm:$0xff]
      %v2162 = vld [vmem:[%s591 + $0x130] sm:$0xff]
      %v2163 = vld [vmem:[%s591 + $0x138] sm:$0xff]
      %v2164 = vld [vmem:[%s591 + $0x140] sm:$0xff]
      %v2165 = vld [vmem:[%s591 + $0x148] sm:$0xff]
      %v2166 = vld [vmem:[%s591 + $0x150] sm:$0xff]
      %v2167 = vld [vmem:[%s591 + $0x158] sm:$0xff]
      %v2168 = vld [vmem:[%s591 + $0x160] sm:$0xff]
      %v2169 = vld [vmem:[%s591 + $0x168] sm:$0xff]
      %v2170 = vld [vmem:[%s591 + $0x170] sm:$0xff]
      %v2171 = vld [vmem:[%s591 + $0x178] sm:$0xff]
      %v2172 = vld [vmem:[%s591 + $0x180] sm:$0xff]
      %v2173 = vld [vmem:[%s591 + $0x188] sm:$0xff]
      %v2174 = vld [vmem:[%s591 + $0x190] sm:$0xff]
      %v2175 = vld [vmem:[%s591 + $0x198] sm:$0xff]
      %v2176 = vld [vmem:[%s591 + $0x1a0] sm:$0xff]
      %v2177 = vld [vmem:[%s591 + $0x1a8] sm:$0xff]
      %v2178 = vld [vmem:[%s591 + $0x1b0] sm:$0xff]
      %v2179 = vld [vmem:[%s591 + $0x1b8] sm:$0xff]
      %v2180 = vld [vmem:[%s591 + $0x1c0] sm:$0xff]
      %v2181 = vld [vmem:[%s591 + $0x1c8] sm:$0xff]
      %v2182 = vld [vmem:[%s591 + $0x1d0] sm:$0xff]
      %v2183 = vld [vmem:[%s591 + $0x1d8] sm:$0xff]
      %v2184 = vld [vmem:[%s591 + $0x1e0] sm:$0xff]
      %v2185 = vld [vmem:[%s591 + $0x1e8] sm:$0xff]
      %v2186 = vld [vmem:[%s591 + $0x1f0] sm:$0xff]
      %v2187 = vld [vmem:[%s591 + $0x1f8] sm:$0xff]
      %v2188 = vld [vmem:[%s595] sm:$0xf]
      %v2190 = vlaneseq
      %v2191 = vshrl.u32 %v2190, 7
      %v2192 = vsub.s32 0, %v2191
      %v2193 = vrot.slane %v2188, %v2192
      %v2194 = vlaneseq
      %v2195 = vshrl.u32 %v2194, 7
      %v2196 = vsub.s32 1, %v2195
      %v2197 = vrot.slane %v2188, %v2196
      %v2198 = vlaneseq
      %v2199 = vshrl.u32 %v2198, 7
      %v2200 = vsub.s32 2, %v2199
      %v2201 = vrot.slane %v2188, %v2200
      %v2202 = vlaneseq
      %v2203 = vshrl.u32 %v2202, 7
      %v2204 = vsub.s32 3, %v2203
      %v2205 = vrot.slane %v2188, %v2204
      %v2274 = vunpack.c.l.b16 %v2124
      %v2275 = vunpack.c.h.b16 %v2124
      %v2276 = vunpack.c.l.b16 %v2125
      %v2277 = vunpack.c.h.b16 %v2125
      %v2278 = vunpack.c.l.b16 %v2126
      %v2279 = vunpack.c.h.b16 %v2126
      %v2280 = vunpack.c.l.b16 %v2127
      %v2281 = vunpack.c.h.b16 %v2127
      %v2282 = vunpack.c.l.b16 %v2128
      %v2283 = vunpack.c.h.b16 %v2128
      %v2284 = vunpack.c.l.b16 %v2129
      %v2285 = vunpack.c.h.b16 %v2129
      %v2286 = vunpack.c.l.b16 %v2130
      %v2287 = vunpack.c.h.b16 %v2130
      %v2288 = vunpack.c.l.b16 %v2131
      %v2289 = vunpack.c.h.b16 %v2131
      %v2290 = vunpack.c.l.b16 %v2132
      %v2291 = vunpack.c.h.b16 %v2132
      %v2292 = vunpack.c.l.b16 %v2133
      %v2293 = vunpack.c.h.b16 %v2133
      %v2294 = vunpack.c.l.b16 %v2134
      %v2295 = vunpack.c.h.b16 %v2134
      %v2296 = vunpack.c.l.b16 %v2135
      %v2297 = vunpack.c.h.b16 %v2135
      %v2298 = vunpack.c.l.b16 %v2136
      %v2299 = vunpack.c.h.b16 %v2136
      %v2300 = vunpack.c.l.b16 %v2137
      %v2301 = vunpack.c.h.b16 %v2137
      %v2302 = vunpack.c.l.b16 %v2138
      %v2303 = vunpack.c.h.b16 %v2138
      %v2304 = vunpack.c.l.b16 %v2139
      %v2305 = vunpack.c.h.b16 %v2139
      %v2306 = vunpack.c.l.b16 %v2140
      %v2307 = vunpack.c.h.b16 %v2140
      %v2308 = vunpack.c.l.b16 %v2141
      %v2309 = vunpack.c.h.b16 %v2141
      %v2310 = vunpack.c.l.b16 %v2142
      %v2311 = vunpack.c.h.b16 %v2142
      %v2312 = vunpack.c.l.b16 %v2143
      %v2313 = vunpack.c.h.b16 %v2143
      %v2314 = vunpack.c.l.b16 %v2144
      %v2315 = vunpack.c.h.b16 %v2144
      %v2316 = vunpack.c.l.b16 %v2145
      %v2317 = vunpack.c.h.b16 %v2145
      %v2318 = vunpack.c.l.b16 %v2146
      %v2319 = vunpack.c.h.b16 %v2146
      %v2320 = vunpack.c.l.b16 %v2147
      %v2321 = vunpack.c.h.b16 %v2147
      %v2322 = vunpack.c.l.b16 %v2148
      %v2323 = vunpack.c.h.b16 %v2148
      %v2324 = vunpack.c.l.b16 %v2149
      %v2325 = vunpack.c.h.b16 %v2149
      %v2326 = vunpack.c.l.b16 %v2150
      %v2327 = vunpack.c.h.b16 %v2150
      %v2328 = vunpack.c.l.b16 %v2151
      %v2329 = vunpack.c.h.b16 %v2151
      %v2330 = vunpack.c.l.b16 %v2152
      %v2331 = vunpack.c.h.b16 %v2152
      %v2332 = vunpack.c.l.b16 %v2153
      %v2333 = vunpack.c.h.b16 %v2153
      %v2334 = vunpack.c.l.b16 %v2154
      %v2335 = vunpack.c.h.b16 %v2154
      %v2336 = vunpack.c.l.b16 %v2155
      %v2337 = vunpack.c.h.b16 %v2155
      %v2338 = vunpack.c.l.b16 %v2156
      %v2339 = vunpack.c.h.b16 %v2156
      %v2340 = vunpack.c.l.b16 %v2157
      %v2341 = vunpack.c.h.b16 %v2157
      %v2342 = vunpack.c.l.b16 %v2158
      %v2343 = vunpack.c.h.b16 %v2158
      %v2344 = vunpack.c.l.b16 %v2159
      %v2345 = vunpack.c.h.b16 %v2159
      %v2346 = vunpack.c.l.b16 %v2160
      %v2347 = vunpack.c.h.b16 %v2160
      %v2348 = vunpack.c.l.b16 %v2161
      %v2349 = vunpack.c.h.b16 %v2161
      %v2350 = vunpack.c.l.b16 %v2162
      %v2351 = vunpack.c.h.b16 %v2162
      %v2352 = vunpack.c.l.b16 %v2163
      %v2353 = vunpack.c.h.b16 %v2163
      %v2354 = vunpack.c.l.b16 %v2164
      %v2355 = vunpack.c.h.b16 %v2164
      %v2356 = vunpack.c.l.b16 %v2165
      %v2357 = vunpack.c.h.b16 %v2165
      %v2358 = vunpack.c.l.b16 %v2166
      %v2359 = vunpack.c.h.b16 %v2166
      %v2360 = vunpack.c.l.b16 %v2167
      %v2361 = vunpack.c.h.b16 %v2167
      %v2362 = vunpack.c.l.b16 %v2168
      %v2363 = vunpack.c.h.b16 %v2168
      %v2364 = vunpack.c.l.b16 %v2169
      %v2365 = vunpack.c.h.b16 %v2169
      %v2366 = vunpack.c.l.b16 %v2170
      %v2367 = vunpack.c.h.b16 %v2170
      %v2368 = vunpack.c.l.b16 %v2171
      %v2369 = vunpack.c.h.b16 %v2171
      %v2370 = vunpack.c.l.b16 %v2172
      %v2371 = vunpack.c.h.b16 %v2172
      %v2372 = vunpack.c.l.b16 %v2173
      %v2373 = vunpack.c.h.b16 %v2173
      %v2374 = vunpack.c.l.b16 %v2174
      %v2375 = vunpack.c.h.b16 %v2174
      %v2376 = vunpack.c.l.b16 %v2175
      %v2377 = vunpack.c.h.b16 %v2175
      %v2378 = vunpack.c.l.b16 %v2176
      %v2379 = vunpack.c.h.b16 %v2176
      %v2380 = vunpack.c.l.b16 %v2177
      %v2381 = vunpack.c.h.b16 %v2177
      %v2382 = vunpack.c.l.b16 %v2178
      %v2383 = vunpack.c.h.b16 %v2178
      %v2384 = vunpack.c.l.b16 %v2179
      %v2385 = vunpack.c.h.b16 %v2179
      %v2386 = vunpack.c.l.b16 %v2180
      %v2387 = vunpack.c.h.b16 %v2180
      %v2388 = vunpack.c.l.b16 %v2181
      %v2389 = vunpack.c.h.b16 %v2181
      %v2390 = vunpack.c.l.b16 %v2182
      %v2391 = vunpack.c.h.b16 %v2182
      %v2392 = vunpack.c.l.b16 %v2183
      %v2393 = vunpack.c.h.b16 %v2183
      %v2394 = vunpack.c.l.b16 %v2184
      %v2395 = vunpack.c.h.b16 %v2184
      %v2396 = vunpack.c.l.b16 %v2185
      %v2397 = vunpack.c.h.b16 %v2185
      %v2398 = vunpack.c.l.b16 %v2186
      %v2399 = vunpack.c.h.b16 %v2186
      %v2400 = vunpack.c.l.b16 %v2187
      %v2401 = vunpack.c.h.b16 %v2187
      %v2402 = vpack.c.b16 %v2278, %v2274
      %v2403 = vpack.c.b16 %v2279, %v2275
      %v2404 = vpack.c.b16 %v2280, %v2276
      %v2405 = vpack.c.b16 %v2281, %v2277
      %v2406 = vpack.c.b16 %v2286, %v2282
      %v2407 = vpack.c.b16 %v2287, %v2283
      %v2408 = vpack.c.b16 %v2288, %v2284
      %v2409 = vpack.c.b16 %v2289, %v2285
      %v2410 = vpack.c.b16 %v2294, %v2290
      %v2411 = vpack.c.b16 %v2295, %v2291
      %v2412 = vpack.c.b16 %v2296, %v2292
      %v2413 = vpack.c.b16 %v2297, %v2293
      %v2414 = vpack.c.b16 %v2302, %v2298
      %v2415 = vpack.c.b16 %v2303, %v2299
      %v2416 = vpack.c.b16 %v2304, %v2300
      %v2417 = vpack.c.b16 %v2305, %v2301
      %v2418 = vpack.c.b16 %v2310, %v2306
      %v2419 = vpack.c.b16 %v2311, %v2307
      %v2420 = vpack.c.b16 %v2312, %v2308
      %v2421 = vpack.c.b16 %v2313, %v2309
      %v2422 = vpack.c.b16 %v2318, %v2314
      %v2423 = vpack.c.b16 %v2319, %v2315
      %v2424 = vpack.c.b16 %v2320, %v2316
      %v2425 = vpack.c.b16 %v2321, %v2317
      %v2426 = vpack.c.b16 %v2326, %v2322
      %v2427 = vpack.c.b16 %v2327, %v2323
      %v2428 = vpack.c.b16 %v2328, %v2324
      %v2429 = vpack.c.b16 %v2329, %v2325
      %v2430 = vpack.c.b16 %v2334, %v2330
      %v2431 = vpack.c.b16 %v2335, %v2331
      %v2432 = vpack.c.b16 %v2336, %v2332
      %v2433 = vpack.c.b16 %v2337, %v2333
      %v2434 = vpack.c.b16 %v2342, %v2338
      %v2435 = vpack.c.b16 %v2343, %v2339
      %v2436 = vpack.c.b16 %v2344, %v2340
      %v2437 = vpack.c.b16 %v2345, %v2341
      %v2438 = vpack.c.b16 %v2350, %v2346
      %v2439 = vpack.c.b16 %v2351, %v2347
      %v2440 = vpack.c.b16 %v2352, %v2348
      %v2441 = vpack.c.b16 %v2353, %v2349
      %v2442 = vpack.c.b16 %v2358, %v2354
      %v2443 = vpack.c.b16 %v2359, %v2355
      %v2444 = vpack.c.b16 %v2360, %v2356
      %v2445 = vpack.c.b16 %v2361, %v2357
      %v2446 = vpack.c.b16 %v2366, %v2362
      %v2447 = vpack.c.b16 %v2367, %v2363
      %v2448 = vpack.c.b16 %v2368, %v2364
      %v2449 = vpack.c.b16 %v2369, %v2365
      %v2450 = vpack.c.b16 %v2374, %v2370
      %v2451 = vpack.c.b16 %v2375, %v2371
      %v2452 = vpack.c.b16 %v2376, %v2372
      %v2453 = vpack.c.b16 %v2377, %v2373
      %v2454 = vpack.c.b16 %v2382, %v2378
      %v2455 = vpack.c.b16 %v2383, %v2379
      %v2456 = vpack.c.b16 %v2384, %v2380
      %v2457 = vpack.c.b16 %v2385, %v2381
      %v2458 = vpack.c.b16 %v2390, %v2386
      %v2459 = vpack.c.b16 %v2391, %v2387
      %v2460 = vpack.c.b16 %v2392, %v2388
      %v2461 = vpack.c.b16 %v2393, %v2389
      %v2462 = vpack.c.b16 %v2398, %v2394
      %v2463 = vpack.c.b16 %v2399, %v2395
      %v2464 = vpack.c.b16 %v2400, %v2396
      %v2465 = vpack.c.b16 %v2401, %v2397
      %2530 = vmatprep.subr.bf16.mxu0 %v2403
      %2531 = vmatpush1.bf16.msra.mxu0 %v2402
      %2532 = vmatprep.subr.bf16.mxu0 %v2407
      %2533 = vmatpush1.bf16.msra.mxu0 %v2406
      %2534 = vmatprep.subr.bf16.mxu0 %v2411
      %2535 = vmatpush1.bf16.msra.mxu0 %v2410
      %2536 = vmatprep.subr.bf16.mxu0 %v2415
      %2537 = vmatpush1.bf16.msra.mxu0 %v2414
      %2538 = vmatprep.subr.bf16.mxu0 %v2419
      %2539 = vmatpush1.bf16.msra.mxu0 %v2418
      %2540 = vmatprep.subr.bf16.mxu0 %v2423
      %2541 = vmatpush1.bf16.msra.mxu0 %v2422
      %2542 = vmatprep.subr.bf16.mxu0 %v2427
      %2543 = vmatpush1.bf16.msra.mxu0 %v2426
      %2544 = vmatprep.subr.bf16.mxu0 %v2431
      %2545 = vmatpush1.bf16.msra.mxu0 %v2430
      %2546 = vmatprep.subr.bf16.mxu0 %v2435
      %2547 = vmatpush1.bf16.msra.mxu0 %v2434
      %2548 = vmatprep.subr.bf16.mxu0 %v2439
      %2549 = vmatpush1.bf16.msra.mxu0 %v2438
      %2550 = vmatprep.subr.bf16.mxu0 %v2443
      %2551 = vmatpush1.bf16.msra.mxu0 %v2442
      %2552 = vmatprep.subr.bf16.mxu0 %v2447
      %2553 = vmatpush1.bf16.msra.mxu0 %v2446
      %2554 = vmatprep.subr.bf16.mxu0 %v2451
      %2555 = vmatpush1.bf16.msra.mxu0 %v2450
      %2556 = vmatprep.subr.bf16.mxu0 %v2455
      %2557 = vmatpush1.bf16.msra.mxu0 %v2454
      %2558 = vmatprep.subr.bf16.mxu0 %v2459
      %2559 = vmatpush1.bf16.msra.mxu0 %v2458
      %2560 = vmatprep.subr.bf16.mxu0 %v2463
      %2561 = vmatpush1.bf16.msra.mxu0 %v2462
      %2562 = vmatprep.mubr.bf16.mxu0 %v2121
      %2563 = vmatmul.mubr.bf16.gmra.mrb[0].mxu0 %v2120
      %v2564 = vpop.f32.mrb[0].mxu0
      %v2565 = vadd.f32 %v2193, %v2564
      %v2566 = vpop.f32.mrb[0].mxu0
      %v2567 = vadd.f32 %v2197, %v2566
      %v2568 = vpop.f32.mrb[0].mxu0
      %v2569 = vadd.f32 %v2193, %v2568
      %v2570 = vpop.f32.mrb[0].mxu0
      %v2571 = vadd.f32 %v2197, %v2570
      %2572 = vmatprep.mubr.bf16.mxu0 %v2123
      %2573 = vmatmul.mubr.bf16.gmra.mrb[0].mxu0 %v2122
      %v2574 = vpop.f32.mrb[0].mxu0
      %v2575 = vadd.f32 %v2193, %v2574
      %v2576 = vpop.f32.mrb[0].mxu0
      %v2577 = vadd.f32 %v2197, %v2576
      %v2578 = vpop.f32.mrb[0].mxu0
      %v2579 = vpop.f32.mrb[0].mxu0
      %2580 = vdwg.mxu0
      %2581 = vmatprep.subr.bf16.mxu0 %v2405
      %2582 = vmatpush1.bf16.msra.mxu0 %v2404
      %2583 = vmatprep.subr.bf16.mxu0 %v2409
      %2584 = vmatpush1.bf16.msra.mxu0 %v2408
      %2585 = vmatprep.subr.bf16.mxu0 %v2413
      %2586 = vmatpush1.bf16.msra.mxu0 %v2412
      %2587 = vmatprep.subr.bf16.mxu0 %v2417
      %2588 = vmatpush1.bf16.msra.mxu0 %v2416
      %2589 = vmatprep.subr.bf16.mxu0 %v2421
      %2590 = vmatpush1.bf16.msra.mxu0 %v2420
      %2591 = vmatprep.subr.bf16.mxu0 %v2425
      %2592 = vmatpush1.bf16.msra.mxu0 %v2424
      %2593 = vmatprep.subr.bf16.mxu0 %v2429
      %2594 = vmatpush1.bf16.msra.mxu0 %v2428
      %2595 = vmatprep.subr.bf16.mxu0 %v2433
      %2596 = vmatpush1.bf16.msra.mxu0 %v2432
      %2597 = vmatprep.subr.bf16.mxu0 %v2437
      %2598 = vmatpush1.bf16.msra.mxu0 %v2436
      %2599 = vmatprep.subr.bf16.mxu0 %v2441
      %2600 = vmatpush1.bf16.msra.mxu0 %v2440
      %2601 = vmatprep.subr.bf16.mxu0 %v2445
      %2602 = vmatpush1.bf16.msra.mxu0 %v2444
      %2603 = vmatprep.subr.bf16.mxu0 %v2449
      %2604 = vmatpush1.bf16.msra.mxu0 %v2448
      %2605 = vmatprep.subr.bf16.mxu0 %v2453
      %2606 = vmatpush1.bf16.msra.mxu0 %v2452
      %2607 = vmatprep.subr.bf16.mxu0 %v2457
      %2608 = vmatpush1.bf16.msra.mxu0 %v2456
      %2609 = vmatprep.subr.bf16.mxu0 %v2461
      %2610 = vmatpush1.bf16.msra.mxu0 %v2460
      %2611 = vmatprep.subr.bf16.mxu0 %v2465
      %2612 = vmatpush1.bf16.msra.mxu0 %v2464
      %2613 = vmatprep.mubr.bf16.mxu0 %v2121
      %2614 = vmatmul.mubr.bf16.gmra.mrb[0].mxu0 %v2120
      %v2615 = vpop.f32.mrb[0].mxu0
      %v2616 = vadd.f32 %v2201, %v2615
      %v2617 = vpop.f32.mrb[0].mxu0
      %v2618 = vadd.f32 %v2205, %v2617
      %v2619 = vpop.f32.mrb[0].mxu0
      %v2620 = vadd.f32 %v2201, %v2619
      %v2621 = vpop.f32.mrb[0].mxu0
      %v2622 = vadd.f32 %v2205, %v2621
      %2623 = vmatprep.mubr.bf16.mxu0 %v2123
      %2624 = vmatmul.mubr.bf16.gmra.mrb[0].mxu0 %v2122
      %v2625 = vpop.f32.mrb[0].mxu0
      %v2626 = vadd.f32 %v2201, %v2625
      %v2627 = vpop.f32.mrb[0].mxu0
      %v2628 = vadd.f32 %v2205, %v2627
      %v2629 = vpop.f32.mrb[0].mxu0
      %v2630 = vpop.f32.mrb[0].mxu0
      %2631 = vdwg.mxu0
      %v2632 = vmul.f32 %v2565, 0.5
      %v2633 = vmul.f32 %v2567, 0.5
      %v2634 = vmul.f32 %v2616, 0.5
      %v2635 = vmul.f32 %v2618, 0.5
      %v2636 = vmul.f32 %v2569, 0.5
      %v2637 = vmul.f32 %v2571, 0.5
      %v2638 = vmul.f32 %v2620, 0.5
      %v2639 = vmul.f32 %v2622, 0.5
      %v2640 = vmul.f32 %v2575, 0.5
      %v2641 = vmul.f32 %v2577, 0.5
      %v2642 = vmul.f32 %v2626, 0.5
      %v2643 = vmul.f32 %v2628, 0.5
      %v2644 = vmul.f32 %v2565, 0.70710677
      %v2645 = vmul.f32 %v2567, 0.70710677
      %v2646 = vmul.f32 %v2616, 0.70710677
      %v2647 = vmul.f32 %v2618, 0.70710677
      %v2648 = vmul.f32 %v2569, 0.70710677
      %v2649 = vmul.f32 %v2571, 0.70710677
      %v2650 = vmul.f32 %v2620, 0.70710677
      %v2651 = vmul.f32 %v2622, 0.70710677
      %v2652 = vmul.f32 %v2575, 0.70710677
      %v2653 = vmul.f32 %v2577, 0.70710677
      %v2654 = vmul.f32 %v2626, 0.70710677
      %v2655 = vmul.f32 %v2628, 0.70710677
      %vm2656 = vcmp.ge.f32.partialorder %v2644, 0.0
      %vm2657 = vcmp.ge.f32.partialorder %v2645, 0.0
      %vm2658 = vcmp.ge.f32.partialorder %v2646, 0.0
      %vm2659 = vcmp.ge.f32.partialorder %v2647, 0.0
      %vm2660 = vcmp.ge.f32.partialorder %v2648, 0.0
      %vm2661 = vcmp.ge.f32.partialorder %v2649, 0.0
      %vm2662 = vcmp.ge.f32.partialorder %v2650, 0.0
      %vm2663 = vcmp.ge.f32.partialorder %v2651, 0.0
      %vm2664 = vcmp.ge.f32.partialorder %v2652, 0.0
      %vm2665 = vcmp.ge.f32.partialorder %v2653, 0.0
      %vm2666 = vcmp.ge.f32.partialorder %v2654, 0.0
      %vm2667 = vcmp.ge.f32.partialorder %v2655, 0.0
      %v2668 = vsel %vm2656, 1.0, -1.0
      %v2669 = vsel %vm2657, 1.0, -1.0
      %v2670 = vsel %vm2658, 1.0, -1.0
      %v2671 = vsel %vm2659, 1.0, -1.0
      %v2672 = vsel %vm2660, 1.0, -1.0
      %v2673 = vsel %vm2661, 1.0, -1.0
      %v2674 = vsel %vm2662, 1.0, -1.0
      %v2675 = vsel %vm2663, 1.0, -1.0
      %v2676 = vsel %vm2664, 1.0, -1.0
      %v2677 = vsel %vm2665, 1.0, -1.0
      %v2678 = vsel %vm2666, 1.0, -1.0
      %v2679 = vsel %vm2667, 1.0, -1.0
      %v2680 = vand.u32 2147483647, %v2644
      %v2681 = vand.u32 2147483647, %v2645
      %v2682 = vand.u32 2147483647, %v2646
      %v2683 = vand.u32 2147483647, %v2647
      %v2684 = vand.u32 2147483647, %v2648
      %v2685 = vand.u32 2147483647, %v2649
      %v2686 = vand.u32 2147483647, %v2650
      %v2687 = vand.u32 2147483647, %v2651
      %v2688 = vand.u32 2147483647, %v2652
      %v2689 = vand.u32 2147483647, %v2653
      %v2690 = vand.u32 2147483647, %v2654
      %v2691 = vand.u32 2147483647, %v2655
      %v2692 = vmul.f32 %v2680, 0.3275911
      %v2693 = vmul.f32 %v2681, 0.3275911
      %v2694 = vmul.f32 %v2682, 0.3275911
      %v2695 = vmul.f32 %v2683, 0.3275911
      %v2696 = vmul.f32 %v2684, 0.3275911
      %v2697 = vmul.f32 %v2685, 0.3275911
      %v2698 = vmul.f32 %v2686, 0.3275911
      %v2699 = vmul.f32 %v2687, 0.3275911
      %v2700 = vmul.f32 %v2688, 0.3275911
      %v2701 = vmul.f32 %v2689, 0.3275911
      %v2702 = vmul.f32 %v2690, 0.3275911
      %v2703 = vmul.f32 %v2691, 0.3275911
      %v2704 = vadd.f32 %v2692, 1.0
      %v2705 = vadd.f32 %v2693, 1.0
      %v2706 = vadd.f32 %v2694, 1.0
      %v2707 = vadd.f32 %v2695, 1.0
      %v2708 = vadd.f32 %v2696, 1.0
      %v2709 = vadd.f32 %v2697, 1.0
      %v2710 = vadd.f32 %v2698, 1.0
      %v2711 = vadd.f32 %v2699, 1.0
      %v2712 = vadd.f32 %v2700, 1.0
      %v2713 = vadd.f32 %v2701, 1.0
      %v2714 = vadd.f32 %v2702, 1.0
      %v2715 = vadd.f32 %v2703, 1.0
      %v2716 = vrcp.pop %v2704
      %v2717 = vmul.f32 1.0, %v2716
      %v2718 = vrcp.pop %v2705
      %v2719 = vmul.f32 1.0, %v2718
      %v2720 = vrcp.pop %v2706
      %v2721 = vmul.f32 1.0, %v2720
      %v2722 = vrcp.pop %v2707
      %v2723 = vmul.f32 1.0, %v2722
      %v2724 = vrcp.pop %v2708
      %v2725 = vmul.f32 1.0, %v2724
      %v2726 = vrcp.pop %v2709
      %v2727 = vmul.f32 1.0, %v2726
      %v2728 = vrcp.pop %v2710
      %v2729 = vmul.f32 1.0, %v2728
      %v2730 = vrcp.pop %v2711
      %v2731 = vmul.f32 1.0, %v2730
      %v2732 = vrcp.pop %v2712
      %v2733 = vmul.f32 1.0, %v2732
      %v2734 = vrcp.pop %v2713
      %v2735 = vmul.f32 1.0, %v2734
      %v2736 = vrcp.pop %v2714
      %v2737 = vmul.f32 1.0, %v2736
      %v2738 = vrcp.pop %v2715
      %v2739 = vmul.f32 1.0, %v2738
      %v2740 = vmul.f32 %v2717, 1.0614054
      %v2741 = vmul.f32 %v2719, 1.0614054
      %v2742 = vmul.f32 %v2721, 1.0614054
      %v2743 = vmul.f32 %v2723, 1.0614054
      %v2744 = vmul.f32 %v2725, 1.0614054
      %v2745 = vmul.f32 %v2727, 1.0614054
      %v2746 = vmul.f32 %v2729, 1.0614054
      %v2747 = vmul.f32 %v2731, 1.0614054
      %v2748 = vmul.f32 %v2733, 1.0614054
      %v2749 = vmul.f32 %v2735, 1.0614054
      %v2750 = vmul.f32 %v2737, 1.0614054
      %v2751 = vmul.f32 %v2739, 1.0614054
      %v2752 = vadd.f32 %v2740, -1.4531521
      %v2753 = vadd.f32 %v2741, -1.4531521
      %v2754 = vadd.f32 %v2742, -1.4531521
      %v2755 = vadd.f32 %v2743, -1.4531521
      %v2756 = vadd.f32 %v2744, -1.4531521
      %v2757 = vadd.f32 %v2745, -1.4531521
      %v2758 = vadd.f32 %v2746, -1.4531521
      %v2759 = vadd.f32 %v2747, -1.4531521
      %v2760 = vadd.f32 %v2748, -1.4531521
      %v2761 = vadd.f32 %v2749, -1.4531521
      %v2762 = vadd.f32 %v2750, -1.4531521
      %v2763 = vadd.f32 %v2751, -1.4531521
      %v2764 = vmul.f32 %v2752, %v2717
      %v2765 = vmul.f32 %v2753, %v2719
      %v2766 = vmul.f32 %v2754, %v2721
      %v2767 = vmul.f32 %v2755, %v2723
      %v2768 = vmul.f32 %v2756, %v2725
      %v2769 = vmul.f32 %v2757, %v2727
      %v2770 = vmul.f32 %v2758, %v2729
      %v2771 = vmul.f32 %v2759, %v2731
      %v2772 = vmul.f32 %v2760, %v2733
      %v2773 = vmul.f32 %v2761, %v2735
      %v2774 = vmul.f32 %v2762, %v2737
      %v2775 = vmul.f32 %v2763, %v2739
      %v2776 = vadd.f32 %v2764, 1.4214138
      %v2777 = vadd.f32 %v2765, 1.4214138
      %v2778 = vadd.f32 %v2766, 1.4214138
      %v2779 = vadd.f32 %v2767, 1.4214138
      %v2780 = vadd.f32 %v2768, 1.4214138
      %v2781 = vadd.f32 %v2769, 1.4214138
      %v2782 = vadd.f32 %v2770, 1.4214138
      %v2783 = vadd.f32 %v2771, 1.4214138
      %v2784 = vadd.f32 %v2772, 1.4214138
      %v2785 = vadd.f32 %v2773, 1.4214138
      %v2786 = vadd.f32 %v2774, 1.4214138
      %v2787 = vadd.f32 %v2775, 1.4214138
      %v2788 = vmul.f32 %v2776, %v2717
      %v2789 = vmul.f32 %v2777, %v2719
      %v2790 = vmul.f32 %v2778, %v2721
      %v2791 = vmul.f32 %v2779, %v2723
      %v2792 = vmul.f32 %v2780, %v2725
      %v2793 = vmul.f32 %v2781, %v2727
      %v2794 = vmul.f32 %v2782, %v2729
      %v2795 = vmul.f32 %v2783, %v2731
      %v2796 = vmul.f32 %v2784, %v2733
      %v2797 = vmul.f32 %v2785, %v2735
      %v2798 = vmul.f32 %v2786, %v2737
      %v2799 = vmul.f32 %v2787, %v2739
      %v2800 = vadd.f32 %v2788, -0.28449672
      %v2801 = vadd.f32 %v2789, -0.28449672
      %v2802 = vadd.f32 %v2790, -0.28449672
      %v2803 = vadd.f32 %v2791, -0.28449672
      %v2804 = vadd.f32 %v2792, -0.28449672
      %v2805 = vadd.f32 %v2793, -0.28449672
      %v2806 = vadd.f32 %v2794, -0.28449672
      %v2807 = vadd.f32 %v2795, -0.28449672
      %v2808 = vadd.f32 %v2796, -0.28449672
      %v2809 = vadd.f32 %v2797, -0.28449672
      %v2810 = vadd.f32 %v2798, -0.28449672
      %v2811 = vadd.f32 %v2799, -0.28449672
      %v2812 = vmul.f32 %v2800, %v2717
      %v2813 = vmul.f32 %v2801, %v2719
      %v2814 = vmul.f32 %v2802, %v2721
      %v2815 = vmul.f32 %v2803, %v2723
      %v2816 = vmul.f32 %v2804, %v2725
      %v2817 = vmul.f32 %v2805, %v2727
      %v2818 = vmul.f32 %v2806, %v2729
      %v2819 = vmul.f32 %v2807, %v2731
      %v2820 = vmul.f32 %v2808, %v2733
      %v2821 = vmul.f32 %v2809, %v2735
      %v2822 = vmul.f32 %v2810, %v2737
      %v2823 = vmul.f32 %v2811, %v2739
      %v2824 = vadd.f32 %v2812, 0.2548296
      %v2825 = vadd.f32 %v2813, 0.2548296
      %v2826 = vadd.f32 %v2814, 0.2548296
      %v2827 = vadd.f32 %v2815, 0.2548296
      %v2828 = vadd.f32 %v2816, 0.2548296
      %v2829 = vadd.f32 %v2817, 0.2548296
      %v2830 = vadd.f32 %v2818, 0.2548296
      %v2831 = vadd.f32 %v2819, 0.2548296
      %v2832 = vadd.f32 %v2820, 0.2548296
      %v2833 = vadd.f32 %v2821, 0.2548296
      %v2834 = vadd.f32 %v2822, 0.2548296
      %v2835 = vadd.f32 %v2823, 0.2548296
      %v2836 = vmul.f32 %v2824, %v2717
      %v2837 = vmul.f32 %v2825, %v2719
      %v2838 = vmul.f32 %v2826, %v2721
      %v2839 = vmul.f32 %v2827, %v2723
      %v2840 = vmul.f32 %v2828, %v2725
      %v2841 = vmul.f32 %v2829, %v2727
      %v2842 = vmul.f32 %v2830, %v2729
      %v2843 = vmul.f32 %v2831, %v2731
      %v2844 = vmul.f32 %v2832, %v2733
      %v2845 = vmul.f32 %v2833, %v2735
      %v2846 = vmul.f32 %v2834, %v2737
      %v2847 = vmul.f32 %v2835, %v2739
      %v2848 = vsub.f32 0.0, %v2680
      %v2849 = vsub.f32 0.0, %v2681
      %v2850 = vsub.f32 0.0, %v2682
      %v2851 = vsub.f32 0.0, %v2683
      %v2852 = vsub.f32 0.0, %v2684
      %v2853 = vsub.f32 0.0, %v2685
      %v2854 = vsub.f32 0.0, %v2686
      %v2855 = vsub.f32 0.0, %v2687
      %v2856 = vsub.f32 0.0, %v2688
      %v2857 = vsub.f32 0.0, %v2689
      %v2858 = vsub.f32 0.0, %v2690
      %v2859 = vsub.f32 0.0, %v2691
      %v2860 = vmul.f32 %v2848, %v2680
      %v2861 = vmul.f32 %v2849, %v2681
      %v2862 = vmul.f32 %v2850, %v2682
      %v2863 = vmul.f32 %v2851, %v2683
      %v2864 = vmul.f32 %v2852, %v2684
      %v2865 = vmul.f32 %v2853, %v2685
      %v2866 = vmul.f32 %v2854, %v2686
      %v2867 = vmul.f32 %v2855, %v2687
      %v2868 = vmul.f32 %v2856, %v2688
      %v2869 = vmul.f32 %v2857, %v2689
      %v2870 = vmul.f32 %v2858, %v2690
      %v2871 = vmul.f32 %v2859, %v2691
      %v2872 = vmul.f32 %v2860, 1.442695
      %v2873 = vpow.pop %v2872
      %v2874 = vmul.f32 %v2861, 1.442695
      %v2875 = vpow.pop %v2874
      %v2876 = vmul.f32 %v2862, 1.442695
      %v2877 = vpow.pop %v2876
      %v2878 = vmul.f32 %v2863, 1.442695
      %v2879 = vpow.pop %v2878
      %v2880 = vmul.f32 %v2864, 1.442695
      %v2881 = vpow.pop %v2880
      %v2882 = vmul.f32 %v2865, 1.442695
      %v2883 = vpow.pop %v2882
      %v2884 = vmul.f32 %v2866, 1.442695
      %v2885 = vpow.pop %v2884
      %v2886 = vmul.f32 %v2867, 1.442695
      %v2887 = vpow.pop %v2886
      %v2888 = vmul.f32 %v2868, 1.442695
      %v2889 = vpow.pop %v2888
      %v2890 = vmul.f32 %v2869, 1.442695
      %v2891 = vpow.pop %v2890
      %v2892 = vmul.f32 %v2870, 1.442695
      %v2893 = vpow.pop %v2892
      %v2894 = vmul.f32 %v2871, 1.442695
      %v2895 = vpow.pop %v2894
      %v2896 = vmul.f32 %v2836, %v2873
      %v2897 = vmul.f32 %v2837, %v2875
      %v2898 = vmul.f32 %v2838, %v2877
      %v2899 = vmul.f32 %v2839, %v2879
      %v2900 = vmul.f32 %v2840, %v2881
      %v2901 = vmul.f32 %v2841, %v2883
      %v2902 = vmul.f32 %v2842, %v2885
      %v2903 = vmul.f32 %v2843, %v2887
      %v2904 = vmul.f32 %v2844, %v2889
      %v2905 = vmul.f32 %v2845, %v2891
      %v2906 = vmul.f32 %v2846, %v2893
      %v2907 = vmul.f32 %v2847, %v2895
      %v2908 = vsub.f32 1.0, %v2896
      %v2909 = vsub.f32 1.0, %v2897
      %v2910 = vsub.f32 1.0, %v2898
      %v2911 = vsub.f32 1.0, %v2899
      %v2912 = vsub.f32 1.0, %v2900
      %v2913 = vsub.f32 1.0, %v2901
      %v2914 = vsub.f32 1.0, %v2902
      %v2915 = vsub.f32 1.0, %v2903
      %v2916 = vsub.f32 1.0, %v2904
      %v2917 = vsub.f32 1.0, %v2905
      %v2918 = vsub.f32 1.0, %v2906
      %v2919 = vsub.f32 1.0, %v2907
      %v2920 = vmul.f32 %v2668, %v2908
      %v2921 = vmul.f32 %v2669, %v2909
      %v2922 = vmul.f32 %v2670, %v2910
      %v2923 = vmul.f32 %v2671, %v2911
      %v2924 = vmul.f32 %v2672, %v2912
      %v2925 = vmul.f32 %v2673, %v2913
      %v2926 = vmul.f32 %v2674, %v2914
      %v2927 = vmul.f32 %v2675, %v2915
      %v2928 = vmul.f32 %v2676, %v2916
      %v2929 = vmul.f32 %v2677, %v2917
      %v2930 = vmul.f32 %v2678, %v2918
      %v2931 = vmul.f32 %v2679, %v2919
      %v2932 = vadd.f32 %v2920, 1.0
      %v2933 = vadd.f32 %v2921, 1.0
      %v2934 = vadd.f32 %v2922, 1.0
      %v2935 = vadd.f32 %v2923, 1.0
      %v2936 = vadd.f32 %v2924, 1.0
      %v2937 = vadd.f32 %v2925, 1.0
      %v2938 = vadd.f32 %v2926, 1.0
      %v2939 = vadd.f32 %v2927, 1.0
      %v2940 = vadd.f32 %v2928, 1.0
      %v2941 = vadd.f32 %v2929, 1.0
      %v2942 = vadd.f32 %v2930, 1.0
      %v2943 = vadd.f32 %v2931, 1.0
      %v2944 = vmul.f32 %v2632, %v2932
      %v2945 = vmul.f32 %v2633, %v2933
      %v2946 = vmul.f32 %v2634, %v2934
      %v2947 = vmul.f32 %v2635, %v2935
      %v2948 = vmul.f32 %v2636, %v2936
      %v2949 = vmul.f32 %v2637, %v2937
      %v2950 = vmul.f32 %v2638, %v2938
      %v2951 = vmul.f32 %v2639, %v2939
      %v2952 = vmul.f32 %v2640, %v2940
      %v2953 = vmul.f32 %v2641, %v2941
      %v2954 = vmul.f32 %v2642, %v2942
      %v2955 = vmul.f32 %v2643, %v2943
      %v2956 = vpack.c.bf16 %v2948, %v2944
      %v2957 = vpack.c.bf16 %v2949, %v2945
      %v2958 = vpack.c.bf16 %v2950, %v2946
      %v2959 = vpack.c.bf16 %v2951, %v2947
      %v2960 = vpack.c.bf16 %v2952, %v2952
      %v2961 = vpack.c.bf16 %v2953, %v2953
      %v2962 = vpack.c.bf16 %v2954, %v2954
      %v2963 = vpack.c.bf16 %v2955, %v2955
      %v2964 = vld [vmem:[%s600] sm:$0xff]
      %v2965 = vld [vmem:[%s600 + $0x8] sm:$0xff]
      %v2966 = vld [vmem:[%s600 + $0x10] sm:$0xff]
      %v2967 = vld [vmem:[%s600 + $0x18] sm:$0xff]
      %v2968 = vld [vmem:[%s600 + $0x20] sm:$0xff]
      %v2969 = vld [vmem:[%s600 + $0x28] sm:$0xff]
      %v2970 = vld [vmem:[%s600 + $0x30] sm:$0xff]
      %v2971 = vld [vmem:[%s600 + $0x38] sm:$0xff]
      %v2972 = vld [vmem:[%s600 + $0x40] sm:$0xff]
      %v2973 = vld [vmem:[%s600 + $0x48] sm:$0xff]
      %v2974 = vld [vmem:[%s600 + $0x50] sm:$0xff]
      %v2975 = vld [vmem:[%s600 + $0x58] sm:$0xff]
      %v2976 = vld [vmem:[%s600 + $0x60] sm:$0xff]
      %v2977 = vld [vmem:[%s600 + $0x68] sm:$0xff]
      %v2978 = vld [vmem:[%s600 + $0x70] sm:$0xff]
      %v2979 = vld [vmem:[%s600 + $0x78] sm:$0xff]
      %v2980 = vld [vmem:[%s600 + $0x80] sm:$0xff]
      %v2981 = vld [vmem:[%s600 + $0x88] sm:$0xff]
      %v2982 = vld [vmem:[%s600 + $0x90] sm:$0xff]
      %v2983 = vld [vmem:[%s600 + $0x98] sm:$0xff]
      %v2984 = vld [vmem:[%s600 + $0xa0] sm:$0xff]
      %v2985 = vld [vmem:[%s600 + $0xa8] sm:$0xff]
      %v2986 = vld [vmem:[%s600 + $0xb0] sm:$0xff]
      %v2987 = vld [vmem:[%s600 + $0xb8] sm:$0xff]
      %v2988 = vld [vmem:[%s600 + $0xc0] sm:$0xff]
      %v2989 = vld [vmem:[%s600 + $0xc8] sm:$0xff]
      %v2990 = vld [vmem:[%s600 + $0xd0] sm:$0xff]
      %v2991 = vld [vmem:[%s600 + $0xd8] sm:$0xff]
      %v2992 = vld [vmem:[%s600 + $0xe0] sm:$0xff]
      %v2993 = vld [vmem:[%s600 + $0xe8] sm:$0xff]
      %v2994 = vld [vmem:[%s600 + $0xf0] sm:$0xff]
      %v2995 = vld [vmem:[%s600 + $0xf8] sm:$0xff]
      %v2996 = vld [vmem:[%s600 + $0x100] sm:$0xff]
      %v2997 = vld [vmem:[%s600 + $0x108] sm:$0xff]
      %v2998 = vld [vmem:[%s600 + $0x110] sm:$0xff]
      %v2999 = vld [vmem:[%s600 + $0x118] sm:$0xff]
      %v3000 = vld [vmem:[%s600 + $0x120] sm:$0xff]
      %v3001 = vld [vmem:[%s600 + $0x128] sm:$0xff]
      %v3002 = vld [vmem:[%s600 + $0x130] sm:$0xff]
      %v3003 = vld [vmem:[%s600 + $0x138] sm:$0xff]
      %v3004 = vld [vmem:[%s600 + $0x140] sm:$0xff]
      %v3005 = vld [vmem:[%s600 + $0x148] sm:$0xff]
      %v3006 = vld [vmem:[%s600 + $0x150] sm:$0xff]
      %v3007 = vld [vmem:[%s600 + $0x158] sm:$0xff]
      %v3008 = vld [vmem:[%s600 + $0x160] sm:$0xff]
      %v3009 = vld [vmem:[%s600 + $0x168] sm:$0xff]
      %v3010 = vld [vmem:[%s600 + $0x170] sm:$0xff]
      %v3011 = vld [vmem:[%s600 + $0x178] sm:$0xff]
      %v3012 = vld [vmem:[%s600 + $0x180] sm:$0xff]
      %v3013 = vld [vmem:[%s600 + $0x188] sm:$0xff]
      %v3014 = vld [vmem:[%s600 + $0x190] sm:$0xff]
      %v3015 = vld [vmem:[%s600 + $0x198] sm:$0xff]
      %v3016 = vld [vmem:[%s600 + $0x1a0] sm:$0xff]
      %v3017 = vld [vmem:[%s600 + $0x1a8] sm:$0xff]
      %v3018 = vld [vmem:[%s600 + $0x1b0] sm:$0xff]
      %v3019 = vld [vmem:[%s600 + $0x1b8] sm:$0xff]
      %v3020 = vld [vmem:[%s600 + $0x1c0] sm:$0xff]
      %v3021 = vld [vmem:[%s600 + $0x1c8] sm:$0xff]
      %v3022 = vld [vmem:[%s600 + $0x1d0] sm:$0xff]
      %v3023 = vld [vmem:[%s600 + $0x1d8] sm:$0xff]
      %v3024 = vld [vmem:[%s600 + $0x1e0] sm:$0xff]
      %v3025 = vld [vmem:[%s600 + $0x1e8] sm:$0xff]
      %v3026 = vld [vmem:[%s600 + $0x1f0] sm:$0xff]
      %v3027 = vld [vmem:[%s600 + $0x1f8] sm:$0xff]
      %v3028 = vld [vmem:[%s604] sm:$0x3]
      %v3030 = vlaneseq
      %v3031 = vshrl.u32 %v3030, 7
      %v3032 = vsub.s32 0, %v3031
      %v3033 = vrot.slane %v3028, %v3032
      %v3034 = vlaneseq
      %v3035 = vshrl.u32 %v3034, 7
      %v3036 = vsub.s32 1, %v3035
      %v3037 = vrot.slane %v3028, %v3036
      %v3104 = vunpack.c.l.b16 %v2964
      %v3105 = vunpack.c.h.b16 %v2964
      %v3106 = vunpack.c.l.b16 %v2965
      %v3107 = vunpack.c.h.b16 %v2965
      %v3108 = vunpack.c.l.b16 %v2966
      %v3109 = vunpack.c.h.b16 %v2966
      %v3110 = vunpack.c.l.b16 %v2967
      %v3111 = vunpack.c.h.b16 %v2967
      %v3112 = vunpack.c.l.b16 %v2968
      %v3113 = vunpack.c.h.b16 %v2968
      %v3114 = vunpack.c.l.b16 %v2969
      %v3115 = vunpack.c.h.b16 %v2969
      %v3116 = vunpack.c.l.b16 %v2970
      %v3117 = vunpack.c.h.b16 %v2970
      %v3118 = vunpack.c.l.b16 %v2971
      %v3119 = vunpack.c.h.b16 %v2971
      %v3120 = vunpack.c.l.b16 %v2972
      %v3121 = vunpack.c.h.b16 %v2972
      %v3122 = vunpack.c.l.b16 %v2973
      %v3123 = vunpack.c.h.b16 %v2973
      %v3124 = vunpack.c.l.b16 %v2974
      %v3125 = vunpack.c.h.b16 %v2974
      %v3126 = vunpack.c.l.b16 %v2975
      %v3127 = vunpack.c.h.b16 %v2975
      %v3128 = vunpack.c.l.b16 %v2976
      %v3129 = vunpack.c.h.b16 %v2976
      %v3130 = vunpack.c.l.b16 %v2977
      %v3131 = vunpack.c.h.b16 %v2977
      %v3132 = vunpack.c.l.b16 %v2978
      %v3133 = vunpack.c.h.b16 %v2978
      %v3134 = vunpack.c.l.b16 %v2979
      %v3135 = vunpack.c.h.b16 %v2979
      %v3136 = vunpack.c.l.b16 %v2980
      %v3137 = vunpack.c.h.b16 %v2980
      %v3138 = vunpack.c.l.b16 %v2981
      %v3139 = vunpack.c.h.b16 %v2981
      %v3140 = vunpack.c.l.b16 %v2982
      %v3141 = vunpack.c.h.b16 %v2982
      %v3142 = vunpack.c.l.b16 %v2983
      %v3143 = vunpack.c.h.b16 %v2983
      %v3144 = vunpack.c.l.b16 %v2984
      %v3145 = vunpack.c.h.b16 %v2984
      %v3146 = vunpack.c.l.b16 %v2985
      %v3147 = vunpack.c.h.b16 %v2985
      %v3148 = vunpack.c.l.b16 %v2986
      %v3149 = vunpack.c.h.b16 %v2986
      %v3150 = vunpack.c.l.b16 %v2987
      %v3151 = vunpack.c.h.b16 %v2987
      %v3152 = vunpack.c.l.b16 %v2988
      %v3153 = vunpack.c.h.b16 %v2988
      %v3154 = vunpack.c.l.b16 %v2989
      %v3155 = vunpack.c.h.b16 %v2989
      %v3156 = vunpack.c.l.b16 %v2990
      %v3157 = vunpack.c.h.b16 %v2990
      %v3158 = vunpack.c.l.b16 %v2991
      %v3159 = vunpack.c.h.b16 %v2991
      %v3160 = vunpack.c.l.b16 %v2992
      %v3161 = vunpack.c.h.b16 %v2992
      %v3162 = vunpack.c.l.b16 %v2993
      %v3163 = vunpack.c.h.b16 %v2993
      %v3164 = vunpack.c.l.b16 %v2994
      %v3165 = vunpack.c.h.b16 %v2994
      %v3166 = vunpack.c.l.b16 %v2995
      %v3167 = vunpack.c.h.b16 %v2995
      %v3168 = vunpack.c.l.b16 %v2996
      %v3169 = vunpack.c.h.b16 %v2996
      %v3170 = vunpack.c.l.b16 %v2997
      %v3171 = vunpack.c.h.b16 %v2997
      %v3172 = vunpack.c.l.b16 %v2998
      %v3173 = vunpack.c.h.b16 %v2998
      %v3174 = vunpack.c.l.b16 %v2999
      %v3175 = vunpack.c.h.b16 %v2999
      %v3176 = vunpack.c.l.b16 %v3000
      %v3177 = vunpack.c.h.b16 %v3000
      %v3178 = vunpack.c.l.b16 %v3001
      %v3179 = vunpack.c.h.b16 %v3001
      %v3180 = vunpack.c.l.b16 %v3002
      %v3181 = vunpack.c.h.b16 %v3002
      %v3182 = vunpack.c.l.b16 %v3003
      %v3183 = vunpack.c.h.b16 %v3003
      %v3184 = vunpack.c.l.b16 %v3004
      %v3185 = vunpack.c.h.b16 %v3004
      %v3186 = vunpack.c.l.b16 %v3005
      %v3187 = vunpack.c.h.b16 %v3005
      %v3188 = vunpack.c.l.b16 %v3006
      %v3189 = vunpack.c.h.b16 %v3006
      %v3190 = vunpack.c.l.b16 %v3007
      %v3191 = vunpack.c.h.b16 %v3007
      %v3192 = vunpack.c.l.b16 %v3008
      %v3193 = vunpack.c.h.b16 %v3008
      %v3194 = vunpack.c.l.b16 %v3009
      %v3195 = vunpack.c.h.b16 %v3009
      %v3196 = vunpack.c.l.b16 %v3010
      %v3197 = vunpack.c.h.b16 %v3010
      %v3198 = vunpack.c.l.b16 %v3011
      %v3199 = vunpack.c.h.b16 %v3011
      %v3200 = vunpack.c.l.b16 %v3012
      %v3201 = vunpack.c.h.b16 %v3012
      %v3202 = vunpack.c.l.b16 %v3013
      %v3203 = vunpack.c.h.b16 %v3013
      %v3204 = vunpack.c.l.b16 %v3014
      %v3205 = vunpack.c.h.b16 %v3014
      %v3206 = vunpack.c.l.b16 %v3015
      %v3207 = vunpack.c.h.b16 %v3015
      %v3208 = vunpack.c.l.b16 %v3016
      %v3209 = vunpack.c.h.b16 %v3016
      %v3210 = vunpack.c.l.b16 %v3017
      %v3211 = vunpack.c.h.b16 %v3017
      %v3212 = vunpack.c.l.b16 %v3018
      %v3213 = vunpack.c.h.b16 %v3018
      %v3214 = vunpack.c.l.b16 %v3019
      %v3215 = vunpack.c.h.b16 %v3019
      %v3216 = vunpack.c.l.b16 %v3020
      %v3217 = vunpack.c.h.b16 %v3020
      %v3218 = vunpack.c.l.b16 %v3021
      %v3219 = vunpack.c.h.b16 %v3021
      %v3220 = vunpack.c.l.b16 %v3022
      %v3221 = vunpack.c.h.b16 %v3022
      %v3222 = vunpack.c.l.b16 %v3023
      %v3223 = vunpack.c.h.b16 %v3023
      %v3224 = vunpack.c.l.b16 %v3024
      %v3225 = vunpack.c.h.b16 %v3024
      %v3226 = vunpack.c.l.b16 %v3025
      %v3227 = vunpack.c.h.b16 %v3025
      %v3228 = vunpack.c.l.b16 %v3026
      %v3229 = vunpack.c.h.b16 %v3026
      %v3230 = vunpack.c.l.b16 %v3027
      %v3231 = vunpack.c.h.b16 %v3027
      %v3232 = vpack.c.b16 %v3106, %v3104
      %v3233 = vpack.c.b16 %v3107, %v3105
      %v3234 = vpack.c.b16 %v3110, %v3108
      %v3235 = vpack.c.b16 %v3111, %v3109
      %v3236 = vpack.c.b16 %v3114, %v3112
      %v3237 = vpack.c.b16 %v3115, %v3113
      %v3238 = vpack.c.b16 %v3118, %v3116
      %v3239 = vpack.c.b16 %v3119, %v3117
      %v3240 = vpack.c.b16 %v3122, %v3120
      %v3241 = vpack.c.b16 %v3123, %v3121
      %v3242 = vpack.c.b16 %v3126, %v3124
      %v3243 = vpack.c.b16 %v3127, %v3125
      %v3244 = vpack.c.b16 %v3130, %v3128
      %v3245 = vpack.c.b16 %v3131, %v3129
      %v3246 = vpack.c.b16 %v3134, %v3132
      %v3247 = vpack.c.b16 %v3135, %v3133
      %v3248 = vpack.c.b16 %v3138, %v3136
      %v3249 = vpack.c.b16 %v3139, %v3137
      %v3250 = vpack.c.b16 %v3142, %v3140
      %v3251 = vpack.c.b16 %v3143, %v3141
      %v3252 = vpack.c.b16 %v3146, %v3144
      %v3253 = vpack.c.b16 %v3147, %v3145
      %v3254 = vpack.c.b16 %v3150, %v3148
      %v3255 = vpack.c.b16 %v3151, %v3149
      %v3256 = vpack.c.b16 %v3154, %v3152
      %v3257 = vpack.c.b16 %v3155, %v3153
      %v3258 = vpack.c.b16 %v3158, %v3156
      %v3259 = vpack.c.b16 %v3159, %v3157
      %v3260 = vpack.c.b16 %v3162, %v3160
      %v3261 = vpack.c.b16 %v3163, %v3161
      %v3262 = vpack.c.b16 %v3166, %v3164
      %v3263 = vpack.c.b16 %v3167, %v3165
      %v3264 = vpack.c.b16 %v3170, %v3168
      %v3265 = vpack.c.b16 %v3171, %v3169
      %v3266 = vpack.c.b16 %v3174, %v3172
      %v3267 = vpack.c.b16 %v3175, %v3173
      %v3268 = vpack.c.b16 %v3178, %v3176
      %v3269 = vpack.c.b16 %v3179, %v3177
      %v3270 = vpack.c.b16 %v3182, %v3180
      %v3271 = vpack.c.b16 %v3183, %v3181
      %v3272 = vpack.c.b16 %v3186, %v3184
      %v3273 = vpack.c.b16 %v3187, %v3185
      %v3274 = vpack.c.b16 %v3190, %v3188
      %v3275 = vpack.c.b16 %v3191, %v3189
      %v3276 = vpack.c.b16 %v3194, %v3192
      %v3277 = vpack.c.b16 %v3195, %v3193
      %v3278 = vpack.c.b16 %v3198, %v3196
      %v3279 = vpack.c.b16 %v3199, %v3197
      %v3280 = vpack.c.b16 %v3202, %v3200
      %v3281 = vpack.c.b16 %v3203, %v3201
      %v3282 = vpack.c.b16 %v3206, %v3204
      %v3283 = vpack.c.b16 %v3207, %v3205
      %v3284 = vpack.c.b16 %v3210, %v3208
      %v3285 = vpack.c.b16 %v3211, %v3209
      %v3286 = vpack.c.b16 %v3214, %v3212
      %v3287 = vpack.c.b16 %v3215, %v3213
      %v3288 = vpack.c.b16 %v3218, %v3216
      %v3289 = vpack.c.b16 %v3219, %v3217
      %v3290 = vpack.c.b16 %v3222, %v3220
      %v3291 = vpack.c.b16 %v3223, %v3221
      %v3292 = vpack.c.b16 %v3226, %v3224
      %v3293 = vpack.c.b16 %v3227, %v3225
      %v3294 = vpack.c.b16 %v3230, %v3228
      %v3295 = vpack.c.b16 %v3231, %v3229
      %3360 = vmatprep.subr.bf16.mxu0 %v3233
      %3361 = vmatpush1.bf16.msra.mxu0 %v3232
      %3362 = vmatprep.subr.bf16.mxu0 %v3235
      %3363 = vmatpush1.bf16.msra.mxu0 %v3234
      %3364 = vmatprep.subr.bf16.mxu0 %v3237
      %3365 = vmatpush1.bf16.msra.mxu0 %v3236
      %3366 = vmatprep.subr.bf16.mxu0 %v3239
      %3367 = vmatpush1.bf16.msra.mxu0 %v3238
      %3368 = vmatprep.subr.bf16.mxu0 %v3241
      %3369 = vmatpush1.bf16.msra.mxu0 %v3240
      %3370 = vmatprep.subr.bf16.mxu0 %v3243
      %3371 = vmatpush1.bf16.msra.mxu0 %v3242
      %3372 = vmatprep.subr.bf16.mxu0 %v3245
      %3373 = vmatpush1.bf16.msra.mxu0 %v3244
      %3374 = vmatprep.subr.bf16.mxu0 %v3247
      %3375 = vmatpush1.bf16.msra.mxu0 %v3246
      %3376 = vmatprep.subr.bf16.mxu0 %v3249
      %3377 = vmatpush1.bf16.msra.mxu0 %v3248
      %3378 = vmatprep.subr.bf16.mxu0 %v3251
      %3379 = vmatpush1.bf16.msra.mxu0 %v3250
      %3380 = vmatprep.subr.bf16.mxu0 %v3253
      %3381 = vmatpush1.bf16.msra.mxu0 %v3252
      %3382 = vmatprep.subr.bf16.mxu0 %v3255
      %3383 = vmatpush1.bf16.msra.mxu0 %v3254
      %3384 = vmatprep.subr.bf16.mxu0 %v3257
      %3385 = vmatpush1.bf16.msra.mxu0 %v3256
      %3386 = vmatprep.subr.bf16.mxu0 %v3259
      %3387 = vmatpush1.bf16.msra.mxu0 %v3258
      %3388 = vmatprep.subr.bf16.mxu0 %v3261
      %3389 = vmatpush1.bf16.msra.mxu0 %v3260
      %3390 = vmatprep.subr.bf16.mxu0 %v3263
      %3391 = vmatpush1.bf16.msra.mxu0 %v3262
      %3392 = vmatprep.mubr.bf16.mxu0 %v2957
      %3393 = vmatmul.mubr.bf16.gmra.mrb[0].mxu0 %v2956
      %v3394 = vpop.f32.mrb[0].mxu0
      %v3395 = vadd.f32 %v3033, %v3394
      %v3396 = vpop.f32.mrb[0].mxu0
      %v3397 = vadd.f32 %v3037, %v3396
      %v3398 = vpop.f32.mrb[0].mxu0
      %v3399 = vadd.f32 %v3033, %v3398
      %v3400 = vpop.f32.mrb[0].mxu0
      %v3401 = vadd.f32 %v3037, %v3400
      %3402 = vmatprep.mubr.bf16.mxu0 %v2961
      %3403 = vmatmul.mubr.bf16.gmra.mrb[0].mxu0 %v2960
      %v3404 = vpop.f32.mrb[0].mxu0
      %v3405 = vadd.f32 %v3033, %v3404
      %v3406 = vpop.f32.mrb[0].mxu0
      %v3407 = vadd.f32 %v3037, %v3406
      %v3408 = vpop.f32.mrb[0].mxu0
      %v3409 = vpop.f32.mrb[0].mxu0
      %3410 = vdwg.mxu0
      %3411 = vmatprep.subr.bf16.mxu0 %v3265
      %3412 = vmatpush1.bf16.msra.mxu0 %v3264
      %3413 = vmatprep.subr.bf16.mxu0 %v3267
      %3414 = vmatpush1.bf16.msra.mxu0 %v3266
      %3415 = vmatprep.subr.bf16.mxu0 %v3269
      %3416 = vmatpush1.bf16.msra.mxu0 %v3268
      %3417 = vmatprep.subr.bf16.mxu0 %v3271
      %3418 = vmatpush1.bf16.msra.mxu0 %v3270
      %3419 = vmatprep.subr.bf16.mxu0 %v3273
      %3420 = vmatpush1.bf16.msra.mxu0 %v3272
      %3421 = vmatprep.subr.bf16.mxu0 %v3275
      %3422 = vmatpush1.bf16.msra.mxu0 %v3274
      %3423 = vmatprep.subr.bf16.mxu0 %v3277
      %3424 = vmatpush1.bf16.msra.mxu0 %v3276
      %3425 = vmatprep.subr.bf16.mxu0 %v3279
      %3426 = vmatpush1.bf16.msra.mxu0 %v3278
      %3427 = vmatprep.subr.bf16.mxu0 %v3281
      %3428 = vmatpush1.bf16.msra.mxu0 %v3280
      %3429 = vmatprep.subr.bf16.mxu0 %v3283
      %3430 = vmatpush1.bf16.msra.mxu0 %v3282
      %3431 = vmatprep.subr.bf16.mxu0 %v3285
      %3432 = vmatpush1.bf16.msra.mxu0 %v3284
      %3433 = vmatprep.subr.bf16.mxu0 %v3287
      %3434 = vmatpush1.bf16.msra.mxu0 %v3286
      %3435 = vmatprep.subr.bf16.mxu0 %v3289
      %3436 = vmatpush1.bf16.msra.mxu0 %v3288
      %3437 = vmatprep.subr.bf16.mxu0 %v3291
      %3438 = vmatpush1.bf16.msra.mxu0 %v3290
      %3439 = vmatprep.subr.bf16.mxu0 %v3293
      %3440 = vmatpush1.bf16.msra.mxu0 %v3292
      %3441 = vmatprep.subr.bf16.mxu0 %v3295
      %3442 = vmatpush1.bf16.msra.mxu0 %v3294
      %3443 = vmatprep.mubr.bf16.mxu0 %v2959
      %3444 = vmatmul.mubr.bf16.gmra.mrb[0].mxu0 %v2958
      %v3445 = vpop.f32.mrb[0].mxu0
      %v3446 = vadd.f32 %v3395, %v3445
      %v3447 = vpop.f32.mrb[0].mxu0
      %v3448 = vadd.f32 %v3397, %v3447
      %v3449 = vpop.f32.mrb[0].mxu0
      %v3450 = vadd.f32 %v3399, %v3449
      %v3451 = vpop.f32.mrb[0].mxu0
      %v3452 = vadd.f32 %v3401, %v3451
      %3453 = vmatprep.mubr.bf16.mxu0 %v2963
      %3454 = vmatmul.mubr.bf16.gmra.mrb[0].mxu0 %v2962
      %v3455 = vpop.f32.mrb[0].mxu0
      %v3456 = vadd.f32 %v3405, %v3455
      %v3457 = vpop.f32.mrb[0].mxu0
      %v3458 = vadd.f32 %v3407, %v3457
      %v3459 = vpop.f32.mrb[0].mxu0
      %v3460 = vpop.f32.mrb[0].mxu0
      %3461 = vdwg.mxu0
      %v3462 = vadd.f32 %v2026, %v3446
      %v3463 = vadd.f32 %v2027, %v3448
      %v3464 = vadd.f32 %v2028, %v3450
      %v3465 = vadd.f32 %v2029, %v3452
      %v3466 = vadd.f32 %v2030, %v3456
      %v3467 = vadd.f32 %v2031, %v3458
      %3468 = vst [vmem:[#allocation2] sm:$0xff] %v3462
      %3469 = vst [vmem:[#allocation2 + $0x8] sm:$0xff] %v3463
      %3470 = vst [vmem:[#allocation2 + $0x10] sm:$0xff] %v3464
      %3471 = vst [vmem:[#allocation2 + $0x18] sm:$0xff] %v3465
      %3472 = vst [vmem:[#allocation2 + $0x20] sm:$0x3] %v3466
      %3473 = vst [vmem:[#allocation2 + $0x28] sm:$0x3] %v3467
      %p3474 = scmp.eq.s32.totalorder %s24, 1
      // Predicated region
      $region77: #{vit3d_forward.4} parent=71 // pred_check
        %p3475 = pneg %p3474
      $region78: #{vit3d_forward.4} parent=71 // pred_check_branch
        %3477 = sbr.rel (%p3475) target = $region80
      $region79: #{vit3d_forward.4} parent=71 // pred_region
        %v3478 = vld [vmem:[#allocation2] sm:$0xff]
        %v3479 = vld [vmem:[#allocation2 + $0x8] sm:$0xff]
        %v3480 = vld [vmem:[#allocation2 + $0x10] sm:$0xff]
        %v3481 = vld [vmem:[#allocation2 + $0x18] sm:$0xff]
        %v3482 = vld [vmem:[#allocation2 + $0x20] sm:$0x3]
        %v3483 = vld [vmem:[#allocation2 + $0x28] sm:$0x3]
        %3484 = vst [vmem:[%s13] sm:$0xff] %v3478
        %3485 = vst [vmem:[%s13 + $0x8] sm:$0xff] %v3479
        %3486 = vst [vmem:[%s13 + $0x10] sm:$0xff] %v3480
        %3487 = vst [vmem:[%s13 + $0x18] sm:$0xff] %v3481
        %3488 = vst [vmem:[%s13 + $0x20] sm:$0x3] %v3482
        %3489 = vst [vmem:[%s13 + $0x28] sm:$0x3] %v3483
      $region80: #{vit3d_forward.4} parent=71 // pred_fallthru
        _
      // Predicated region
      $region81: #{vit3d_forward.4} parent=71 // pred_check
        %p3490 = pneg %p365
      $region82: #{vit3d_forward.4} parent=71 // pred_check_branch
        %3492 = sbr.rel (%p3490) target = $region84
      $region83: #{vit3d_forward.4} parent=71 // pred_region
        _
      $region84: #{vit3d_forward.4} parent=71 // pred_fallthru
        _
      // Predicated region
      $region85: #{vit3d_forward.4} parent=71 // pred_check
        %p3493 = pneg %p365
      $region86: #{vit3d_forward.4} parent=71 // pred_check_branch
        %3495 = sbr.rel (%p3493) target = $region88
      $region87: #{vit3d_forward.4} parent=71 // pred_region
        _
      $region88: #{vit3d_forward.4} parent=71 // pred_fallthru
        _
    $region72: #{vit3d_forward.4} parent=5 // pred_fallthru
      _
    %p3496 = scmp.le.s32.totalorder 2, %s19
    // Predicated region
    $region89: #{vit3d_forward.4} parent=5 // pred_check
      %p3497 = pneg %p3496
    $region90: #{vit3d_forward.4} parent=5 // pred_check_branch
      %3499 = sbr.rel (%p3497) target = $region92
    $region91: #{vit3d_forward.4} parent=5 // pred_region
      %s3500 = ssub.s32 %s19, 2
    $region92: #{vit3d_forward.4} parent=5 // pred_fallthru
      _
  $region6: #{vit3d_forward.4} parent=0 // loop_footer
    %s23 = sadd.s32 1, %s19
  $region7: #{vit3d_forward.4} parent=0 // loop_footer_branch
    %18 = sbr.rel target = $region3
  $region8: #{vit3d_forward.4} parent=0 // loop_exit
    _

// kernel: vit3d_forward.5
$region0: #{vit3d_forward.5}
  #allocation0 [shape = 'u32[]', space=smem, size = 0x4, offset = 0x4, fixed_abs, tag = 'smem constant byte address 0x4 - core index']
  #allocation1 [shape = 'u32[144,128]{1,0:T(1,128)}', space=vmem, size = 0x12000, scoped, tag = 'internal scratch']
  %s0 = inlined_call_operand.vmem [shape: f32[18,256], index: 0, kind: input, shape index: {}]
  %s1 = inlined_call_operand.vmem [shape: f32[1,256], index: 1, kind: input, shape index: {}]
  %s2 = inlined_call_operand.vmem [shape: f32[1,256], index: 2, kind: input, shape index: {}]
  %s3 = inlined_call_operand.vmem [shape: bf16[256,512], index: 3, kind: input, shape index: {}]
  %s4 = inlined_call_operand.vmem [shape: f32[1,512], index: 4, kind: input, shape index: {}]
  %s5 = inlined_call_operand.vmem [shape: bf16[512,10], index: 5, kind: input, shape index: {}]
  %s6 = inlined_call_operand.vmem [shape: f32[1,10], index: 6, kind: input, shape index: {}]
  %s7 = inlined_call_operand.hbm [shape: f32[2,10], index: 7, kind: output, shape index: {}]
  %s8 = sld [smem:[#allocation0]]
  $region38: #{vit3d_forward.5} parent=0
    _
  %s10 = ssub.s32 1, %s8
  %s11 = scalar_select 0, %s10, %s8
  $region1: #{vit3d_forward.5} parent=0
    #allocation2 [shape = 'u8[1024]{0}', space=vmem, size = 0x400, scoped, tag = 'output window, operand 0, single buffered']
    #allocation3 [shape = 's32[1]{0}', space=sflag, size = 0x4, scoped, tag = 'scoped memory for vit3d_forward.5']
    %12 = vsyncpa [#allocation3], 0
    // Predicated region
    $region2: #{vit3d_forward.5} parent=1 // pred_check
      _
    $region3: #{vit3d_forward.5} parent=1 // pred_check_branch
      %14 = sbr.rel (0) target = $region5
    $region4: #{vit3d_forward.5} parent=1 // pred_region
      _
    $region5: #{vit3d_forward.5} parent=1 // pred_fallthru
      _
    // Predicated region
    $region6: #{vit3d_forward.5} parent=1 // pred_check
      _
    $region7: #{vit3d_forward.5} parent=1 // pred_check_branch
      %16 = sbr.rel (0) target = $region9
    $region8: #{vit3d_forward.5} parent=1 // pred_region
      _
    $region9: #{vit3d_forward.5} parent=1 // pred_fallthru
      _
    // Predicated region
    $region10: #{vit3d_forward.5} parent=1 // pred_check
      _
    $region11: #{vit3d_forward.5} parent=1 // pred_check_branch
      %18 = sbr.rel (0) target = $region13
    $region12: #{vit3d_forward.5} parent=1 // pred_region
      _
    $region13: #{vit3d_forward.5} parent=1 // pred_fallthru
      _
    // Predicated region
    $region14: #{vit3d_forward.5} parent=1 // pred_check
      _
    $region15: #{vit3d_forward.5} parent=1 // pred_check_branch
      %20 = sbr.rel (0) target = $region17
    $region16: #{vit3d_forward.5} parent=1 // pred_region
      _
    $region17: #{vit3d_forward.5} parent=1 // pred_fallthru
      _
    // Predicated region
    $region18: #{vit3d_forward.5} parent=1 // pred_check
      _
    $region19: #{vit3d_forward.5} parent=1 // pred_check_branch
      %22 = sbr.rel (0) target = $region21
    $region20: #{vit3d_forward.5} parent=1 // pred_region
      _
    $region21: #{vit3d_forward.5} parent=1 // pred_fallthru
      _
    // Predicated region
    $region22: #{vit3d_forward.5} parent=1 // pred_check
      _
    $region23: #{vit3d_forward.5} parent=1 // pred_check_branch
      %24 = sbr.rel (0) target = $region25
    $region24: #{vit3d_forward.5} parent=1 // pred_region
      _
    $region25: #{vit3d_forward.5} parent=1 // pred_fallthru
      _
    // Predicated region
    $region26: #{vit3d_forward.5} parent=1 // pred_check
      _
    $region27: #{vit3d_forward.5} parent=1 // pred_check_branch
      %26 = sbr.rel (0) target = $region29
    $region28: #{vit3d_forward.5} parent=1 // pred_region
      _
    $region29: #{vit3d_forward.5} parent=1 // pred_fallthru
      _
    %v28 = vld [vmem:[%s0] ss:$8 sm:$0x3]
    %s29 = scalar_lea.vmem %s0, 17
    %v30 = vld [vmem:[%s29] ss:$8 sm:$0x3]
    %v32 = vlaneseq
    %v33 = vshrl.u32 %v32, 7
    %v34 = vsub.s32 0, %v33
    %v35 = vrot.slane %v28, %v34
    %v36 = vlaneseq
    %v37 = vshrl.u32 %v36, 7
    %v38 = vsub.s32 1, %v37
    %v39 = vrot.slane %v28, %v38
    %v43 = vlaneseq
    %v44 = vshrl.u32 %v43, 7
    %v45 = vsub.s32 0, %v44
    %v46 = vrot.slane %v30, %v45
    %v47 = vlaneseq
    %v48 = vshrl.u32 %v47, 7
    %v49 = vsub.s32 1, %v48
    %v50 = vrot.slane %v30, %v49
    %vm53 = vcmask 1040384
    %v54 = vsel %vm53, %v35, %v46
    %v55 = vsel %vm53, %v39, %v50
    %v56 = vld [vmem:[%s1] sm:$0x3]
    %v57 = vld [vmem:[%s2] sm:$0x3]
    %vm58 = vcmask 1041408
    %v59 = vsel %vm58, %v54, 0.0
    %v60 = vsel %vm58, %v55, 0.0
    %v61 = vadd.f32 %v59, %v60
    %62 = vadd.xlane.f32.xlu0 %v61
    %v63 = vpop.xlane.xlu0 %62
    %v64 = vrcp.pop 256.0
    %v65 = vmul.f32 %v63, %v64
    %v66 = vsub.f32 %v54, %v65
    %v67 = vsub.f32 %v55, %v65
    %v68 = vmul.f32 %v66, %v66
    %v69 = vmul.f32 %v67, %v67
    %v70 = vsel %vm58, %v68, 0.0
    %v71 = vsel %vm58, %v69, 0.0
    %v72 = vadd.f32 %v70, %v71
    %73 = vadd.xlane.f32.xlu0 %v72
    %v74 = vpop.xlane.xlu0 %73
    %v75 = vmul.f32 %v74, %v64
    %v76 = vadd.f32 %v75, 1e-05
    %v77 = vrsqrt.pop %v76
    %v78 = vmul.f32 %v66, %v77
    %v79 = vmul.f32 %v67, %v77
    %v81 = vlaneseq
    %v82 = vshrl.u32 %v81, 7
    %v83 = vsub.s32 0, %v82
    %v84 = vrot.slane %v56, %v83
    %v85 = vlaneseq
    %v86 = vshrl.u32 %v85, 7
    %v87 = vsub.s32 1, %v86
    %v88 = vrot.slane %v56, %v87
    %v91 = vmul.f32 %v78, %v84
    %v92 = vmul.f32 %v79, %v88
    %v94 = vlaneseq
    %v95 = vshrl.u32 %v94, 7
    %v96 = vsub.s32 0, %v95
    %v97 = vrot.slane %v57, %v96
    %v98 = vlaneseq
    %v99 = vshrl.u32 %v98, 7
    %v100 = vsub.s32 1, %v99
    %v101 = vrot.slane %v57, %v100
    %v104 = vadd.f32 %v91, %v97
    %v105 = vadd.f32 %v92, %v101
    %v106 = vpack.c.bf16 %v104, %v104
    %v107 = vpack.c.bf16 %v105, %v105
    %v108 = vld [vmem:[%s3] sm:$0xff]
    %v109 = vld [vmem:[%s3 + $0x8] sm:$0xff]
    %v110 = vld [vmem:[%s3 + $0x10] sm:$0xff]
    %v111 = vld [vmem:[%s3 + $0x18] sm:$0xff]
    %v112 = vld [vmem:[%s3 + $0x20] sm:$0xff]
    %v113 = vld [vmem:[%s3 + $0x28] sm:$0xff]
    %v114 = vld [vmem:[%s3 + $0x30] sm:$0xff]
    %v115 = vld [vmem:[%s3 + $0x38] sm:$0xff]
    %v116 = vld [vmem:[%s3 + $0x40] sm:$0xff]
    %v117 = vld [vmem:[%s3 + $0x48] sm:$0xff]
    %v118 = vld [vmem:[%s3 + $0x50] sm:$0xff]
    %v119 = vld [vmem:[%s3 + $0x58] sm:$0xff]
    %v120 = vld [vmem:[%s3 + $0x60] sm:$0xff]
    %v121 = vld [vmem:[%s3 + $0x68] sm:$0xff]
    %v122 = vld [vmem:[%s3 + $0x70] sm:$0xff]
    %v123 = vld [vmem:[%s3 + $0x78] sm:$0xff]
    %v124 = vld [vmem:[%s3 + $0x80] sm:$0xff]
    %v125 = vld [vmem:[%s3 + $0x88] sm:$0xff]
    %v126 = vld [vmem:[%s3 + $0x90] sm:$0xff]
    %v127 = vld [vmem:[%s3 + $0x98] sm:$0xff]
    %v128 = vld [vmem:[%s3 + $0xa0] sm:$0xff]
    %v129 = vld [vmem:[%s3 + $0xa8] sm:$0xff]
    %v130 = vld [vmem:[%s3 + $0xb0] sm:$0xff]
    %v131 = vld [vmem:[%s3 + $0xb8] sm:$0xff]
    %v132 = vld [vmem:[%s3 + $0xc0] sm:$0xff]
    %v133 = vld [vmem:[%s3 + $0xc8] sm:$0xff]
    %v134 = vld [vmem:[%s3 + $0xd0] sm:$0xff]
    %v135 = vld [vmem:[%s3 + $0xd8] sm:$0xff]
    %v136 = vld [vmem:[%s3 + $0xe0] sm:$0xff]
    %v137 = vld [vmem:[%s3 + $0xe8] sm:$0xff]
    %v138 = vld [vmem:[%s3 + $0xf0] sm:$0xff]
    %v139 = vld [vmem:[%s3 + $0xf8] sm:$0xff]
    %v140 = vld [vmem:[%s3 + $0x100] sm:$0xff]
    %v141 = vld [vmem:[%s3 + $0x108] sm:$0xff]
    %v142 = vld [vmem:[%s3 + $0x110] sm:$0xff]
    %v143 = vld [vmem:[%s3 + $0x118] sm:$0xff]
    %v144 = vld [vmem:[%s3 + $0x120] sm:$0xff]
    %v145 = vld [vmem:[%s3 + $0x128] sm:$0xff]
    %v146 = vld [vmem:[%s3 + $0x130] sm:$0xff]
    %v147 = vld [vmem:[%s3 + $0x138] sm:$0xff]
    %v148 = vld [vmem:[%s3 + $0x140] sm:$0xff]
    %v149 = vld [vmem:[%s3 + $0x148] sm:$0xff]
    %v150 = vld [vmem:[%s3 + $0x150] sm:$0xff]
    %v151 = vld [vmem:[%s3 + $0x158] sm:$0xff]
    %v152 = vld [vmem:[%s3 + $0x160] sm:$0xff]
    %v153 = vld [vmem:[%s3 + $0x168] sm:$0xff]
    %v154 = vld [vmem:[%s3 + $0x170] sm:$0xff]
    %v155 = vld [vmem:[%s3 + $0x178] sm:$0xff]
    %v156 = vld [vmem:[%s3 + $0x180] sm:$0xff]
    %v157 = vld [vmem:[%s3 + $0x188] sm:$0xff]
    %v158 = vld [vmem:[%s3 + $0x190] sm:$0xff]
    %v159 = vld [vmem:[%s3 + $0x198] sm:$0xff]
    %v160 = vld [vmem:[%s3 + $0x1a0] sm:$0xff]
    %v161 = vld [vmem:[%s3 + $0x1a8] sm:$0xff]
    %v162 = vld [vmem:[%s3 + $0x1b0] sm:$0xff]
    %v163 = vld [vmem:[%s3 + $0x1b8] sm:$0xff]
    %v164 = vld [vmem:[%s3 + $0x1c0] sm:$0xff]
    %v165 = vld [vmem:[%s3 + $0x1c8] sm:$0xff]
    %v166 = vld [vmem:[%s3 + $0x1d0] sm:$0xff]
    %v167 = vld [vmem:[%s3 + $0x1d8] sm:$0xff]
    %v168 = vld [vmem:[%s3 + $0x1e0] sm:$0xff]
    %v169 = vld [vmem:[%s3 + $0x1e8] sm:$0xff]
    %v170 = vld [vmem:[%s3 + $0x1f0] sm:$0xff]
    %v171 = vld [vmem:[%s3 + $0x1f8] sm:$0xff]
    %v172 = vld [vmem:[%s4] sm:$0xf]
    %v174 = vlaneseq
    %v175 = vshrl.u32 %v174, 7
    %v176 = vsub.s32 0, %v175
    %v177 = vrot.slane %v172, %v176
    %v178 = vlaneseq
    %v179 = vshrl.u32 %v178, 7
    %v180 = vsub.s32 1, %v179
    %v181 = vrot.slane %v172, %v180
    %v182 = vlaneseq
    %v183 = vshrl.u32 %v182, 7
    %v184 = vsub.s32 2, %v183
    %v185 = vrot.slane %v172, %v184
    %v186 = vlaneseq
    %v187 = vshrl.u32 %v186, 7
    %v188 = vsub.s32 3, %v187
    %v189 = vrot.slane %v172, %v188
    %v258 = vunpack.c.l.b16 %v108
    %v259 = vunpack.c.h.b16 %v108
    %v260 = vunpack.c.l.b16 %v109
    %v261 = vunpack.c.h.b16 %v109
    %v262 = vunpack.c.l.b16 %v110
    %v263 = vunpack.c.h.b16 %v110
    %v264 = vunpack.c.l.b16 %v111
    %v265 = vunpack.c.h.b16 %v111
    %v266 = vunpack.c.l.b16 %v112
    %v267 = vunpack.c.h.b16 %v112
    %v268 = vunpack.c.l.b16 %v113
    %v269 = vunpack.c.h.b16 %v113
    %v270 = vunpack.c.l.b16 %v114
    %v271 = vunpack.c.h.b16 %v114
    %v272 = vunpack.c.l.b16 %v115
    %v273 = vunpack.c.h.b16 %v115
    %v274 = vunpack.c.l.b16 %v116
    %v275 = vunpack.c.h.b16 %v116
    %v276 = vunpack.c.l.b16 %v117
    %v277 = vunpack.c.h.b16 %v117
    %v278 = vunpack.c.l.b16 %v118
    %v279 = vunpack.c.h.b16 %v118
    %v280 = vunpack.c.l.b16 %v119
    %v281 = vunpack.c.h.b16 %v119
    %v282 = vunpack.c.l.b16 %v120
    %v283 = vunpack.c.h.b16 %v120
    %v284 = vunpack.c.l.b16 %v121
    %v285 = vunpack.c.h.b16 %v121
    %v286 = vunpack.c.l.b16 %v122
    %v287 = vunpack.c.h.b16 %v122
    %v288 = vunpack.c.l.b16 %v123
    %v289 = vunpack.c.h.b16 %v123
    %v290 = vunpack.c.l.b16 %v124
    %v291 = vunpack.c.h.b16 %v124
    %v292 = vunpack.c.l.b16 %v125
    %v293 = vunpack.c.h.b16 %v125
    %v294 = vunpack.c.l.b16 %v126
    %v295 = vunpack.c.h.b16 %v126
    %v296 = vunpack.c.l.b16 %v127
    %v297 = vunpack.c.h.b16 %v127
    %v298 = vunpack.c.l.b16 %v128
    %v299 = vunpack.c.h.b16 %v128
    %v300 = vunpack.c.l.b16 %v129
    %v301 = vunpack.c.h.b16 %v129
    %v302 = vunpack.c.l.b16 %v130
    %v303 = vunpack.c.h.b16 %v130
    %v304 = vunpack.c.l.b16 %v131
    %v305 = vunpack.c.h.b16 %v131
    %v306 = vunpack.c.l.b16 %v132
    %v307 = vunpack.c.h.b16 %v132
    %v308 = vunpack.c.l.b16 %v133
    %v309 = vunpack.c.h.b16 %v133
    %v310 = vunpack.c.l.b16 %v134
    %v311 = vunpack.c.h.b16 %v134
    %v312 = vunpack.c.l.b16 %v135
    %v313 = vunpack.c.h.b16 %v135
    %v314 = vunpack.c.l.b16 %v136
    %v315 = vunpack.c.h.b16 %v136
    %v316 = vunpack.c.l.b16 %v137
    %v317 = vunpack.c.h.b16 %v137
    %v318 = vunpack.c.l.b16 %v138
    %v319 = vunpack.c.h.b16 %v138
    %v320 = vunpack.c.l.b16 %v139
    %v321 = vunpack.c.h.b16 %v139
    %v322 = vunpack.c.l.b16 %v140
    %v323 = vunpack.c.h.b16 %v140
    %v324 = vunpack.c.l.b16 %v141
    %v325 = vunpack.c.h.b16 %v141
    %v326 = vunpack.c.l.b16 %v142
    %v327 = vunpack.c.h.b16 %v142
    %v328 = vunpack.c.l.b16 %v143
    %v329 = vunpack.c.h.b16 %v143
    %v330 = vunpack.c.l.b16 %v144
    %v331 = vunpack.c.h.b16 %v144
    %v332 = vunpack.c.l.b16 %v145
    %v333 = vunpack.c.h.b16 %v145
    %v334 = vunpack.c.l.b16 %v146
    %v335 = vunpack.c.h.b16 %v146
    %v336 = vunpack.c.l.b16 %v147
    %v337 = vunpack.c.h.b16 %v147
    %v338 = vunpack.c.l.b16 %v148
    %v339 = vunpack.c.h.b16 %v148
    %v340 = vunpack.c.l.b16 %v149
    %v341 = vunpack.c.h.b16 %v149
    %v342 = vunpack.c.l.b16 %v150
    %v343 = vunpack.c.h.b16 %v150
    %v344 = vunpack.c.l.b16 %v151
    %v345 = vunpack.c.h.b16 %v151
    %v346 = vunpack.c.l.b16 %v152
    %v347 = vunpack.c.h.b16 %v152
    %v348 = vunpack.c.l.b16 %v153
    %v349 = vunpack.c.h.b16 %v153
    %v350 = vunpack.c.l.b16 %v154
    %v351 = vunpack.c.h.b16 %v154
    %v352 = vunpack.c.l.b16 %v155
    %v353 = vunpack.c.h.b16 %v155
    %v354 = vunpack.c.l.b16 %v156
    %v355 = vunpack.c.h.b16 %v156
    %v356 = vunpack.c.l.b16 %v157
    %v357 = vunpack.c.h.b16 %v157
    %v358 = vunpack.c.l.b16 %v158
    %v359 = vunpack.c.h.b16 %v158
    %v360 = vunpack.c.l.b16 %v159
    %v361 = vunpack.c.h.b16 %v159
    %v362 = vunpack.c.l.b16 %v160
    %v363 = vunpack.c.h.b16 %v160
    %v364 = vunpack.c.l.b16 %v161
    %v365 = vunpack.c.h.b16 %v161
    %v366 = vunpack.c.l.b16 %v162
    %v367 = vunpack.c.h.b16 %v162
    %v368 = vunpack.c.l.b16 %v163
    %v369 = vunpack.c.h.b16 %v163
    %v370 = vunpack.c.l.b16 %v164
    %v371 = vunpack.c.h.b16 %v164
    %v372 = vunpack.c.l.b16 %v165
    %v373 = vunpack.c.h.b16 %v165
    %v374 = vunpack.c.l.b16 %v166
    %v375 = vunpack.c.h.b16 %v166
    %v376 = vunpack.c.l.b16 %v167
    %v377 = vunpack.c.h.b16 %v167
    %v378 = vunpack.c.l.b16 %v168
    %v379 = vunpack.c.h.b16 %v168
    %v380 = vunpack.c.l.b16 %v169
    %v381 = vunpack.c.h.b16 %v169
    %v382 = vunpack.c.l.b16 %v170
    %v383 = vunpack.c.h.b16 %v170
    %v384 = vunpack.c.l.b16 %v171
    %v385 = vunpack.c.h.b16 %v171
    %v386 = vpack.c.b16 %v262, %v258
    %v387 = vpack.c.b16 %v263, %v259
    %v388 = vpack.c.b16 %v264, %v260
    %v389 = vpack.c.b16 %v265, %v261
    %v390 = vpack.c.b16 %v270, %v266
    %v391 = vpack.c.b16 %v271, %v267
    %v392 = vpack.c.b16 %v272, %v268
    %v393 = vpack.c.b16 %v273, %v269
    %v394 = vpack.c.b16 %v278, %v274
    %v395 = vpack.c.b16 %v279, %v275
    %v396 = vpack.c.b16 %v280, %v276
    %v397 = vpack.c.b16 %v281, %v277
    %v398 = vpack.c.b16 %v286, %v282
    %v399 = vpack.c.b16 %v287, %v283
    %v400 = vpack.c.b16 %v288, %v284
    %v401 = vpack.c.b16 %v289, %v285
    %v402 = vpack.c.b16 %v294, %v290
    %v403 = vpack.c.b16 %v295, %v291
    %v404 = vpack.c.b16 %v296, %v292
    %v405 = vpack.c.b16 %v297, %v293
    %v406 = vpack.c.b16 %v302, %v298
    %v407 = vpack.c.b16 %v303, %v299
    %v408 = vpack.c.b16 %v304, %v300
    %v409 = vpack.c.b16 %v305, %v301
    %v410 = vpack.c.b16 %v310, %v306
    %v411 = vpack.c.b16 %v311, %v307
    %v412 = vpack.c.b16 %v312, %v308
    %v413 = vpack.c.b16 %v313, %v309
    %v414 = vpack.c.b16 %v318, %v314
    %v415 = vpack.c.b16 %v319, %v315
    %v416 = vpack.c.b16 %v320, %v316
    %v417 = vpack.c.b16 %v321, %v317
    %v418 = vpack.c.b16 %v326, %v322
    %v419 = vpack.c.b16 %v327, %v323
    %v420 = vpack.c.b16 %v328, %v324
    %v421 = vpack.c.b16 %v329, %v325
    %v422 = vpack.c.b16 %v334, %v330
    %v423 = vpack.c.b16 %v335, %v331
    %v424 = vpack.c.b16 %v336, %v332
    %v425 = vpack.c.b16 %v337, %v333
    %v426 = vpack.c.b16 %v342, %v338
    %v427 = vpack.c.b16 %v343, %v339
    %v428 = vpack.c.b16 %v344, %v340
    %v429 = vpack.c.b16 %v345, %v341
    %v430 = vpack.c.b16 %v350, %v346
    %v431 = vpack.c.b16 %v351, %v347
    %v432 = vpack.c.b16 %v352, %v348
    %v433 = vpack.c.b16 %v353, %v349
    %v434 = vpack.c.b16 %v358, %v354
    %v435 = vpack.c.b16 %v359, %v355
    %v436 = vpack.c.b16 %v360, %v356
    %v437 = vpack.c.b16 %v361, %v357
    %v438 = vpack.c.b16 %v366, %v362
    %v439 = vpack.c.b16 %v367, %v363
    %v440 = vpack.c.b16 %v368, %v364
    %v441 = vpack.c.b16 %v369, %v365
    %v442 = vpack.c.b16 %v374, %v370
    %v443 = vpack.c.b16 %v375, %v371
    %v444 = vpack.c.b16 %v376, %v372
    %v445 = vpack.c.b16 %v377, %v373
    %v446 = vpack.c.b16 %v382, %v378
    %v447 = vpack.c.b16 %v383, %v379
    %v448 = vpack.c.b16 %v384, %v380
    %v449 = vpack.c.b16 %v385, %v381
    %514 = vmatprep.subr.bf16.mxu0 %v387
    %515 = vmatpush1.bf16.msra.mxu0 %v386
    %516 = vmatprep.subr.bf16.mxu0 %v391
    %517 = vmatpush1.bf16.msra.mxu0 %v390
    %518 = vmatprep.subr.bf16.mxu0 %v395
    %519 = vmatpush1.bf16.msra.mxu0 %v394
    %520 = vmatprep.subr.bf16.mxu0 %v399
    %521 = vmatpush1.bf16.msra.mxu0 %v398
    %522 = vmatprep.subr.bf16.mxu0 %v403
    %523 = vmatpush1.bf16.msra.mxu0 %v402
    %524 = vmatprep.subr.bf16.mxu0 %v407
    %525 = vmatpush1.bf16.msra.mxu0 %v406
    %526 = vmatprep.subr.bf16.mxu0 %v411
    %527 = vmatpush1.bf16.msra.mxu0 %v410
    %528 = vmatprep.subr.bf16.mxu0 %v415
    %529 = vmatpush1.bf16.msra.mxu0 %v414
    %530 = vmatprep.subr.bf16.mxu0 %v419
    %531 = vmatpush1.bf16.msra.mxu0 %v418
    %532 = vmatprep.subr.bf16.mxu0 %v423
    %533 = vmatpush1.bf16.msra.mxu0 %v422
    %534 = vmatprep.subr.bf16.mxu0 %v427
    %535 = vmatpush1.bf16.msra.mxu0 %v426
    %536 = vmatprep.subr.bf16.mxu0 %v431
    %537 = vmatpush1.bf16.msra.mxu0 %v430
    %538 = vmatprep.subr.bf16.mxu0 %v435
    %539 = vmatpush1.bf16.msra.mxu0 %v434
    %540 = vmatprep.subr.bf16.mxu0 %v439
    %541 = vmatpush1.bf16.msra.mxu0 %v438
    %542 = vmatprep.subr.bf16.mxu0 %v443
    %543 = vmatpush1.bf16.msra.mxu0 %v442
    %544 = vmatprep.subr.bf16.mxu0 %v447
    %545 = vmatpush1.bf16.msra.mxu0 %v446
    %546 = vmatprep.mubr.bf16.mxu0 %v107
    %547 = vmatmul.mubr.bf16.gmra.mrb[0].mxu0 %v106
    %v548 = vpop.f32.mrb[0].mxu0
    %v549 = vadd.f32 %v177, %v548
    %v550 = vpop.f32.mrb[0].mxu0
    %v551 = vadd.f32 %v181, %v550
    %v552 = vpop.f32.mrb[0].mxu0
    %v553 = vpop.f32.mrb[0].mxu0
    %554 = vdwg.mxu0
    %555 = vmatprep.subr.bf16.mxu0 %v389
    %556 = vmatpush1.bf16.msra.mxu0 %v388
    %557 = vmatprep.subr.bf16.mxu0 %v393
    %558 = vmatpush1.bf16.msra.mxu0 %v392
    %559 = vmatprep.subr.bf16.mxu0 %v397
    %560 = vmatpush1.bf16.msra.mxu0 %v396
    %561 = vmatprep.subr.bf16.mxu0 %v401
    %562 = vmatpush1.bf16.msra.mxu0 %v400
    %563 = vmatprep.subr.bf16.mxu0 %v405
    %564 = vmatpush1.bf16.msra.mxu0 %v404
    %565 = vmatprep.subr.bf16.mxu0 %v409
    %566 = vmatpush1.bf16.msra.mxu0 %v408
    %567 = vmatprep.subr.bf16.mxu0 %v413
    %568 = vmatpush1.bf16.msra.mxu0 %v412
    %569 = vmatprep.subr.bf16.mxu0 %v417
    %570 = vmatpush1.bf16.msra.mxu0 %v416
    %571 = vmatprep.subr.bf16.mxu0 %v421
    %572 = vmatpush1.bf16.msra.mxu0 %v420
    %573 = vmatprep.subr.bf16.mxu0 %v425
    %574 = vmatpush1.bf16.msra.mxu0 %v424
    %575 = vmatprep.subr.bf16.mxu0 %v429
    %576 = vmatpush1.bf16.msra.mxu0 %v428
    %577 = vmatprep.subr.bf16.mxu0 %v433
    %578 = vmatpush1.bf16.msra.mxu0 %v432
    %579 = vmatprep.subr.bf16.mxu0 %v437
    %580 = vmatpush1.bf16.msra.mxu0 %v436
    %581 = vmatprep.subr.bf16.mxu0 %v441
    %582 = vmatpush1.bf16.msra.mxu0 %v440
    %583 = vmatprep.subr.bf16.mxu0 %v445
    %584 = vmatpush1.bf16.msra.mxu0 %v444
    %585 = vmatprep.subr.bf16.mxu0 %v449
    %586 = vmatpush1.bf16.msra.mxu0 %v448
    %587 = vmatprep.mubr.bf16.mxu0 %v107
    %588 = vmatmul.mubr.bf16.gmra.mrb[0].mxu0 %v106
    %v589 = vpop.f32.mrb[0].mxu0
    %v590 = vadd.f32 %v185, %v589
    %v591 = vpop.f32.mrb[0].mxu0
    %v592 = vadd.f32 %v189, %v591
    %v593 = vpop.f32.mrb[0].mxu0
    %v594 = vpop.f32.mrb[0].mxu0
    %595 = vdwg.mxu0
    %v596 = vmul.f32 %v549, 0.5
    %v597 = vmul.f32 %v551, 0.5
    %v598 = vmul.f32 %v590, 0.5
    %v599 = vmul.f32 %v592, 0.5
    %v600 = vmul.f32 %v549, 0.70710677
    %v601 = vmul.f32 %v551, 0.70710677
    %v602 = vmul.f32 %v590, 0.70710677
    %v603 = vmul.f32 %v592, 0.70710677
    %vm604 = vcmp.ge.f32.partialorder %v600, 0.0
    %vm605 = vcmp.ge.f32.partialorder %v601, 0.0
    %vm606 = vcmp.ge.f32.partialorder %v602, 0.0
    %vm607 = vcmp.ge.f32.partialorder %v603, 0.0
    %v608 = vsel %vm604, 1.0, -1.0
    %v609 = vsel %vm605, 1.0, -1.0
    %v610 = vsel %vm606, 1.0, -1.0
    %v611 = vsel %vm607, 1.0, -1.0
    %v612 = vand.u32 2147483647, %v600
    %v613 = vand.u32 2147483647, %v601
    %v614 = vand.u32 2147483647, %v602
    %v615 = vand.u32 2147483647, %v603
    %v616 = vmul.f32 %v612, 0.3275911
    %v617 = vmul.f32 %v613, 0.3275911
    %v618 = vmul.f32 %v614, 0.3275911
    %v619 = vmul.f32 %v615, 0.3275911
    %v620 = vadd.f32 %v616, 1.0
    %v621 = vadd.f32 %v617, 1.0
    %v622 = vadd.f32 %v618, 1.0
    %v623 = vadd.f32 %v619, 1.0
    %v624 = vrcp.pop %v620
    %v625 = vmul.f32 1.0, %v624
    %v626 = vrcp.pop %v621
    %v627 = vmul.f32 1.0, %v626
    %v628 = vrcp.pop %v622
    %v629 = vmul.f32 1.0, %v628
    %v630 = vrcp.pop %v623
    %v631 = vmul.f32 1.0, %v630
    %v632 = vmul.f32 %v625, 1.0614054
    %v633 = vmul.f32 %v627, 1.0614054
    %v634 = vmul.f32 %v629, 1.0614054
    %v635 = vmul.f32 %v631, 1.0614054
    %v636 = vadd.f32 %v632, -1.4531521
    %v637 = vadd.f32 %v633, -1.4531521
    %v638 = vadd.f32 %v634, -1.4531521
    %v639 = vadd.f32 %v635, -1.4531521
    %v640 = vmul.f32 %v636, %v625
    %v641 = vmul.f32 %v637, %v627
    %v642 = vmul.f32 %v638, %v629
    %v643 = vmul.f32 %v639, %v631
    %v644 = vadd.f32 %v640, 1.4214138
    %v645 = vadd.f32 %v641, 1.4214138
    %v646 = vadd.f32 %v642, 1.4214138
    %v647 = vadd.f32 %v643, 1.4214138
    %v648 = vmul.f32 %v644, %v625
    %v649 = vmul.f32 %v645, %v627
    %v650 = vmul.f32 %v646, %v629
    %v651 = vmul.f32 %v647, %v631
    %v652 = vadd.f32 %v648, -0.28449672
    %v653 = vadd.f32 %v649, -0.28449672
    %v654 = vadd.f32 %v650, -0.28449672
    %v655 = vadd.f32 %v651, -0.28449672
    %v656 = vmul.f32 %v652, %v625
    %v657 = vmul.f32 %v653, %v627
    %v658 = vmul.f32 %v654, %v629
    %v659 = vmul.f32 %v655, %v631
    %v660 = vadd.f32 %v656, 0.2548296
    %v661 = vadd.f32 %v657, 0.2548296
    %v662 = vadd.f32 %v658, 0.2548296
    %v663 = vadd.f32 %v659, 0.2548296
    %v664 = vmul.f32 %v660, %v625
    %v665 = vmul.f32 %v661, %v627
    %v666 = vmul.f32 %v662, %v629
    %v667 = vmul.f32 %v663, %v631
    %v668 = vsub.f32 0.0, %v612
    %v669 = vsub.f32 0.0, %v613
    %v670 = vsub.f32 0.0, %v614
    %v671 = vsub.f32 0.0, %v615
    %v672 = vmul.f32 %v668, %v612
    %v673 = vmul.f32 %v669, %v613
    %v674 = vmul.f32 %v670, %v614
    %v675 = vmul.f32 %v671, %v615
    %v676 = vmul.f32 %v672, 1.442695
    %v677 = vpow.pop %v676
    %v678 = vmul.f32 %v673, 1.442695
    %v679 = vpow.pop %v678
    %v680 = vmul.f32 %v674, 1.442695
    %v681 = vpow.pop %v680
    %v682 = vmul.f32 %v675, 1.442695
    %v683 = vpow.pop %v682
    %v684 = vmul.f32 %v664, %v677
    %v685 = vmul.f32 %v665, %v679
    %v686 = vmul.f32 %v666, %v681
    %v687 = vmul.f32 %v667, %v683
    %v688 = vsub.f32 1.0, %v684
    %v689 = vsub.f32 1.0, %v685
    %v690 = vsub.f32 1.0, %v686
    %v691 = vsub.f32 1.0, %v687
    %v692 = vmul.f32 %v608, %v688
    %v693 = vmul.f32 %v609, %v689
    %v694 = vmul.f32 %v610, %v690
    %v695 = vmul.f32 %v611, %v691
    %v696 = vadd.f32 %v692, 1.0
    %v697 = vadd.f32 %v693, 1.0
    %v698 = vadd.f32 %v694, 1.0
    %v699 = vadd.f32 %v695, 1.0
    %v700 = vmul.f32 %v596, %v696
    %v701 = vmul.f32 %v597, %v697
    %v702 = vmul.f32 %v598, %v698
    %v703 = vmul.f32 %v599, %v699
    %v704 = vpack.c.bf16 %v700, %v700
    %v705 = vpack.c.bf16 %v701, %v701
    %v706 = vpack.c.bf16 %v702, %v702
    %v707 = vpack.c.bf16 %v703, %v703
    %v708 = vld [vmem:[%s5] sm:$0xf]
    %v709 = vld [vmem:[%s5 + $0x4] sm:$0xf]
    %v710 = vld [vmem:[%s5 + $0x8] sm:$0xf]
    %v711 = vld [vmem:[%s5 + $0xc] sm:$0xf]
    %v712 = vld [vmem:[%s5 + $0x10] sm:$0xf]
    %v713 = vld [vmem:[%s5 + $0x14] sm:$0xf]
    %v714 = vld [vmem:[%s5 + $0x18] sm:$0xf]
    %v715 = vld [vmem:[%s5 + $0x1c] sm:$0xf]
    %v716 = vld [vmem:[%s5 + $0x20] sm:$0xf]
    %v717 = vld [vmem:[%s5 + $0x24] sm:$0xf]
    %v718 = vld [vmem:[%s5 + $0x28] sm:$0xf]
    %v719 = vld [vmem:[%s5 + $0x2c] sm:$0xf]
    %v720 = vld [vmem:[%s5 + $0x30] sm:$0xf]
    %v721 = vld [vmem:[%s5 + $0x34] sm:$0xf]
    %v722 = vld [vmem:[%s5 + $0x38] sm:$0xf]
    %v723 = vld [vmem:[%s5 + $0x3c] sm:$0xf]
    %v724 = vld [vmem:[%s5 + $0x40] sm:$0xf]
    %v725 = vld [vmem:[%s5 + $0x44] sm:$0xf]
    %v726 = vld [vmem:[%s5 + $0x48] sm:$0xf]
    %v727 = vld [vmem:[%s5 + $0x4c] sm:$0xf]
    %v728 = vld [vmem:[%s5 + $0x50] sm:$0xf]
    %v729 = vld [vmem:[%s5 + $0x54] sm:$0xf]
    %v730 = vld [vmem:[%s5 + $0x58] sm:$0xf]
    %v731 = vld [vmem:[%s5 + $0x5c] sm:$0xf]
    %v732 = vld [vmem:[%s5 + $0x60] sm:$0xf]
    %v733 = vld [vmem:[%s5 + $0x64] sm:$0xf]
    %v734 = vld [vmem:[%s5 + $0x68] sm:$0xf]
    %v735 = vld [vmem:[%s5 + $0x6c] sm:$0xf]
    %v736 = vld [vmem:[%s5 + $0x70] sm:$0xf]
    %v737 = vld [vmem:[%s5 + $0x74] sm:$0xf]
    %v738 = vld [vmem:[%s5 + $0x78] sm:$0xf]
    %v739 = vld [vmem:[%s5 + $0x7c] sm:$0xf]
    %v740 = vld [vmem:[%s5 + $0x80] sm:$0xf]
    %v741 = vld [vmem:[%s5 + $0x84] sm:$0xf]
    %v742 = vld [vmem:[%s5 + $0x88] sm:$0xf]
    %v743 = vld [vmem:[%s5 + $0x8c] sm:$0xf]
    %v744 = vld [vmem:[%s5 + $0x90] sm:$0xf]
    %v745 = vld [vmem:[%s5 + $0x94] sm:$0xf]
    %v746 = vld [vmem:[%s5 + $0x98] sm:$0xf]
    %v747 = vld [vmem:[%s5 + $0x9c] sm:$0xf]
    %v748 = vld [vmem:[%s5 + $0xa0] sm:$0xf]
    %v749 = vld [vmem:[%s5 + $0xa4] sm:$0xf]
    %v750 = vld [vmem:[%s5 + $0xa8] sm:$0xf]
    %v751 = vld [vmem:[%s5 + $0xac] sm:$0xf]
    %v752 = vld [vmem:[%s5 + $0xb0] sm:$0xf]
    %v753 = vld [vmem:[%s5 + $0xb4] sm:$0xf]
    %v754 = vld [vmem:[%s5 + $0xb8] sm:$0xf]
    %v755 = vld [vmem:[%s5 + $0xbc] sm:$0xf]
    %v756 = vld [vmem:[%s5 + $0xc0] sm:$0xf]
    %v757 = vld [vmem:[%s5 + $0xc4] sm:$0xf]
    %v758 = vld [vmem:[%s5 + $0xc8] sm:$0xf]
    %v759 = vld [vmem:[%s5 + $0xcc] sm:$0xf]
    %v760 = vld [vmem:[%s5 + $0xd0] sm:$0xf]
    %v761 = vld [vmem:[%s5 + $0xd4] sm:$0xf]
    %v762 = vld [vmem:[%s5 + $0xd8] sm:$0xf]
    %v763 = vld [vmem:[%s5 + $0xdc] sm:$0xf]
    %v764 = vld [vmem:[%s5 + $0xe0] sm:$0xf]
    %v765 = vld [vmem:[%s5 + $0xe4] sm:$0xf]
    %v766 = vld [vmem:[%s5 + $0xe8] sm:$0xf]
    %v767 = vld [vmem:[%s5 + $0xec] sm:$0xf]
    %v768 = vld [vmem:[%s5 + $0xf0] sm:$0xf]
    %v769 = vld [vmem:[%s5 + $0xf4] sm:$0xf]
    %v770 = vld [vmem:[%s5 + $0xf8] sm:$0xf]
    %v771 = vld [vmem:[%s5 + $0xfc] sm:$0xf]
    %v772 = vld [vmem:[%s6] sm:$0x1]
    %v774 = vlaneseq
    %v775 = vshrl.u32 %v774, 7
    %v776 = vsub.s32 0, %v775
    %v777 = vrot.slane %v772, %v776
    %v843 = vunpack.c.l.b16 %v708
    %v844 = vunpack.c.l.b16 %v709
    %v845 = vunpack.c.l.b16 %v710
    %v846 = vunpack.c.l.b16 %v711
    %v847 = vunpack.c.l.b16 %v712
    %v848 = vunpack.c.l.b16 %v713
    %v849 = vunpack.c.l.b16 %v714
    %v850 = vunpack.c.l.b16 %v715
    %v851 = vunpack.c.l.b16 %v716
    %v852 = vunpack.c.l.b16 %v717
    %v853 = vunpack.c.l.b16 %v718
    %v854 = vunpack.c.l.b16 %v719
    %v855 = vunpack.c.l.b16 %v720
    %v856 = vunpack.c.l.b16 %v721
    %v857 = vunpack.c.l.b16 %v722
    %v858 = vunpack.c.l.b16 %v723
    %v859 = vunpack.c.l.b16 %v724
    %v860 = vunpack.c.l.b16 %v725
    %v861 = vunpack.c.l.b16 %v726
    %v862 = vunpack.c.l.b16 %v727
    %v863 = vunpack.c.l.b16 %v728
    %v864 = vunpack.c.l.b16 %v729
    %v865 = vunpack.c.l.b16 %v730
    %v866 = vunpack.c.l.b16 %v731
    %v867 = vunpack.c.l.b16 %v732
    %v868 = vunpack.c.l.b16 %v733
    %v869 = vunpack.c.l.b16 %v734
    %v870 = vunpack.c.l.b16 %v735
    %v871 = vunpack.c.l.b16 %v736
    %v872 = vunpack.c.l.b16 %v737
    %v873 = vunpack.c.l.b16 %v738
    %v874 = vunpack.c.l.b16 %v739
    %v875 = vunpack.c.l.b16 %v740
    %v876 = vunpack.c.l.b16 %v741
    %v877 = vunpack.c.l.b16 %v742
    %v878 = vunpack.c.l.b16 %v743
    %v879 = vunpack.c.l.b16 %v744
    %v880 = vunpack.c.l.b16 %v745
    %v881 = vunpack.c.l.b16 %v746
    %v882 = vunpack.c.l.b16 %v747
    %v883 = vunpack.c.l.b16 %v748
    %v884 = vunpack.c.l.b16 %v749
    %v885 = vunpack.c.l.b16 %v750
    %v886 = vunpack.c.l.b16 %v751
    %v887 = vunpack.c.l.b16 %v752
    %v888 = vunpack.c.l.b16 %v753
    %v889 = vunpack.c.l.b16 %v754
    %v890 = vunpack.c.l.b16 %v755
    %v891 = vunpack.c.l.b16 %v756
    %v892 = vunpack.c.l.b16 %v757
    %v893 = vunpack.c.l.b16 %v758
    %v894 = vunpack.c.l.b16 %v759
    %v895 = vunpack.c.l.b16 %v760
    %v896 = vunpack.c.l.b16 %v761
    %v897 = vunpack.c.l.b16 %v762
    %v898 = vunpack.c.l.b16 %v763
    %v899 = vunpack.c.l.b16 %v764
    %v900 = vunpack.c.l.b16 %v765
    %v901 = vunpack.c.l.b16 %v766
    %v902 = vunpack.c.l.b16 %v767
    %v903 = vunpack.c.l.b16 %v768
    %v904 = vunpack.c.l.b16 %v769
    %v905 = vunpack.c.l.b16 %v770
    %v906 = vunpack.c.l.b16 %v771
    %v907 = vpack.c.b16 %v844, %v843
    %v908 = vpack.c.b16 %v846, %v845
    %v909 = vpack.c.b16 %v848, %v847
    %v910 = vpack.c.b16 %v850, %v849
    %v911 = vpack.c.b16 %v852, %v851
    %v912 = vpack.c.b16 %v854, %v853
    %v913 = vpack.c.b16 %v856, %v855
    %v914 = vpack.c.b16 %v858, %v857
    %v915 = vpack.c.b16 %v860, %v859
    %v916 = vpack.c.b16 %v862, %v861
    %v917 = vpack.c.b16 %v864, %v863
    %v918 = vpack.c.b16 %v866, %v865
    %v919 = vpack.c.b16 %v868, %v867
    %v920 = vpack.c.b16 %v870, %v869
    %v921 = vpack.c.b16 %v872, %v871
    %v922 = vpack.c.b16 %v874, %v873
    %v923 = vpack.c.b16 %v876, %v875
    %v924 = vpack.c.b16 %v878, %v877
    %v925 = vpack.c.b16 %v880, %v879
    %v926 = vpack.c.b16 %v882, %v881
    %v927 = vpack.c.b16 %v884, %v883
    %v928 = vpack.c.b16 %v886, %v885
    %v929 = vpack.c.b16 %v888, %v887
    %v930 = vpack.c.b16 %v890, %v889
    %v931 = vpack.c.b16 %v892, %v891
    %v932 = vpack.c.b16 %v894, %v893
    %v933 = vpack.c.b16 %v896, %v895
    %v934 = vpack.c.b16 %v898, %v897
    %v935 = vpack.c.b16 %v900, %v899
    %v936 = vpack.c.b16 %v902, %v901
    %v937 = vpack.c.b16 %v904, %v903
    %v938 = vpack.c.b16 %v906, %v905
    %971 = vmatprep.subr.bf16.mxu0 0
    %972 = vmatpush1.bf16.msra.mxu0 %v907
    %973 = vmatprep.subr.bf16.mxu0 0
    %974 = vmatpush1.bf16.msra.mxu0 %v908
    %975 = vmatprep.subr.bf16.mxu0 0
    %976 = vmatpush1.bf16.msra.mxu0 %v909
    %977 = vmatprep.subr.bf16.mxu0 0
    %978 = vmatpush1.bf16.msra.mxu0 %v910
    %979 = vmatprep.subr.bf16.mxu0 0
    %980 = vmatpush1.bf16.msra.mxu0 %v911
    %981 = vmatprep.subr.bf16.mxu0 0
    %982 = vmatpush1.bf16.msra.mxu0 %v912
    %983 = vmatprep.subr.bf16.mxu0 0
    %984 = vmatpush1.bf16.msra.mxu0 %v913
    %985 = vmatprep.subr.bf16.mxu0 0
    %986 = vmatpush1.bf16.msra.mxu0 %v914
    %987 = vmatprep.subr.bf16.mxu0 0
    %988 = vmatpush1.bf16.msra.mxu0 %v915
    %989 = vmatprep.subr.bf16.mxu0 0
    %990 = vmatpush1.bf16.msra.mxu0 %v916
    %991 = vmatprep.subr.bf16.mxu0 0
    %992 = vmatpush1.bf16.msra.mxu0 %v917
    %993 = vmatprep.subr.bf16.mxu0 0
    %994 = vmatpush1.bf16.msra.mxu0 %v918
    %995 = vmatprep.subr.bf16.mxu0 0
    %996 = vmatpush1.bf16.msra.mxu0 %v919
    %997 = vmatprep.subr.bf16.mxu0 0
    %998 = vmatpush1.bf16.msra.mxu0 %v920
    %999 = vmatprep.subr.bf16.mxu0 0
    %1000 = vmatpush1.bf16.msra.mxu0 %v921
    %1001 = vmatprep.subr.bf16.mxu0 0
    %1002 = vmatpush1.bf16.msra.mxu0 %v922
    %1003 = vmatprep.mubr.bf16.mxu0 %v705
    %1004 = vmatmul.mubr.bf16.gmra.mrb[0].mxu0 %v704
    %v1005 = vpop.f32.mrb[0].mxu0
    %v1006 = vadd.f32 %v777, %v1005
    %v1007 = vpop.f32.mrb[0].mxu0
    %v1008 = vpop.f32.mrb[0].mxu0
    %v1009 = vpop.f32.mrb[0].mxu0
    %1010 = vdwg.mxu0
    %1011 = vmatprep.subr.bf16.mxu0 0
    %1012 = vmatpush1.bf16.msra.mxu0 %v923
    %1013 = vmatprep.subr.bf16.mxu0 0
    %1014 = vmatpush1.bf16.msra.mxu0 %v924
    %1015 = vmatprep.subr.bf16.mxu0 0
    %1016 = vmatpush1.bf16.msra.mxu0 %v925
    %1017 = vmatprep.subr.bf16.mxu0 0
    %1018 = vmatpush1.bf16.msra.mxu0 %v926
    %1019 = vmatprep.subr.bf16.mxu0 0
    %1020 = vmatpush1.bf16.msra.mxu0 %v927
    %1021 = vmatprep.subr.bf16.mxu0 0
    %1022 = vmatpush1.bf16.msra.mxu0 %v928
    %1023 = vmatprep.subr.bf16.mxu0 0
    %1024 = vmatpush1.bf16.msra.mxu0 %v929
    %1025 = vmatprep.subr.bf16.mxu0 0
    %1026 = vmatpush1.bf16.msra.mxu0 %v930
    %1027 = vmatprep.subr.bf16.mxu0 0
    %1028 = vmatpush1.bf16.msra.mxu0 %v931
    %1029 = vmatprep.subr.bf16.mxu0 0
    %1030 = vmatpush1.bf16.msra.mxu0 %v932
    %1031 = vmatprep.subr.bf16.mxu0 0
    %1032 = vmatpush1.bf16.msra.mxu0 %v933
    %1033 = vmatprep.subr.bf16.mxu0 0
    %1034 = vmatpush1.bf16.msra.mxu0 %v934
    %1035 = vmatprep.subr.bf16.mxu0 0
    %1036 = vmatpush1.bf16.msra.mxu0 %v935
    %1037 = vmatprep.subr.bf16.mxu0 0
    %1038 = vmatpush1.bf16.msra.mxu0 %v936
    %1039 = vmatprep.subr.bf16.mxu0 0
    %1040 = vmatpush1.bf16.msra.mxu0 %v937
    %1041 = vmatprep.subr.bf16.mxu0 0
    %1042 = vmatpush1.bf16.msra.mxu0 %v938
    %1043 = vmatprep.mubr.bf16.mxu0 %v707
    %1044 = vmatmul.mubr.bf16.gmra.mrb[0].mxu0 %v706
    %v1045 = vpop.f32.mrb[0].mxu0
    %v1046 = vadd.f32 %v1006, %v1045
    %v1047 = vpop.f32.mrb[0].mxu0
    %v1048 = vpop.f32.mrb[0].mxu0
    %v1049 = vpop.f32.mrb[0].mxu0
    %1050 = vdwg.mxu0
    %vm1051 = vcmask 74752
    %1052 = vst.msk [vmem:[#allocation2] sm:$0x3] %vm1051, %v1046
    // Predicated region
    $region30: #{vit3d_forward.5} parent=1 // pred_check
      _
    $region31: #{vit3d_forward.5} parent=1 // pred_check_branch
      %1054 = sbr.rel (0) target = $region33
    $region32: #{vit3d_forward.5} parent=1 // pred_region
      %s1056 = ssub.s32 32, 32
      %1057 = vsyncadd [#allocation3], %s1056
      %s1059 = sshll.u32 [#allocation2], 4
      %s1060 = int_to_ptr.vmem [resolvable:$true] %s1059
      %1062 = dma.vmem_to_hbm [thread:$0]  %s1060, 32, %s7, [#allocation3]
    $region33: #{vit3d_forward.5} parent=1 // pred_fallthru
      _
    // Predicated region
    $region34: #{vit3d_forward.5} parent=1 // pred_check
      _
    $region35: #{vit3d_forward.5} parent=1 // pred_check_branch
      %1064 = sbr.rel (0) target = $region37
    $region36: #{vit3d_forward.5} parent=1 // pred_region
      %1065 = dma.done [#allocation3], 32
    $region37: #{vit3d_forward.5} parent=1 // pred_fallthru
      _
    %1066 = vsyncpa [#allocation3], 1

</llo_original>
